<compile_context>
chip_gen: v5e
topology: v5e:2x2
jax: 0.10.0
libtpu: 0.0.40
codegen_flags: <defaults>
</compile_context>

<pallas_src>
import jax
import jax.numpy as jnp
from jax import lax
from jax.experimental import pallas as pl
from jax.experimental.pallas import tpu as pltpu

NUM_TYPES = 119      # torch.nn.Embedding(119, F)
_VOCAB_PAD = 128     # 119 rounded up to lane width / one MXU K pass
_TILE_N = 512        # fixed node tile (static -> stable compiles, big DMA tile)
_CHUNK = 128         # in-kernel sub-chunk: one-hot (128,128) f32 = 16 vregs


def pad_embedding_vocab(emb_table):
    """Pad the [119, F] table once at init to [128, F] along vocab only.

    Padded vocab rows are zero and never selected for valid atomic numbers.
    """
    v, f = emb_table.shape
    tp = jnp.zeros((_VOCAB_PAD, f), emb_table.dtype)
    return tp.at[:v, :].set(emb_table)


def _embedding_kernel(idx_ref, table_ref, attrs_ref):
    # idx_ref   : (TILE_N, 1)        int32   -- atomic numbers for this tile
    # table_ref : (128, F)           float32 -- vocab-padded table (resident)
    # attrs_ref : (TILE_N, F)        float32 -- gathered node attributes
    table = table_ref[...]                                      # (128, F)
    tile_n = idx_ref.shape[0]
    n_chunks = tile_n // _CHUNK

    def body(c, carry):
        r0 = pl.multiple_of(c * _CHUNK, _CHUNK)
        idx = idx_ref[pl.ds(r0, _CHUNK), :]                     # (CHUNK, 1)
        col = lax.broadcasted_iota(jnp.int32, (_CHUNK, _VOCAB_PAD), 1)
        onehot = (col == idx).astype(table.dtype)               # (CHUNK, 128)
        # Exact row selection: HIGHEST keeps f32 table rows exact through the
        # MXU's multi-pass f32 path (single nonzero per one-hot row).
        attrs_ref[pl.ds(r0, _CHUNK), :] = jnp.dot(
            onehot, table,
            preferred_element_type=jnp.float32,
            precision=lax.Precision.HIGHEST,
        ).astype(attrs_ref.dtype)
        return carry

    lax.fori_loop(0, n_chunks, body, None, unroll=True)


@jax.jit
def _forward_impl(atomic_numbers, table_padded):
    n = atomic_numbers.shape[0]
    v_pad, f = table_padded.shape
    idx = atomic_numbers.astype(jnp.int32).reshape(n, 1)        # metadata-only

    grid = (pl.cdiv(n, _TILE_N),)
    return pl.pallas_call(
        _embedding_kernel,
        out_shape=jax.ShapeDtypeStruct((n, f), table_padded.dtype),
        grid_spec=pltpu.PrefetchScalarGridSpec(
            num_scalar_prefetch=0,
            grid=grid,
            in_specs=[
                pl.BlockSpec((_TILE_N, 1), lambda i: (i, 0)),    # node ids tile
                pl.BlockSpec((v_pad, f), lambda i: (0, 0)),      # table, resident
            ],
            out_specs=pl.BlockSpec((_TILE_N, f), lambda i: (i, 0)),
        ),
        compiler_params=pltpu.CompilerParams(
            dimension_semantics=("parallel",)),                  # megacore shard
    )(idx, table_padded)


def embedding_block_forward(atomic_numbers, table_padded, *, set_features=True):
    """Forward of Embedding_block.

    atomic_numbers: int32 [N]
    table_padded:   float32 [128, F]  (from pad_embedding_vocab, once at init)
    returns dict with 'node_attrs' (and aliased 'node_features' if set_features).
    """
    node_attrs = _forward_impl(atomic_numbers, table_padded)
    out = {"node_attrs": node_attrs}
    if set_features:
        out["node_features"] = node_attrs   # same tensor, as in torch
    return out


if __name__ == "__main__":
    num_node_attr_feas = 32   # F
    num_nodes = 8             # N (atoms in a small graph)

    key = jax.random.PRNGKey(0)
    k_tab, k_idx = jax.random.split(key)

    # torch.nn.Embedding default init is N(0, 1) on the weight.
    emb_table = jax.random.normal(k_tab, (NUM_TYPES, num_node_attr_feas),
                                  dtype=jnp.float32)
    atomic_numbers = jax.random.randint(k_idx, (num_nodes,), 1, NUM_TYPES,
                                        dtype=jnp.int32)

    # Pad the table ONCE at "model init" time (vocab dim only, 119 -> 128).
    table_padded = pad_embedding_vocab(emb_table)

    out = embedding_block_forward(atomic_numbers, table_padded)
    jax.block_until_ready(out)

    # Correctness check against plain-JAX embedding lookup.
    ref = emb_table[atomic_numbers]
    assert out["node_attrs"].shape == (num_nodes, num_node_attr_feas)
    assert jnp.array_equal(out["node_attrs"], ref)
    assert jnp.array_equal(out["node_features"], ref)

    # Second check: multi-step grid + partial (masked) last block path.
    n2 = 1000   # -> grid of 2 steps with tile 512, last block partial
    an2 = jax.random.randint(jax.random.PRNGKey(1), (n2,), 0, NUM_TYPES,
                             dtype=jnp.int32)
    out2 = embedding_block_forward(an2, table_padded)
    jax.block_until_ready(out2)
    assert out2["node_attrs"].shape == (n2, num_node_attr_feas)
    assert jnp.array_equal(out2["node_attrs"], emb_table[an2])

    print("KERNEL_OK")
</pallas_src>

<mosaic_0001>
module attributes {stable_mosaic.version = 11 : i64} {
  func.func @_embedding_kernel(%arg0: i32, %arg1: memref<512x1xi32, #tpu.memory_space<vmem>>, %arg2: memref<128x32xf32, #tpu.memory_space<vmem>>, %arg3: memref<512x32xf32, #tpu.memory_space<vmem>>) attributes {dimension_semantics = [#tpu.dimension_semantics<parallel>], iteration_bounds = array<i64: 1>, scalar_prefetch = 0 : i64, scratch_operands = 0 : i64, tpu.core_type = #tpu.core_type<tc>, window_params = [{transform_indices = @transform_0, window_bounds = array<i64: 512, 1>}, {pipeline_mode = #tpu.pipeline_mode<synchronous>, transform_indices = @transform_1, window_bounds = array<i64: 128, 32>}, {transform_indices = @transform_2, window_bounds = array<i64: 512, 32>}]} {
    %c0 = arith.constant 0 : index
    %c0_0 = arith.constant 0 : index
    %0 = vector.load %arg2[%c0, %c0_0] : memref<128x32xf32, #tpu.memory_space<vmem>>, vector<128x32xf32>
    %c0_i32 = arith.constant 0 : i32
    %c128_i32 = arith.constant 128 : i32
    %1 = arith.muli %c0_i32, %c128_i32 : i32
    %2 = tpu.assume_multiple %1, 128 : i32
    %3 = arith.index_cast %2 : i32 to index
    %c0_1 = arith.constant 0 : index
    %4 = vector.load %arg1[%3, %c0_1] : memref<512x1xi32, #tpu.memory_space<vmem>>, vector<128x1xi32>
    %5 = tpu.iota {dimensions = array<i32: 1>} : vector<128x128xi32>
    %6 = vector.broadcast %4 : vector<128x1xi32> to vector<128x128xi32>
    %7 = arith.cmpi eq, %5, %6 : vector<128x128xi32>
    %8 = arith.extui %7 : vector<128x128xi1> to vector<128x128xi32>
    %9 = arith.sitofp %8 : vector<128x128xi32> to vector<128x128xf32>
    %cst = arith.constant dense<0.000000e+00> : vector<128x32xf32>
    %10 = tpu.matmul %9, %0, %cst {dimension_numbers = #tpu.dot_dimension_numbers<[1], [0], [0], [1], [0, 0, 1, 1], [], []>, precision = #tpu.contract_precision<fp32>} : vector<128x128xf32>, vector<128x32xf32>, vector<128x32xf32> -> vector<128x32xf32>
    %11 = arith.index_cast %2 : i32 to index
    %c0_2 = arith.constant 0 : index
    %12 = vector.load %arg3[%11, %c0_2] : memref<512x32xf32, #tpu.memory_space<vmem>>, vector<128x32xf32>
    tpu.vector_store %arg3[%11, %c0_2], %10 {strides = array<i32>} : memref<512x32xf32, #tpu.memory_space<vmem>>, vector<128x32xf32>,
    %c1_i32 = arith.constant 1 : i32
    %c128_i32_3 = arith.constant 128 : i32
    %13 = arith.muli %c1_i32, %c128_i32_3 : i32
    %14 = tpu.assume_multiple %13, 128 : i32
    %15 = arith.index_cast %14 : i32 to index
    %c0_4 = arith.constant 0 : index
    %16 = vector.load %arg1[%15, %c0_4] : memref<512x1xi32, #tpu.memory_space<vmem>>, vector<128x1xi32>
    %17 = tpu.iota {dimensions = array<i32: 1>} : vector<128x128xi32>
    %18 = vector.broadcast %16 : vector<128x1xi32> to vector<128x128xi32>
    %19 = arith.cmpi eq, %17, %18 : vector<128x128xi32>
    %20 = arith.extui %19 : vector<128x128xi1> to vector<128x128xi32>
    %21 = arith.sitofp %20 : vector<128x128xi32> to vector<128x128xf32>
    %cst_5 = arith.constant dense<0.000000e+00> : vector<128x32xf32>
    %22 = tpu.matmul %21, %0, %cst_5 {dimension_numbers = #tpu.dot_dimension_numbers<[1], [0], [0], [1], [0, 0, 1, 1], [], []>, precision = #tpu.contract_precision<fp32>} : vector<128x128xf32>, vector<128x32xf32>, vector<128x32xf32> -> vector<128x32xf32>
    %23 = arith.index_cast %14 : i32 to index
    %c0_6 = arith.constant 0 : index
    %24 = vector.load %arg3[%23, %c0_6] : memref<512x32xf32, #tpu.memory_space<vmem>>, vector<128x32xf32>
    tpu.vector_store %arg3[%23, %c0_6], %22 {strides = array<i32>} : memref<512x32xf32, #tpu.memory_space<vmem>>, vector<128x32xf32>,
    %c2_i32 = arith.constant 2 : i32
    %c128_i32_7 = arith.constant 128 : i32
    %25 = arith.muli %c2_i32, %c128_i32_7 : i32
    %26 = tpu.assume_multiple %25, 128 : i32
    %27 = arith.index_cast %26 : i32 to index
    %c0_8 = arith.constant 0 : index
    %28 = vector.load %arg1[%27, %c0_8] : memref<512x1xi32, #tpu.memory_space<vmem>>, vector<128x1xi32>
    %29 = tpu.iota {dimensions = array<i32: 1>} : vector<128x128xi32>
    %30 = vector.broadcast %28 : vector<128x1xi32> to vector<128x128xi32>
    %31 = arith.cmpi eq, %29, %30 : vector<128x128xi32>
    %32 = arith.extui %31 : vector<128x128xi1> to vector<128x128xi32>
    %33 = arith.sitofp %32 : vector<128x128xi32> to vector<128x128xf32>
    %cst_9 = arith.constant dense<0.000000e+00> : vector<128x32xf32>
    %34 = tpu.matmul %33, %0, %cst_9 {dimension_numbers = #tpu.dot_dimension_numbers<[1], [0], [0], [1], [0, 0, 1, 1], [], []>, precision = #tpu.contract_precision<fp32>} : vector<128x128xf32>, vector<128x32xf32>, vector<128x32xf32> -> vector<128x32xf32>
    %35 = arith.index_cast %26 : i32 to index
    %c0_10 = arith.constant 0 : index
    %36 = vector.load %arg3[%35, %c0_10] : memref<512x32xf32, #tpu.memory_space<vmem>>, vector<128x32xf32>
    tpu.vector_store %arg3[%35, %c0_10], %34 {strides = array<i32>} : memref<512x32xf32, #tpu.memory_space<vmem>>, vector<128x32xf32>,
    %c3_i32 = arith.constant 3 : i32
    %c128_i32_11 = arith.constant 128 : i32
    %37 = arith.muli %c3_i32, %c128_i32_11 : i32
    %38 = tpu.assume_multiple %37, 128 : i32
    %39 = arith.index_cast %38 : i32 to index
    %c0_12 = arith.constant 0 : index
    %40 = vector.load %arg1[%39, %c0_12] : memref<512x1xi32, #tpu.memory_space<vmem>>, vector<128x1xi32>
    %41 = tpu.iota {dimensions = array<i32: 1>} : vector<128x128xi32>
    %42 = vector.broadcast %40 : vector<128x1xi32> to vector<128x128xi32>
    %43 = arith.cmpi eq, %41, %42 : vector<128x128xi32>
    %44 = arith.extui %43 : vector<128x128xi1> to vector<128x128xi32>
    %45 = arith.sitofp %44 : vector<128x128xi32> to vector<128x128xf32>
    %cst_13 = arith.constant dense<0.000000e+00> : vector<128x32xf32>
    %46 = tpu.matmul %45, %0, %cst_13 {dimension_numbers = #tpu.dot_dimension_numbers<[1], [0], [0], [1], [0, 0, 1, 1], [], []>, precision = #tpu.contract_precision<fp32>} : vector<128x128xf32>, vector<128x32xf32>, vector<128x32xf32> -> vector<128x32xf32>
    %47 = arith.index_cast %38 : i32 to index
    %c0_14 = arith.constant 0 : index
    %48 = vector.load %arg3[%47, %c0_14] : memref<512x32xf32, #tpu.memory_space<vmem>>, vector<128x32xf32>
    tpu.vector_store %arg3[%47, %c0_14], %46 {strides = array<i32>} : memref<512x32xf32, #tpu.memory_space<vmem>>, vector<128x32xf32>,
    %c4_i32 = arith.constant 4 : i32
    return
  }
  func.func @transform_0(%arg0: i32) -> (i32, i32) {
    %c0_i32 = arith.constant 0 : i32
    %c0_i32_0 = arith.constant 0 : i32
    return %arg0, %c0_i32 : i32, i32
  }
  func.func @transform_1(%arg0: i32) -> (i32, i32) {
    %c0_i32 = arith.constant 0 : i32
    %c0_i32_0 = arith.constant 0 : i32
    %c0_i32_1 = arith.constant 0 : i32
    return %c0_i32, %c0_i32_0 : i32, i32
  }
  func.func @transform_2(%arg0: i32) -> (i32, i32) {
    %c0_i32 = arith.constant 0 : i32
    %c0_i32_0 = arith.constant 0 : i32
    return %arg0, %c0_i32 : i32, i32
  }
}

</mosaic_0001>

<llo_original>
// kernel: _forward_impl.1
$region0: #{_forward_impl.1}
  #allocation0 [shape = 'u32[]', space=smem, size = 0x4, offset = 0x4, fixed_abs, tag = 'smem constant byte address 0x4 - core index']
  #allocation1 [shape = 'u32[72,128]{1,0:T(1,128)}', space=vmem, size = 0x9000, scoped, tag = 'internal scratch']
  %s0 = inlined_call_operand.vmem [shape: s32[8,1], index: 0, kind: input, shape index: {}]
  %s1 = inlined_call_operand.vmem [shape: f32[128,32], index: 1, kind: input, shape index: {}]
  %s2 = inlined_call_operand.hbm [shape: f32[8,32], index: 2, kind: output, shape index: {}]
  %s3 = sld [smem:[#allocation0]]
  $region18: #{_forward_impl.1} parent=0
    _
  %s5 = ssub.s32 1, %s3
  %s6 = scalar_select 0, %s5, %s3
  $region1: #{_forward_impl.1} parent=0
    #allocation2 [shape = 'u8[262144]{0}', space=vmem, size = 0x40000, scoped, tag = 'output window, operand 0, single buffered']
    #allocation3 [shape = 's32[1]{0}', space=sflag, size = 0x4, scoped, tag = 'scoped memory for _forward_impl.1']
    %7 = vsyncpa [#allocation3], 0
    // Predicated region
    $region2: #{_forward_impl.1} parent=1 // pred_check
      _
    $region3: #{_forward_impl.1} parent=1 // pred_check_branch
      %9 = sbr.rel (0) target = $region5
    $region4: #{_forward_impl.1} parent=1 // pred_region
      _
    $region5: #{_forward_impl.1} parent=1 // pred_fallthru
      _
    // Predicated region
    $region6: #{_forward_impl.1} parent=1 // pred_check
      _
    $region7: #{_forward_impl.1} parent=1 // pred_check_branch
      %11 = sbr.rel (0) target = $region9
    $region8: #{_forward_impl.1} parent=1 // pred_region
      _
    $region9: #{_forward_impl.1} parent=1 // pred_fallthru
      _
    %v12 = vld [vmem:[%s1] sm:$0xff]
    %v13 = vld [vmem:[%s1 + $0x8] sm:$0xff]
    %v14 = vld [vmem:[%s1 + $0x10] sm:$0xff]
    %v15 = vld [vmem:[%s1 + $0x18] sm:$0xff]
    %v16 = vld [vmem:[%s1 + $0x20] sm:$0xff]
    %v17 = vld [vmem:[%s1 + $0x28] sm:$0xff]
    %v18 = vld [vmem:[%s1 + $0x30] sm:$0xff]
    %v19 = vld [vmem:[%s1 + $0x38] sm:$0xff]
    %v20 = vld [vmem:[%s1 + $0x40] sm:$0xff]
    %v21 = vld [vmem:[%s1 + $0x48] sm:$0xff]
    %v22 = vld [vmem:[%s1 + $0x50] sm:$0xff]
    %v23 = vld [vmem:[%s1 + $0x58] sm:$0xff]
    %v24 = vld [vmem:[%s1 + $0x60] sm:$0xff]
    %v25 = vld [vmem:[%s1 + $0x68] sm:$0xff]
    %v26 = vld [vmem:[%s1 + $0x70] sm:$0xff]
    %v27 = vld [vmem:[%s1 + $0x78] sm:$0xff]
    %v28 = vld [vmem:[%s0] sm:$0xff]
    %v29 = vld [vmem:[%s0 + $0x8] sm:$0xff]
    %v30 = vld [vmem:[%s0 + $0x10] sm:$0xff]
    %v31 = vld [vmem:[%s0 + $0x18] sm:$0xff]
    %v32 = vld [vmem:[%s0 + $0x20] sm:$0xff]
    %v33 = vld [vmem:[%s0 + $0x28] sm:$0xff]
    %v34 = vld [vmem:[%s0 + $0x30] sm:$0xff]
    %v35 = vld [vmem:[%s0 + $0x38] sm:$0xff]
    %v36 = vld [vmem:[%s0 + $0x40] sm:$0xff]
    %v37 = vld [vmem:[%s0 + $0x48] sm:$0xff]
    %v38 = vld [vmem:[%s0 + $0x50] sm:$0xff]
    %v39 = vld [vmem:[%s0 + $0x58] sm:$0xff]
    %v40 = vld [vmem:[%s0 + $0x60] sm:$0xff]
    %v41 = vld [vmem:[%s0 + $0x68] sm:$0xff]
    %v42 = vld [vmem:[%s0 + $0x70] sm:$0xff]
    %v43 = vld [vmem:[%s0 + $0x78] sm:$0xff]
    %v44 = vlaneseq
    %v45 = vand.u32 %v44, 127
    %46 = vset.pattern.permute.xlu0 0
    %47 = vperm.xlu0 %46, %v28
    %v48 = vpop.permute.xlu0 %47
    %49 = vset.pattern.permute.xlu0 0
    %50 = vperm.xlu0 %49, %v29
    %v51 = vpop.permute.xlu0 %50
    %52 = vset.pattern.permute.xlu0 0
    %53 = vperm.xlu0 %52, %v30
    %v54 = vpop.permute.xlu0 %53
    %55 = vset.pattern.permute.xlu0 0
    %56 = vperm.xlu0 %55, %v31
    %v57 = vpop.permute.xlu0 %56
    %58 = vset.pattern.permute.xlu0 0
    %59 = vperm.xlu0 %58, %v32
    %v60 = vpop.permute.xlu0 %59
    %61 = vset.pattern.permute.xlu0 0
    %62 = vperm.xlu0 %61, %v33
    %v63 = vpop.permute.xlu0 %62
    %64 = vset.pattern.permute.xlu0 0
    %65 = vperm.xlu0 %64, %v34
    %v66 = vpop.permute.xlu0 %65
    %67 = vset.pattern.permute.xlu0 0
    %68 = vperm.xlu0 %67, %v35
    %v69 = vpop.permute.xlu0 %68
    %70 = vset.pattern.permute.xlu0 0
    %71 = vperm.xlu0 %70, %v36
    %v72 = vpop.permute.xlu0 %71
    %73 = vset.pattern.permute.xlu0 0
    %74 = vperm.xlu0 %73, %v37
    %v75 = vpop.permute.xlu0 %74
    %76 = vset.pattern.permute.xlu0 0
    %77 = vperm.xlu0 %76, %v38
    %v78 = vpop.permute.xlu0 %77
    %79 = vset.pattern.permute.xlu0 0
    %80 = vperm.xlu0 %79, %v39
    %v81 = vpop.permute.xlu0 %80
    %82 = vset.pattern.permute.xlu0 0
    %83 = vperm.xlu0 %82, %v40
    %v84 = vpop.permute.xlu0 %83
    %85 = vset.pattern.permute.xlu0 0
    %86 = vperm.xlu0 %85, %v41
    %v87 = vpop.permute.xlu0 %86
    %88 = vset.pattern.permute.xlu0 0
    %89 = vperm.xlu0 %88, %v42
    %v90 = vpop.permute.xlu0 %89
    %91 = vset.pattern.permute.xlu0 0
    %92 = vperm.xlu0 %91, %v43
    %v93 = vpop.permute.xlu0 %92
    %vm94 = vcmp.eq.s32.totalorder %v45, %v48
    %vm95 = vcmp.eq.s32.totalorder %v45, %v51
    %vm96 = vcmp.eq.s32.totalorder %v45, %v54
    %vm97 = vcmp.eq.s32.totalorder %v45, %v57
    %vm98 = vcmp.eq.s32.totalorder %v45, %v60
    %vm99 = vcmp.eq.s32.totalorder %v45, %v63
    %vm100 = vcmp.eq.s32.totalorder %v45, %v66
    %vm101 = vcmp.eq.s32.totalorder %v45, %v69
    %vm102 = vcmp.eq.s32.totalorder %v45, %v72
    %vm103 = vcmp.eq.s32.totalorder %v45, %v75
    %vm104 = vcmp.eq.s32.totalorder %v45, %v78
    %vm105 = vcmp.eq.s32.totalorder %v45, %v81
    %vm106 = vcmp.eq.s32.totalorder %v45, %v84
    %vm107 = vcmp.eq.s32.totalorder %v45, %v87
    %vm108 = vcmp.eq.s32.totalorder %v45, %v90
    %vm109 = vcmp.eq.s32.totalorder %v45, %v93
    %v110 = vsel %vm94, 1, 0
    %v111 = vsel %vm95, 1, 0
    %v112 = vsel %vm96, 1, 0
    %v113 = vsel %vm97, 1, 0
    %v114 = vsel %vm98, 1, 0
    %v115 = vsel %vm99, 1, 0
    %v116 = vsel %vm100, 1, 0
    %v117 = vsel %vm101, 1, 0
    %v118 = vsel %vm102, 1, 0
    %v119 = vsel %vm103, 1, 0
    %v120 = vsel %vm104, 1, 0
    %v121 = vsel %vm105, 1, 0
    %v122 = vsel %vm106, 1, 0
    %v123 = vsel %vm107, 1, 0
    %v124 = vsel %vm108, 1, 0
    %v125 = vsel %vm109, 1, 0
    %v126 = vcvt.s32.f32 %v110
    %v127 = vcvt.s32.f32 %v111
    %v128 = vcvt.s32.f32 %v112
    %v129 = vcvt.s32.f32 %v113
    %v130 = vcvt.s32.f32 %v114
    %v131 = vcvt.s32.f32 %v115
    %v132 = vcvt.s32.f32 %v116
    %v133 = vcvt.s32.f32 %v117
    %v134 = vcvt.s32.f32 %v118
    %v135 = vcvt.s32.f32 %v119
    %v136 = vcvt.s32.f32 %v120
    %v137 = vcvt.s32.f32 %v121
    %v138 = vcvt.s32.f32 %v122
    %v139 = vcvt.s32.f32 %v123
    %v140 = vcvt.s32.f32 %v124
    %v141 = vcvt.s32.f32 %v125
    %v142 = vand.u32 %v27, 4294901760
    %143 = vmatpush.msra.mxu0 %v142
    %v144 = vand.u32 %v26, 4294901760
    %145 = vmatpush.msra.mxu0 %v144
    %v146 = vand.u32 %v25, 4294901760
    %147 = vmatpush.msra.mxu0 %v146
    %v148 = vand.u32 %v24, 4294901760
    %149 = vmatpush.msra.mxu0 %v148
    %v150 = vand.u32 %v23, 4294901760
    %151 = vmatpush.msra.mxu0 %v150
    %v152 = vand.u32 %v22, 4294901760
    %153 = vmatpush.msra.mxu0 %v152
    %v154 = vand.u32 %v21, 4294901760
    %155 = vmatpush.msra.mxu0 %v154
    %v156 = vand.u32 %v20, 4294901760
    %157 = vmatpush.msra.mxu0 %v156
    %v158 = vand.u32 %v19, 4294901760
    %159 = vmatpush.msra.mxu0 %v158
    %v160 = vand.u32 %v18, 4294901760
    %161 = vmatpush.msra.mxu0 %v160
    %v162 = vand.u32 %v17, 4294901760
    %163 = vmatpush.msra.mxu0 %v162
    %v164 = vand.u32 %v16, 4294901760
    %165 = vmatpush.msra.mxu0 %v164
    %v166 = vand.u32 %v15, 4294901760
    %167 = vmatpush.msra.mxu0 %v166
    %v168 = vand.u32 %v14, 4294901760
    %169 = vmatpush.msra.mxu0 %v168
    %v170 = vand.u32 %v13, 4294901760
    %171 = vmatpush.msra.mxu0 %v170
    %v172 = vand.u32 %v12, 4294901760
    %173 = vmatpush.msra.mxu0 %v172
    %v174 = vand.u32 %v126, 4294901760
    %v175 = vsub.f32 %v126, %v174
    %v176 = vand.u32 %v175, 4294901760
    %v177 = vsub.f32 %v175, %v176
    %v178 = vand.u32 %v177, 4294901760
    %179 = vmatmul.f32.gmra.mxu0 %v178
    %v180 = vpop.f32.mrf.mxu0
    %v181 = vadd.f32 0.0, %v180
    %v182 = vand.u32 %v127, 4294901760
    %v183 = vsub.f32 %v127, %v182
    %v184 = vand.u32 %v183, 4294901760
    %v185 = vsub.f32 %v183, %v184
    %v186 = vand.u32 %v185, 4294901760
    %187 = vmatmul.f32.gmra.mxu0 %v186
    %v188 = vpop.f32.mrf.mxu0
    %v189 = vadd.f32 0.0, %v188
    %v190 = vand.u32 %v128, 4294901760
    %v191 = vsub.f32 %v128, %v190
    %v192 = vand.u32 %v191, 4294901760
    %v193 = vsub.f32 %v191, %v192
    %v194 = vand.u32 %v193, 4294901760
    %195 = vmatmul.f32.gmra.mxu0 %v194
    %v196 = vpop.f32.mrf.mxu0
    %v197 = vadd.f32 0.0, %v196
    %v198 = vand.u32 %v129, 4294901760
    %v199 = vsub.f32 %v129, %v198
    %v200 = vand.u32 %v199, 4294901760
    %v201 = vsub.f32 %v199, %v200
    %v202 = vand.u32 %v201, 4294901760
    %203 = vmatmul.f32.gmra.mxu0 %v202
    %v204 = vpop.f32.mrf.mxu0
    %v205 = vadd.f32 0.0, %v204
    %v206 = vand.u32 %v130, 4294901760
    %v207 = vsub.f32 %v130, %v206
    %v208 = vand.u32 %v207, 4294901760
    %v209 = vsub.f32 %v207, %v208
    %v210 = vand.u32 %v209, 4294901760
    %211 = vmatmul.f32.gmra.mxu0 %v210
    %v212 = vpop.f32.mrf.mxu0
    %v213 = vadd.f32 0.0, %v212
    %v214 = vand.u32 %v131, 4294901760
    %v215 = vsub.f32 %v131, %v214
    %v216 = vand.u32 %v215, 4294901760
    %v217 = vsub.f32 %v215, %v216
    %v218 = vand.u32 %v217, 4294901760
    %219 = vmatmul.f32.gmra.mxu0 %v218
    %v220 = vpop.f32.mrf.mxu0
    %v221 = vadd.f32 0.0, %v220
    %v222 = vand.u32 %v132, 4294901760
    %v223 = vsub.f32 %v132, %v222
    %v224 = vand.u32 %v223, 4294901760
    %v225 = vsub.f32 %v223, %v224
    %v226 = vand.u32 %v225, 4294901760
    %227 = vmatmul.f32.gmra.mxu0 %v226
    %v228 = vpop.f32.mrf.mxu0
    %v229 = vadd.f32 0.0, %v228
    %v230 = vand.u32 %v133, 4294901760
    %v231 = vsub.f32 %v133, %v230
    %v232 = vand.u32 %v231, 4294901760
    %v233 = vsub.f32 %v231, %v232
    %v234 = vand.u32 %v233, 4294901760
    %235 = vmatmul.f32.gmra.mxu0 %v234
    %v236 = vpop.f32.mrf.mxu0
    %v237 = vadd.f32 0.0, %v236
    %v238 = vand.u32 %v134, 4294901760
    %v239 = vsub.f32 %v134, %v238
    %v240 = vand.u32 %v239, 4294901760
    %v241 = vsub.f32 %v239, %v240
    %v242 = vand.u32 %v241, 4294901760
    %243 = vmatmul.f32.gmra.mxu0 %v242
    %v244 = vpop.f32.mrf.mxu0
    %v245 = vadd.f32 0.0, %v244
    %v246 = vand.u32 %v135, 4294901760
    %v247 = vsub.f32 %v135, %v246
    %v248 = vand.u32 %v247, 4294901760
    %v249 = vsub.f32 %v247, %v248
    %v250 = vand.u32 %v249, 4294901760
    %251 = vmatmul.f32.gmra.mxu0 %v250
    %v252 = vpop.f32.mrf.mxu0
    %v253 = vadd.f32 0.0, %v252
    %v254 = vand.u32 %v136, 4294901760
    %v255 = vsub.f32 %v136, %v254
    %v256 = vand.u32 %v255, 4294901760
    %v257 = vsub.f32 %v255, %v256
    %v258 = vand.u32 %v257, 4294901760
    %259 = vmatmul.f32.gmra.mxu0 %v258
    %v260 = vpop.f32.mrf.mxu0
    %v261 = vadd.f32 0.0, %v260
    %v262 = vand.u32 %v137, 4294901760
    %v263 = vsub.f32 %v137, %v262
    %v264 = vand.u32 %v263, 4294901760
    %v265 = vsub.f32 %v263, %v264
    %v266 = vand.u32 %v265, 4294901760
    %267 = vmatmul.f32.gmra.mxu0 %v266
    %v268 = vpop.f32.mrf.mxu0
    %v269 = vadd.f32 0.0, %v268
    %v270 = vand.u32 %v138, 4294901760
    %v271 = vsub.f32 %v138, %v270
    %v272 = vand.u32 %v271, 4294901760
    %v273 = vsub.f32 %v271, %v272
    %v274 = vand.u32 %v273, 4294901760
    %275 = vmatmul.f32.gmra.mxu0 %v274
    %v276 = vpop.f32.mrf.mxu0
    %v277 = vadd.f32 0.0, %v276
    %v278 = vand.u32 %v139, 4294901760
    %v279 = vsub.f32 %v139, %v278
    %v280 = vand.u32 %v279, 4294901760
    %v281 = vsub.f32 %v279, %v280
    %v282 = vand.u32 %v281, 4294901760
    %283 = vmatmul.f32.gmra.mxu0 %v282
    %v284 = vpop.f32.mrf.mxu0
    %v285 = vadd.f32 0.0, %v284
    %v286 = vand.u32 %v140, 4294901760
    %v287 = vsub.f32 %v140, %v286
    %v288 = vand.u32 %v287, 4294901760
    %v289 = vsub.f32 %v287, %v288
    %v290 = vand.u32 %v289, 4294901760
    %291 = vmatmul.f32.gmra.mxu0 %v290
    %v292 = vpop.f32.mrf.mxu0
    %v293 = vadd.f32 0.0, %v292
    %v294 = vand.u32 %v141, 4294901760
    %v295 = vsub.f32 %v141, %v294
    %v296 = vand.u32 %v295, 4294901760
    %v297 = vsub.f32 %v295, %v296
    %v298 = vand.u32 %v297, 4294901760
    %299 = vmatmul.f32.gmra.mxu0 %v298
    %v300 = vpop.f32.mrf.mxu0
    %v301 = vadd.f32 0.0, %v300
    %302 = vdwg.mxu0
    %v303 = vand.u32 %v27, 4294901760
    %v304 = vsub.f32 %v27, %v303
    %v305 = vand.u32 %v304, 4294901760
    %v306 = vsub.f32 %v304, %v305
    %v307 = vand.u32 %v306, 4294901760
    %308 = vmatpush.msra.mxu0 %v307
    %v309 = vand.u32 %v26, 4294901760
    %v310 = vsub.f32 %v26, %v309
    %v311 = vand.u32 %v310, 4294901760
    %v312 = vsub.f32 %v310, %v311
    %v313 = vand.u32 %v312, 4294901760
    %314 = vmatpush.msra.mxu0 %v313
    %v315 = vand.u32 %v25, 4294901760
    %v316 = vsub.f32 %v25, %v315
    %v317 = vand.u32 %v316, 4294901760
    %v318 = vsub.f32 %v316, %v317
    %v319 = vand.u32 %v318, 4294901760
    %320 = vmatpush.msra.mxu0 %v319
    %v321 = vand.u32 %v24, 4294901760
    %v322 = vsub.f32 %v24, %v321
    %v323 = vand.u32 %v322, 4294901760
    %v324 = vsub.f32 %v322, %v323
    %v325 = vand.u32 %v324, 4294901760
    %326 = vmatpush.msra.mxu0 %v325
    %v327 = vand.u32 %v23, 4294901760
    %v328 = vsub.f32 %v23, %v327
    %v329 = vand.u32 %v328, 4294901760
    %v330 = vsub.f32 %v328, %v329
    %v331 = vand.u32 %v330, 4294901760
    %332 = vmatpush.msra.mxu0 %v331
    %v333 = vand.u32 %v22, 4294901760
    %v334 = vsub.f32 %v22, %v333
    %v335 = vand.u32 %v334, 4294901760
    %v336 = vsub.f32 %v334, %v335
    %v337 = vand.u32 %v336, 4294901760
    %338 = vmatpush.msra.mxu0 %v337
    %v339 = vand.u32 %v21, 4294901760
    %v340 = vsub.f32 %v21, %v339
    %v341 = vand.u32 %v340, 4294901760
    %v342 = vsub.f32 %v340, %v341
    %v343 = vand.u32 %v342, 4294901760
    %344 = vmatpush.msra.mxu0 %v343
    %v345 = vand.u32 %v20, 4294901760
    %v346 = vsub.f32 %v20, %v345
    %v347 = vand.u32 %v346, 4294901760
    %v348 = vsub.f32 %v346, %v347
    %v349 = vand.u32 %v348, 4294901760
    %350 = vmatpush.msra.mxu0 %v349
    %v351 = vand.u32 %v19, 4294901760
    %v352 = vsub.f32 %v19, %v351
    %v353 = vand.u32 %v352, 4294901760
    %v354 = vsub.f32 %v352, %v353
    %v355 = vand.u32 %v354, 4294901760
    %356 = vmatpush.msra.mxu0 %v355
    %v357 = vand.u32 %v18, 4294901760
    %v358 = vsub.f32 %v18, %v357
    %v359 = vand.u32 %v358, 4294901760
    %v360 = vsub.f32 %v358, %v359
    %v361 = vand.u32 %v360, 4294901760
    %362 = vmatpush.msra.mxu0 %v361
    %v363 = vand.u32 %v17, 4294901760
    %v364 = vsub.f32 %v17, %v363
    %v365 = vand.u32 %v364, 4294901760
    %v366 = vsub.f32 %v364, %v365
    %v367 = vand.u32 %v366, 4294901760
    %368 = vmatpush.msra.mxu0 %v367
    %v369 = vand.u32 %v16, 4294901760
    %v370 = vsub.f32 %v16, %v369
    %v371 = vand.u32 %v370, 4294901760
    %v372 = vsub.f32 %v370, %v371
    %v373 = vand.u32 %v372, 4294901760
    %374 = vmatpush.msra.mxu0 %v373
    %v375 = vand.u32 %v15, 4294901760
    %v376 = vsub.f32 %v15, %v375
    %v377 = vand.u32 %v376, 4294901760
    %v378 = vsub.f32 %v376, %v377
    %v379 = vand.u32 %v378, 4294901760
    %380 = vmatpush.msra.mxu0 %v379
    %v381 = vand.u32 %v14, 4294901760
    %v382 = vsub.f32 %v14, %v381
    %v383 = vand.u32 %v382, 4294901760
    %v384 = vsub.f32 %v382, %v383
    %v385 = vand.u32 %v384, 4294901760
    %386 = vmatpush.msra.mxu0 %v385
    %v387 = vand.u32 %v13, 4294901760
    %v388 = vsub.f32 %v13, %v387
    %v389 = vand.u32 %v388, 4294901760
    %v390 = vsub.f32 %v388, %v389
    %v391 = vand.u32 %v390, 4294901760
    %392 = vmatpush.msra.mxu0 %v391
    %v393 = vand.u32 %v12, 4294901760
    %v394 = vsub.f32 %v12, %v393
    %v395 = vand.u32 %v394, 4294901760
    %v396 = vsub.f32 %v394, %v395
    %v397 = vand.u32 %v396, 4294901760
    %398 = vmatpush.msra.mxu0 %v397
    %v399 = vand.u32 %v126, 4294901760
    %400 = vmatmul.f32.gmra.mxu0 %v399
    %v401 = vpop.f32.mrf.mxu0
    %v402 = vadd.f32 %v181, %v401
    %v403 = vand.u32 %v127, 4294901760
    %404 = vmatmul.f32.gmra.mxu0 %v403
    %v405 = vpop.f32.mrf.mxu0
    %v406 = vadd.f32 %v189, %v405
    %v407 = vand.u32 %v128, 4294901760
    %408 = vmatmul.f32.gmra.mxu0 %v407
    %v409 = vpop.f32.mrf.mxu0
    %v410 = vadd.f32 %v197, %v409
    %v411 = vand.u32 %v129, 4294901760
    %412 = vmatmul.f32.gmra.mxu0 %v411
    %v413 = vpop.f32.mrf.mxu0
    %v414 = vadd.f32 %v205, %v413
    %v415 = vand.u32 %v130, 4294901760
    %416 = vmatmul.f32.gmra.mxu0 %v415
    %v417 = vpop.f32.mrf.mxu0
    %v418 = vadd.f32 %v213, %v417
    %v419 = vand.u32 %v131, 4294901760
    %420 = vmatmul.f32.gmra.mxu0 %v419
    %v421 = vpop.f32.mrf.mxu0
    %v422 = vadd.f32 %v221, %v421
    %v423 = vand.u32 %v132, 4294901760
    %424 = vmatmul.f32.gmra.mxu0 %v423
    %v425 = vpop.f32.mrf.mxu0
    %v426 = vadd.f32 %v229, %v425
    %v427 = vand.u32 %v133, 4294901760
    %428 = vmatmul.f32.gmra.mxu0 %v427
    %v429 = vpop.f32.mrf.mxu0
    %v430 = vadd.f32 %v237, %v429
    %v431 = vand.u32 %v134, 4294901760
    %432 = vmatmul.f32.gmra.mxu0 %v431
    %v433 = vpop.f32.mrf.mxu0
    %v434 = vadd.f32 %v245, %v433
    %v435 = vand.u32 %v135, 4294901760
    %436 = vmatmul.f32.gmra.mxu0 %v435
    %v437 = vpop.f32.mrf.mxu0
    %v438 = vadd.f32 %v253, %v437
    %v439 = vand.u32 %v136, 4294901760
    %440 = vmatmul.f32.gmra.mxu0 %v439
    %v441 = vpop.f32.mrf.mxu0
    %v442 = vadd.f32 %v261, %v441
    %v443 = vand.u32 %v137, 4294901760
    %444 = vmatmul.f32.gmra.mxu0 %v443
    %v445 = vpop.f32.mrf.mxu0
    %v446 = vadd.f32 %v269, %v445
    %v447 = vand.u32 %v138, 4294901760
    %448 = vmatmul.f32.gmra.mxu0 %v447
    %v449 = vpop.f32.mrf.mxu0
    %v450 = vadd.f32 %v277, %v449
    %v451 = vand.u32 %v139, 4294901760
    %452 = vmatmul.f32.gmra.mxu0 %v451
    %v453 = vpop.f32.mrf.mxu0
    %v454 = vadd.f32 %v285, %v453
    %v455 = vand.u32 %v140, 4294901760
    %456 = vmatmul.f32.gmra.mxu0 %v455
    %v457 = vpop.f32.mrf.mxu0
    %v458 = vadd.f32 %v293, %v457
    %v459 = vand.u32 %v141, 4294901760
    %460 = vmatmul.f32.gmra.mxu0 %v459
    %v461 = vpop.f32.mrf.mxu0
    %v462 = vadd.f32 %v301, %v461
    %463 = vdwg.mxu0
    %v464 = vand.u32 %v27, 4294901760
    %v465 = vsub.f32 %v27, %v464
    %466 = vmatpush.msra.mxu0 %v465
    %v467 = vand.u32 %v26, 4294901760
    %v468 = vsub.f32 %v26, %v467
    %469 = vmatpush.msra.mxu0 %v468
    %v470 = vand.u32 %v25, 4294901760
    %v471 = vsub.f32 %v25, %v470
    %472 = vmatpush.msra.mxu0 %v471
    %v473 = vand.u32 %v24, 4294901760
    %v474 = vsub.f32 %v24, %v473
    %475 = vmatpush.msra.mxu0 %v474
    %v476 = vand.u32 %v23, 4294901760
    %v477 = vsub.f32 %v23, %v476
    %478 = vmatpush.msra.mxu0 %v477
    %v479 = vand.u32 %v22, 4294901760
    %v480 = vsub.f32 %v22, %v479
    %481 = vmatpush.msra.mxu0 %v480
    %v482 = vand.u32 %v21, 4294901760
    %v483 = vsub.f32 %v21, %v482
    %484 = vmatpush.msra.mxu0 %v483
    %v485 = vand.u32 %v20, 4294901760
    %v486 = vsub.f32 %v20, %v485
    %487 = vmatpush.msra.mxu0 %v486
    %v488 = vand.u32 %v19, 4294901760
    %v489 = vsub.f32 %v19, %v488
    %490 = vmatpush.msra.mxu0 %v489
    %v491 = vand.u32 %v18, 4294901760
    %v492 = vsub.f32 %v18, %v491
    %493 = vmatpush.msra.mxu0 %v492
    %v494 = vand.u32 %v17, 4294901760
    %v495 = vsub.f32 %v17, %v494
    %496 = vmatpush.msra.mxu0 %v495
    %v497 = vand.u32 %v16, 4294901760
    %v498 = vsub.f32 %v16, %v497
    %499 = vmatpush.msra.mxu0 %v498
    %v500 = vand.u32 %v15, 4294901760
    %v501 = vsub.f32 %v15, %v500
    %502 = vmatpush.msra.mxu0 %v501
    %v503 = vand.u32 %v14, 4294901760
    %v504 = vsub.f32 %v14, %v503
    %505 = vmatpush.msra.mxu0 %v504
    %v506 = vand.u32 %v13, 4294901760
    %v507 = vsub.f32 %v13, %v506
    %508 = vmatpush.msra.mxu0 %v507
    %v509 = vand.u32 %v12, 4294901760
    %v510 = vsub.f32 %v12, %v509
    %511 = vmatpush.msra.mxu0 %v510
    %v512 = vand.u32 %v126, 4294901760
    %v513 = vsub.f32 %v126, %v512
    %514 = vmatmul.f32.gmra.mxu0 %v513
    %v515 = vpop.f32.mrf.mxu0
    %v516 = vadd.f32 %v402, %v515
    %v517 = vand.u32 %v127, 4294901760
    %v518 = vsub.f32 %v127, %v517
    %519 = vmatmul.f32.gmra.mxu0 %v518
    %v520 = vpop.f32.mrf.mxu0
    %v521 = vadd.f32 %v406, %v520
    %v522 = vand.u32 %v128, 4294901760
    %v523 = vsub.f32 %v128, %v522
    %524 = vmatmul.f32.gmra.mxu0 %v523
    %v525 = vpop.f32.mrf.mxu0
    %v526 = vadd.f32 %v410, %v525
    %v527 = vand.u32 %v129, 4294901760
    %v528 = vsub.f32 %v129, %v527
    %529 = vmatmul.f32.gmra.mxu0 %v528
    %v530 = vpop.f32.mrf.mxu0
    %v531 = vadd.f32 %v414, %v530
    %v532 = vand.u32 %v130, 4294901760
    %v533 = vsub.f32 %v130, %v532
    %534 = vmatmul.f32.gmra.mxu0 %v533
    %v535 = vpop.f32.mrf.mxu0
    %v536 = vadd.f32 %v418, %v535
    %v537 = vand.u32 %v131, 4294901760
    %v538 = vsub.f32 %v131, %v537
    %539 = vmatmul.f32.gmra.mxu0 %v538
    %v540 = vpop.f32.mrf.mxu0
    %v541 = vadd.f32 %v422, %v540
    %v542 = vand.u32 %v132, 4294901760
    %v543 = vsub.f32 %v132, %v542
    %544 = vmatmul.f32.gmra.mxu0 %v543
    %v545 = vpop.f32.mrf.mxu0
    %v546 = vadd.f32 %v426, %v545
    %v547 = vand.u32 %v133, 4294901760
    %v548 = vsub.f32 %v133, %v547
    %549 = vmatmul.f32.gmra.mxu0 %v548
    %v550 = vpop.f32.mrf.mxu0
    %v551 = vadd.f32 %v430, %v550
    %v552 = vand.u32 %v134, 4294901760
    %v553 = vsub.f32 %v134, %v552
    %554 = vmatmul.f32.gmra.mxu0 %v553
    %v555 = vpop.f32.mrf.mxu0
    %v556 = vadd.f32 %v434, %v555
    %v557 = vand.u32 %v135, 4294901760
    %v558 = vsub.f32 %v135, %v557
    %559 = vmatmul.f32.gmra.mxu0 %v558
    %v560 = vpop.f32.mrf.mxu0
    %v561 = vadd.f32 %v438, %v560
    %v562 = vand.u32 %v136, 4294901760
    %v563 = vsub.f32 %v136, %v562
    %564 = vmatmul.f32.gmra.mxu0 %v563
    %v565 = vpop.f32.mrf.mxu0
    %v566 = vadd.f32 %v442, %v565
    %v567 = vand.u32 %v137, 4294901760
    %v568 = vsub.f32 %v137, %v567
    %569 = vmatmul.f32.gmra.mxu0 %v568
    %v570 = vpop.f32.mrf.mxu0
    %v571 = vadd.f32 %v446, %v570
    %v572 = vand.u32 %v138, 4294901760
    %v573 = vsub.f32 %v138, %v572
    %574 = vmatmul.f32.gmra.mxu0 %v573
    %v575 = vpop.f32.mrf.mxu0
    %v576 = vadd.f32 %v450, %v575
    %v577 = vand.u32 %v139, 4294901760
    %v578 = vsub.f32 %v139, %v577
    %579 = vmatmul.f32.gmra.mxu0 %v578
    %v580 = vpop.f32.mrf.mxu0
    %v581 = vadd.f32 %v454, %v580
    %v582 = vand.u32 %v140, 4294901760
    %v583 = vsub.f32 %v140, %v582
    %584 = vmatmul.f32.gmra.mxu0 %v583
    %v585 = vpop.f32.mrf.mxu0
    %v586 = vadd.f32 %v458, %v585
    %v587 = vand.u32 %v141, 4294901760
    %v588 = vsub.f32 %v141, %v587
    %589 = vmatmul.f32.gmra.mxu0 %v588
    %v590 = vpop.f32.mrf.mxu0
    %v591 = vadd.f32 %v462, %v590
    %592 = vdwg.mxu0
    %v593 = vand.u32 %v27, 4294901760
    %594 = vmatpush.msra.mxu0 %v593
    %v595 = vand.u32 %v26, 4294901760
    %596 = vmatpush.msra.mxu0 %v595
    %v597 = vand.u32 %v25, 4294901760
    %598 = vmatpush.msra.mxu0 %v597
    %v599 = vand.u32 %v24, 4294901760
    %600 = vmatpush.msra.mxu0 %v599
    %v601 = vand.u32 %v23, 4294901760
    %602 = vmatpush.msra.mxu0 %v601
    %v603 = vand.u32 %v22, 4294901760
    %604 = vmatpush.msra.mxu0 %v603
    %v605 = vand.u32 %v21, 4294901760
    %606 = vmatpush.msra.mxu0 %v605
    %v607 = vand.u32 %v20, 4294901760
    %608 = vmatpush.msra.mxu0 %v607
    %v609 = vand.u32 %v19, 4294901760
    %610 = vmatpush.msra.mxu0 %v609
    %v611 = vand.u32 %v18, 4294901760
    %612 = vmatpush.msra.mxu0 %v611
    %v613 = vand.u32 %v17, 4294901760
    %614 = vmatpush.msra.mxu0 %v613
    %v615 = vand.u32 %v16, 4294901760
    %616 = vmatpush.msra.mxu0 %v615
    %v617 = vand.u32 %v15, 4294901760
    %618 = vmatpush.msra.mxu0 %v617
    %v619 = vand.u32 %v14, 4294901760
    %620 = vmatpush.msra.mxu0 %v619
    %v621 = vand.u32 %v13, 4294901760
    %622 = vmatpush.msra.mxu0 %v621
    %v623 = vand.u32 %v12, 4294901760
    %624 = vmatpush.msra.mxu0 %v623
    %v625 = vand.u32 %v126, 4294901760
    %v626 = vsub.f32 %v126, %v625
    %v627 = vand.u32 %v626, 4294901760
    %628 = vmatmul.f32.gmra.mxu0 %v627
    %v629 = vpop.f32.mrf.mxu0
    %v630 = vadd.f32 %v516, %v629
    %v631 = vand.u32 %v127, 4294901760
    %v632 = vsub.f32 %v127, %v631
    %v633 = vand.u32 %v632, 4294901760
    %634 = vmatmul.f32.gmra.mxu0 %v633
    %v635 = vpop.f32.mrf.mxu0
    %v636 = vadd.f32 %v521, %v635
    %v637 = vand.u32 %v128, 4294901760
    %v638 = vsub.f32 %v128, %v637
    %v639 = vand.u32 %v638, 4294901760
    %640 = vmatmul.f32.gmra.mxu0 %v639
    %v641 = vpop.f32.mrf.mxu0
    %v642 = vadd.f32 %v526, %v641
    %v643 = vand.u32 %v129, 4294901760
    %v644 = vsub.f32 %v129, %v643
    %v645 = vand.u32 %v644, 4294901760
    %646 = vmatmul.f32.gmra.mxu0 %v645
    %v647 = vpop.f32.mrf.mxu0
    %v648 = vadd.f32 %v531, %v647
    %v649 = vand.u32 %v130, 4294901760
    %v650 = vsub.f32 %v130, %v649
    %v651 = vand.u32 %v650, 4294901760
    %652 = vmatmul.f32.gmra.mxu0 %v651
    %v653 = vpop.f32.mrf.mxu0
    %v654 = vadd.f32 %v536, %v653
    %v655 = vand.u32 %v131, 4294901760
    %v656 = vsub.f32 %v131, %v655
    %v657 = vand.u32 %v656, 4294901760
    %658 = vmatmul.f32.gmra.mxu0 %v657
    %v659 = vpop.f32.mrf.mxu0
    %v660 = vadd.f32 %v541, %v659
    %v661 = vand.u32 %v132, 4294901760
    %v662 = vsub.f32 %v132, %v661
    %v663 = vand.u32 %v662, 4294901760
    %664 = vmatmul.f32.gmra.mxu0 %v663
    %v665 = vpop.f32.mrf.mxu0
    %v666 = vadd.f32 %v546, %v665
    %v667 = vand.u32 %v133, 4294901760
    %v668 = vsub.f32 %v133, %v667
    %v669 = vand.u32 %v668, 4294901760
    %670 = vmatmul.f32.gmra.mxu0 %v669
    %v671 = vpop.f32.mrf.mxu0
    %v672 = vadd.f32 %v551, %v671
    %v673 = vand.u32 %v134, 4294901760
    %v674 = vsub.f32 %v134, %v673
    %v675 = vand.u32 %v674, 4294901760
    %676 = vmatmul.f32.gmra.mxu0 %v675
    %v677 = vpop.f32.mrf.mxu0
    %v678 = vadd.f32 %v556, %v677
    %v679 = vand.u32 %v135, 4294901760
    %v680 = vsub.f32 %v135, %v679
    %v681 = vand.u32 %v680, 4294901760
    %682 = vmatmul.f32.gmra.mxu0 %v681
    %v683 = vpop.f32.mrf.mxu0
    %v684 = vadd.f32 %v561, %v683
    %v685 = vand.u32 %v136, 4294901760
    %v686 = vsub.f32 %v136, %v685
    %v687 = vand.u32 %v686, 4294901760
    %688 = vmatmul.f32.gmra.mxu0 %v687
    %v689 = vpop.f32.mrf.mxu0
    %v690 = vadd.f32 %v566, %v689
    %v691 = vand.u32 %v137, 4294901760
    %v692 = vsub.f32 %v137, %v691
    %v693 = vand.u32 %v692, 4294901760
    %694 = vmatmul.f32.gmra.mxu0 %v693
    %v695 = vpop.f32.mrf.mxu0
    %v696 = vadd.f32 %v571, %v695
    %v697 = vand.u32 %v138, 4294901760
    %v698 = vsub.f32 %v138, %v697
    %v699 = vand.u32 %v698, 4294901760
    %700 = vmatmul.f32.gmra.mxu0 %v699
    %v701 = vpop.f32.mrf.mxu0
    %v702 = vadd.f32 %v576, %v701
    %v703 = vand.u32 %v139, 4294901760
    %v704 = vsub.f32 %v139, %v703
    %v705 = vand.u32 %v704, 4294901760
    %706 = vmatmul.f32.gmra.mxu0 %v705
    %v707 = vpop.f32.mrf.mxu0
    %v708 = vadd.f32 %v581, %v707
    %v709 = vand.u32 %v140, 4294901760
    %v710 = vsub.f32 %v140, %v709
    %v711 = vand.u32 %v710, 4294901760
    %712 = vmatmul.f32.gmra.mxu0 %v711
    %v713 = vpop.f32.mrf.mxu0
    %v714 = vadd.f32 %v586, %v713
    %v715 = vand.u32 %v141, 4294901760
    %v716 = vsub.f32 %v141, %v715
    %v717 = vand.u32 %v716, 4294901760
    %718 = vmatmul.f32.gmra.mxu0 %v717
    %v719 = vpop.f32.mrf.mxu0
    %v720 = vadd.f32 %v591, %v719
    %721 = vdwg.mxu0
    %v722 = vand.u32 %v27, 4294901760
    %v723 = vsub.f32 %v27, %v722
    %v724 = vand.u32 %v723, 4294901760
    %725 = vmatpush.msra.mxu0 %v724
    %v726 = vand.u32 %v26, 4294901760
    %v727 = vsub.f32 %v26, %v726
    %v728 = vand.u32 %v727, 4294901760
    %729 = vmatpush.msra.mxu0 %v728
    %v730 = vand.u32 %v25, 4294901760
    %v731 = vsub.f32 %v25, %v730
    %v732 = vand.u32 %v731, 4294901760
    %733 = vmatpush.msra.mxu0 %v732
    %v734 = vand.u32 %v24, 4294901760
    %v735 = vsub.f32 %v24, %v734
    %v736 = vand.u32 %v735, 4294901760
    %737 = vmatpush.msra.mxu0 %v736
    %v738 = vand.u32 %v23, 4294901760
    %v739 = vsub.f32 %v23, %v738
    %v740 = vand.u32 %v739, 4294901760
    %741 = vmatpush.msra.mxu0 %v740
    %v742 = vand.u32 %v22, 4294901760
    %v743 = vsub.f32 %v22, %v742
    %v744 = vand.u32 %v743, 4294901760
    %745 = vmatpush.msra.mxu0 %v744
    %v746 = vand.u32 %v21, 4294901760
    %v747 = vsub.f32 %v21, %v746
    %v748 = vand.u32 %v747, 4294901760
    %749 = vmatpush.msra.mxu0 %v748
    %v750 = vand.u32 %v20, 4294901760
    %v751 = vsub.f32 %v20, %v750
    %v752 = vand.u32 %v751, 4294901760
    %753 = vmatpush.msra.mxu0 %v752
    %v754 = vand.u32 %v19, 4294901760
    %v755 = vsub.f32 %v19, %v754
    %v756 = vand.u32 %v755, 4294901760
    %757 = vmatpush.msra.mxu0 %v756
    %v758 = vand.u32 %v18, 4294901760
    %v759 = vsub.f32 %v18, %v758
    %v760 = vand.u32 %v759, 4294901760
    %761 = vmatpush.msra.mxu0 %v760
    %v762 = vand.u32 %v17, 4294901760
    %v763 = vsub.f32 %v17, %v762
    %v764 = vand.u32 %v763, 4294901760
    %765 = vmatpush.msra.mxu0 %v764
    %v766 = vand.u32 %v16, 4294901760
    %v767 = vsub.f32 %v16, %v766
    %v768 = vand.u32 %v767, 4294901760
    %769 = vmatpush.msra.mxu0 %v768
    %v770 = vand.u32 %v15, 4294901760
    %v771 = vsub.f32 %v15, %v770
    %v772 = vand.u32 %v771, 4294901760
    %773 = vmatpush.msra.mxu0 %v772
    %v774 = vand.u32 %v14, 4294901760
    %v775 = vsub.f32 %v14, %v774
    %v776 = vand.u32 %v775, 4294901760
    %777 = vmatpush.msra.mxu0 %v776
    %v778 = vand.u32 %v13, 4294901760
    %v779 = vsub.f32 %v13, %v778
    %v780 = vand.u32 %v779, 4294901760
    %781 = vmatpush.msra.mxu0 %v780
    %v782 = vand.u32 %v12, 4294901760
    %v783 = vsub.f32 %v12, %v782
    %v784 = vand.u32 %v783, 4294901760
    %785 = vmatpush.msra.mxu0 %v784
    %v786 = vand.u32 %v126, 4294901760
    %787 = vmatmul.f32.gmra.mxu0 %v786
    %v788 = vpop.f32.mrf.mxu0
    %v789 = vadd.f32 %v630, %v788
    %v790 = vand.u32 %v127, 4294901760
    %791 = vmatmul.f32.gmra.mxu0 %v790
    %v792 = vpop.f32.mrf.mxu0
    %v793 = vadd.f32 %v636, %v792
    %v794 = vand.u32 %v128, 4294901760
    %795 = vmatmul.f32.gmra.mxu0 %v794
    %v796 = vpop.f32.mrf.mxu0
    %v797 = vadd.f32 %v642, %v796
    %v798 = vand.u32 %v129, 4294901760
    %799 = vmatmul.f32.gmra.mxu0 %v798
    %v800 = vpop.f32.mrf.mxu0
    %v801 = vadd.f32 %v648, %v800
    %v802 = vand.u32 %v130, 4294901760
    %803 = vmatmul.f32.gmra.mxu0 %v802
    %v804 = vpop.f32.mrf.mxu0
    %v805 = vadd.f32 %v654, %v804
    %v806 = vand.u32 %v131, 4294901760
    %807 = vmatmul.f32.gmra.mxu0 %v806
    %v808 = vpop.f32.mrf.mxu0
    %v809 = vadd.f32 %v660, %v808
    %v810 = vand.u32 %v132, 4294901760
    %811 = vmatmul.f32.gmra.mxu0 %v810
    %v812 = vpop.f32.mrf.mxu0
    %v813 = vadd.f32 %v666, %v812
    %v814 = vand.u32 %v133, 4294901760
    %815 = vmatmul.f32.gmra.mxu0 %v814
    %v816 = vpop.f32.mrf.mxu0
    %v817 = vadd.f32 %v672, %v816
    %v818 = vand.u32 %v134, 4294901760
    %819 = vmatmul.f32.gmra.mxu0 %v818
    %v820 = vpop.f32.mrf.mxu0
    %v821 = vadd.f32 %v678, %v820
    %v822 = vand.u32 %v135, 4294901760
    %823 = vmatmul.f32.gmra.mxu0 %v822
    %v824 = vpop.f32.mrf.mxu0
    %v825 = vadd.f32 %v684, %v824
    %v826 = vand.u32 %v136, 4294901760
    %827 = vmatmul.f32.gmra.mxu0 %v826
    %v828 = vpop.f32.mrf.mxu0
    %v829 = vadd.f32 %v690, %v828
    %v830 = vand.u32 %v137, 4294901760
    %831 = vmatmul.f32.gmra.mxu0 %v830
    %v832 = vpop.f32.mrf.mxu0
    %v833 = vadd.f32 %v696, %v832
    %v834 = vand.u32 %v138, 4294901760
    %835 = vmatmul.f32.gmra.mxu0 %v834
    %v836 = vpop.f32.mrf.mxu0
    %v837 = vadd.f32 %v702, %v836
    %v838 = vand.u32 %v139, 4294901760
    %839 = vmatmul.f32.gmra.mxu0 %v838
    %v840 = vpop.f32.mrf.mxu0
    %v841 = vadd.f32 %v708, %v840
    %v842 = vand.u32 %v140, 4294901760
    %843 = vmatmul.f32.gmra.mxu0 %v842
    %v844 = vpop.f32.mrf.mxu0
    %v845 = vadd.f32 %v714, %v844
    %v846 = vand.u32 %v141, 4294901760
    %847 = vmatmul.f32.gmra.mxu0 %v846
    %v848 = vpop.f32.mrf.mxu0
    %v849 = vadd.f32 %v720, %v848
    %850 = vdwg.mxu0
    %v851 = vand.u32 %v27, 4294901760
    %852 = vmatpush.msra.mxu0 %v851
    %v853 = vand.u32 %v26, 4294901760
    %854 = vmatpush.msra.mxu0 %v853
    %v855 = vand.u32 %v25, 4294901760
    %856 = vmatpush.msra.mxu0 %v855
    %v857 = vand.u32 %v24, 4294901760
    %858 = vmatpush.msra.mxu0 %v857
    %v859 = vand.u32 %v23, 4294901760
    %860 = vmatpush.msra.mxu0 %v859
    %v861 = vand.u32 %v22, 4294901760
    %862 = vmatpush.msra.mxu0 %v861
    %v863 = vand.u32 %v21, 4294901760
    %864 = vmatpush.msra.mxu0 %v863
    %v865 = vand.u32 %v20, 4294901760
    %866 = vmatpush.msra.mxu0 %v865
    %v867 = vand.u32 %v19, 4294901760
    %868 = vmatpush.msra.mxu0 %v867
    %v869 = vand.u32 %v18, 4294901760
    %870 = vmatpush.msra.mxu0 %v869
    %v871 = vand.u32 %v17, 4294901760
    %872 = vmatpush.msra.mxu0 %v871
    %v873 = vand.u32 %v16, 4294901760
    %874 = vmatpush.msra.mxu0 %v873
    %v875 = vand.u32 %v15, 4294901760
    %876 = vmatpush.msra.mxu0 %v875
    %v877 = vand.u32 %v14, 4294901760
    %878 = vmatpush.msra.mxu0 %v877
    %v879 = vand.u32 %v13, 4294901760
    %880 = vmatpush.msra.mxu0 %v879
    %v881 = vand.u32 %v12, 4294901760
    %882 = vmatpush.msra.mxu0 %v881
    %v883 = vand.u32 %v126, 4294901760
    %884 = vmatmul.f32.gmra.mxu0 %v883
    %v885 = vpop.f32.mrf.mxu0
    %v886 = vadd.f32 %v789, %v885
    %v887 = vand.u32 %v127, 4294901760
    %888 = vmatmul.f32.gmra.mxu0 %v887
    %v889 = vpop.f32.mrf.mxu0
    %v890 = vadd.f32 %v793, %v889
    %v891 = vand.u32 %v128, 4294901760
    %892 = vmatmul.f32.gmra.mxu0 %v891
    %v893 = vpop.f32.mrf.mxu0
    %v894 = vadd.f32 %v797, %v893
    %v895 = vand.u32 %v129, 4294901760
    %896 = vmatmul.f32.gmra.mxu0 %v895
    %v897 = vpop.f32.mrf.mxu0
    %v898 = vadd.f32 %v801, %v897
    %v899 = vand.u32 %v130, 4294901760
    %900 = vmatmul.f32.gmra.mxu0 %v899
    %v901 = vpop.f32.mrf.mxu0
    %v902 = vadd.f32 %v805, %v901
    %v903 = vand.u32 %v131, 4294901760
    %904 = vmatmul.f32.gmra.mxu0 %v903
    %v905 = vpop.f32.mrf.mxu0
    %v906 = vadd.f32 %v809, %v905
    %v907 = vand.u32 %v132, 4294901760
    %908 = vmatmul.f32.gmra.mxu0 %v907
    %v909 = vpop.f32.mrf.mxu0
    %v910 = vadd.f32 %v813, %v909
    %v911 = vand.u32 %v133, 4294901760
    %912 = vmatmul.f32.gmra.mxu0 %v911
    %v913 = vpop.f32.mrf.mxu0
    %v914 = vadd.f32 %v817, %v913
    %v915 = vand.u32 %v134, 4294901760
    %916 = vmatmul.f32.gmra.mxu0 %v915
    %v917 = vpop.f32.mrf.mxu0
    %v918 = vadd.f32 %v821, %v917
    %v919 = vand.u32 %v135, 4294901760
    %920 = vmatmul.f32.gmra.mxu0 %v919
    %v921 = vpop.f32.mrf.mxu0
    %v922 = vadd.f32 %v825, %v921
    %v923 = vand.u32 %v136, 4294901760
    %924 = vmatmul.f32.gmra.mxu0 %v923
    %v925 = vpop.f32.mrf.mxu0
    %v926 = vadd.f32 %v829, %v925
    %v927 = vand.u32 %v137, 4294901760
    %928 = vmatmul.f32.gmra.mxu0 %v927
    %v929 = vpop.f32.mrf.mxu0
    %v930 = vadd.f32 %v833, %v929
    %v931 = vand.u32 %v138, 4294901760
    %932 = vmatmul.f32.gmra.mxu0 %v931
    %v933 = vpop.f32.mrf.mxu0
    %v934 = vadd.f32 %v837, %v933
    %v935 = vand.u32 %v139, 4294901760
    %936 = vmatmul.f32.gmra.mxu0 %v935
    %v937 = vpop.f32.mrf.mxu0
    %v938 = vadd.f32 %v841, %v937
    %v939 = vand.u32 %v140, 4294901760
    %940 = vmatmul.f32.gmra.mxu0 %v939
    %v941 = vpop.f32.mrf.mxu0
    %v942 = vadd.f32 %v845, %v941
    %v943 = vand.u32 %v141, 4294901760
    %944 = vmatmul.f32.gmra.mxu0 %v943
    %v945 = vpop.f32.mrf.mxu0
    %v946 = vadd.f32 %v849, %v945
    %947 = vdwg.mxu0
    %vm948 = vcmask 261120
    %949 = vst.msk [vmem:[#allocation2] sm:$0xff] %vm948, %v886
    %950 = vst.msk [vmem:[#allocation2 + $0x8] sm:$0xff] %vm948, %v890
    %951 = vst.msk [vmem:[#allocation2 + $0x10] sm:$0xff] %vm948, %v894
    %952 = vst.msk [vmem:[#allocation2 + $0x18] sm:$0xff] %vm948, %v898
    %953 = vst.msk [vmem:[#allocation2 + $0x20] sm:$0xff] %vm948, %v902
    %954 = vst.msk [vmem:[#allocation2 + $0x28] sm:$0xff] %vm948, %v906
    %955 = vst.msk [vmem:[#allocation2 + $0x30] sm:$0xff] %vm948, %v910
    %956 = vst.msk [vmem:[#allocation2 + $0x38] sm:$0xff] %vm948, %v914
    %957 = vst.msk [vmem:[#allocation2 + $0x40] sm:$0xff] %vm948, %v918
    %958 = vst.msk [vmem:[#allocation2 + $0x48] sm:$0xff] %vm948, %v922
    %959 = vst.msk [vmem:[#allocation2 + $0x50] sm:$0xff] %vm948, %v926
    %960 = vst.msk [vmem:[#allocation2 + $0x58] sm:$0xff] %vm948, %v930
    %961 = vst.msk [vmem:[#allocation2 + $0x60] sm:$0xff] %vm948, %v934
    %962 = vst.msk [vmem:[#allocation2 + $0x68] sm:$0xff] %vm948, %v938
    %963 = vst.msk [vmem:[#allocation2 + $0x70] sm:$0xff] %vm948, %v942
    %964 = vst.msk [vmem:[#allocation2 + $0x78] sm:$0xff] %vm948, %v946
    %s965 = scalar_lea.vmem %s0, 128
    %v966 = vld [vmem:[%s965] sm:$0xff]
    %v967 = vld [vmem:[%s965 + $0x8] sm:$0xff]
    %v968 = vld [vmem:[%s965 + $0x10] sm:$0xff]
    %v969 = vld [vmem:[%s965 + $0x18] sm:$0xff]
    %v970 = vld [vmem:[%s965 + $0x20] sm:$0xff]
    %v971 = vld [vmem:[%s965 + $0x28] sm:$0xff]
    %v972 = vld [vmem:[%s965 + $0x30] sm:$0xff]
    %v973 = vld [vmem:[%s965 + $0x38] sm:$0xff]
    %v974 = vld [vmem:[%s965 + $0x40] sm:$0xff]
    %v975 = vld [vmem:[%s965 + $0x48] sm:$0xff]
    %v976 = vld [vmem:[%s965 + $0x50] sm:$0xff]
    %v977 = vld [vmem:[%s965 + $0x58] sm:$0xff]
    %v978 = vld [vmem:[%s965 + $0x60] sm:$0xff]
    %v979 = vld [vmem:[%s965 + $0x68] sm:$0xff]
    %v980 = vld [vmem:[%s965 + $0x70] sm:$0xff]
    %v981 = vld [vmem:[%s965 + $0x78] sm:$0xff]
    %982 = vset.pattern.permute.xlu0 0
    %983 = vperm.xlu0 %982, %v966
    %v984 = vpop.permute.xlu0 %983
    %985 = vset.pattern.permute.xlu0 0
    %986 = vperm.xlu0 %985, %v967
    %v987 = vpop.permute.xlu0 %986
    %988 = vset.pattern.permute.xlu0 0
    %989 = vperm.xlu0 %988, %v968
    %v990 = vpop.permute.xlu0 %989
    %991 = vset.pattern.permute.xlu0 0
    %992 = vperm.xlu0 %991, %v969
    %v993 = vpop.permute.xlu0 %992
    %994 = vset.pattern.permute.xlu0 0
    %995 = vperm.xlu0 %994, %v970
    %v996 = vpop.permute.xlu0 %995
    %997 = vset.pattern.permute.xlu0 0
    %998 = vperm.xlu0 %997, %v971
    %v999 = vpop.permute.xlu0 %998
    %1000 = vset.pattern.permute.xlu0 0
    %1001 = vperm.xlu0 %1000, %v972
    %v1002 = vpop.permute.xlu0 %1001
    %1003 = vset.pattern.permute.xlu0 0
    %1004 = vperm.xlu0 %1003, %v973
    %v1005 = vpop.permute.xlu0 %1004
    %1006 = vset.pattern.permute.xlu0 0
    %1007 = vperm.xlu0 %1006, %v974
    %v1008 = vpop.permute.xlu0 %1007
    %1009 = vset.pattern.permute.xlu0 0
    %1010 = vperm.xlu0 %1009, %v975
    %v1011 = vpop.permute.xlu0 %1010
    %1012 = vset.pattern.permute.xlu0 0
    %1013 = vperm.xlu0 %1012, %v976
    %v1014 = vpop.permute.xlu0 %1013
    %1015 = vset.pattern.permute.xlu0 0
    %1016 = vperm.xlu0 %1015, %v977
    %v1017 = vpop.permute.xlu0 %1016
    %1018 = vset.pattern.permute.xlu0 0
    %1019 = vperm.xlu0 %1018, %v978
    %v1020 = vpop.permute.xlu0 %1019
    %1021 = vset.pattern.permute.xlu0 0
    %1022 = vperm.xlu0 %1021, %v979
    %v1023 = vpop.permute.xlu0 %1022
    %1024 = vset.pattern.permute.xlu0 0
    %1025 = vperm.xlu0 %1024, %v980
    %v1026 = vpop.permute.xlu0 %1025
    %1027 = vset.pattern.permute.xlu0 0
    %1028 = vperm.xlu0 %1027, %v981
    %v1029 = vpop.permute.xlu0 %1028
    %vm1030 = vcmp.eq.s32.totalorder %v45, %v984
    %vm1031 = vcmp.eq.s32.totalorder %v45, %v987
    %vm1032 = vcmp.eq.s32.totalorder %v45, %v990
    %vm1033 = vcmp.eq.s32.totalorder %v45, %v993
    %vm1034 = vcmp.eq.s32.totalorder %v45, %v996
    %vm1035 = vcmp.eq.s32.totalorder %v45, %v999
    %vm1036 = vcmp.eq.s32.totalorder %v45, %v1002
    %vm1037 = vcmp.eq.s32.totalorder %v45, %v1005
    %vm1038 = vcmp.eq.s32.totalorder %v45, %v1008
    %vm1039 = vcmp.eq.s32.totalorder %v45, %v1011
    %vm1040 = vcmp.eq.s32.totalorder %v45, %v1014
    %vm1041 = vcmp.eq.s32.totalorder %v45, %v1017
    %vm1042 = vcmp.eq.s32.totalorder %v45, %v1020
    %vm1043 = vcmp.eq.s32.totalorder %v45, %v1023
    %vm1044 = vcmp.eq.s32.totalorder %v45, %v1026
    %vm1045 = vcmp.eq.s32.totalorder %v45, %v1029
    %v1046 = vsel %vm1030, 1, 0
    %v1047 = vsel %vm1031, 1, 0
    %v1048 = vsel %vm1032, 1, 0
    %v1049 = vsel %vm1033, 1, 0
    %v1050 = vsel %vm1034, 1, 0
    %v1051 = vsel %vm1035, 1, 0
    %v1052 = vsel %vm1036, 1, 0
    %v1053 = vsel %vm1037, 1, 0
    %v1054 = vsel %vm1038, 1, 0
    %v1055 = vsel %vm1039, 1, 0
    %v1056 = vsel %vm1040, 1, 0
    %v1057 = vsel %vm1041, 1, 0
    %v1058 = vsel %vm1042, 1, 0
    %v1059 = vsel %vm1043, 1, 0
    %v1060 = vsel %vm1044, 1, 0
    %v1061 = vsel %vm1045, 1, 0
    %v1062 = vcvt.s32.f32 %v1046
    %v1063 = vcvt.s32.f32 %v1047
    %v1064 = vcvt.s32.f32 %v1048
    %v1065 = vcvt.s32.f32 %v1049
    %v1066 = vcvt.s32.f32 %v1050
    %v1067 = vcvt.s32.f32 %v1051
    %v1068 = vcvt.s32.f32 %v1052
    %v1069 = vcvt.s32.f32 %v1053
    %v1070 = vcvt.s32.f32 %v1054
    %v1071 = vcvt.s32.f32 %v1055
    %v1072 = vcvt.s32.f32 %v1056
    %v1073 = vcvt.s32.f32 %v1057
    %v1074 = vcvt.s32.f32 %v1058
    %v1075 = vcvt.s32.f32 %v1059
    %v1076 = vcvt.s32.f32 %v1060
    %v1077 = vcvt.s32.f32 %v1061
    %v1078 = vand.u32 %v27, 4294901760
    %1079 = vmatpush.msra.mxu0 %v1078
    %v1080 = vand.u32 %v26, 4294901760
    %1081 = vmatpush.msra.mxu0 %v1080
    %v1082 = vand.u32 %v25, 4294901760
    %1083 = vmatpush.msra.mxu0 %v1082
    %v1084 = vand.u32 %v24, 4294901760
    %1085 = vmatpush.msra.mxu0 %v1084
    %v1086 = vand.u32 %v23, 4294901760
    %1087 = vmatpush.msra.mxu0 %v1086
    %v1088 = vand.u32 %v22, 4294901760
    %1089 = vmatpush.msra.mxu0 %v1088
    %v1090 = vand.u32 %v21, 4294901760
    %1091 = vmatpush.msra.mxu0 %v1090
    %v1092 = vand.u32 %v20, 4294901760
    %1093 = vmatpush.msra.mxu0 %v1092
    %v1094 = vand.u32 %v19, 4294901760
    %1095 = vmatpush.msra.mxu0 %v1094
    %v1096 = vand.u32 %v18, 4294901760
    %1097 = vmatpush.msra.mxu0 %v1096
    %v1098 = vand.u32 %v17, 4294901760
    %1099 = vmatpush.msra.mxu0 %v1098
    %v1100 = vand.u32 %v16, 4294901760
    %1101 = vmatpush.msra.mxu0 %v1100
    %v1102 = vand.u32 %v15, 4294901760
    %1103 = vmatpush.msra.mxu0 %v1102
    %v1104 = vand.u32 %v14, 4294901760
    %1105 = vmatpush.msra.mxu0 %v1104
    %v1106 = vand.u32 %v13, 4294901760
    %1107 = vmatpush.msra.mxu0 %v1106
    %v1108 = vand.u32 %v12, 4294901760
    %1109 = vmatpush.msra.mxu0 %v1108
    %v1110 = vand.u32 %v1062, 4294901760
    %v1111 = vsub.f32 %v1062, %v1110
    %v1112 = vand.u32 %v1111, 4294901760
    %v1113 = vsub.f32 %v1111, %v1112
    %v1114 = vand.u32 %v1113, 4294901760
    %1115 = vmatmul.f32.gmra.mxu0 %v1114
    %v1116 = vpop.f32.mrf.mxu0
    %v1117 = vadd.f32 0.0, %v1116
    %v1118 = vand.u32 %v1063, 4294901760
    %v1119 = vsub.f32 %v1063, %v1118
    %v1120 = vand.u32 %v1119, 4294901760
    %v1121 = vsub.f32 %v1119, %v1120
    %v1122 = vand.u32 %v1121, 4294901760
    %1123 = vmatmul.f32.gmra.mxu0 %v1122
    %v1124 = vpop.f32.mrf.mxu0
    %v1125 = vadd.f32 0.0, %v1124
    %v1126 = vand.u32 %v1064, 4294901760
    %v1127 = vsub.f32 %v1064, %v1126
    %v1128 = vand.u32 %v1127, 4294901760
    %v1129 = vsub.f32 %v1127, %v1128
    %v1130 = vand.u32 %v1129, 4294901760
    %1131 = vmatmul.f32.gmra.mxu0 %v1130
    %v1132 = vpop.f32.mrf.mxu0
    %v1133 = vadd.f32 0.0, %v1132
    %v1134 = vand.u32 %v1065, 4294901760
    %v1135 = vsub.f32 %v1065, %v1134
    %v1136 = vand.u32 %v1135, 4294901760
    %v1137 = vsub.f32 %v1135, %v1136
    %v1138 = vand.u32 %v1137, 4294901760
    %1139 = vmatmul.f32.gmra.mxu0 %v1138
    %v1140 = vpop.f32.mrf.mxu0
    %v1141 = vadd.f32 0.0, %v1140
    %v1142 = vand.u32 %v1066, 4294901760
    %v1143 = vsub.f32 %v1066, %v1142
    %v1144 = vand.u32 %v1143, 4294901760
    %v1145 = vsub.f32 %v1143, %v1144
    %v1146 = vand.u32 %v1145, 4294901760
    %1147 = vmatmul.f32.gmra.mxu0 %v1146
    %v1148 = vpop.f32.mrf.mxu0
    %v1149 = vadd.f32 0.0, %v1148
    %v1150 = vand.u32 %v1067, 4294901760
    %v1151 = vsub.f32 %v1067, %v1150
    %v1152 = vand.u32 %v1151, 4294901760
    %v1153 = vsub.f32 %v1151, %v1152
    %v1154 = vand.u32 %v1153, 4294901760
    %1155 = vmatmul.f32.gmra.mxu0 %v1154
    %v1156 = vpop.f32.mrf.mxu0
    %v1157 = vadd.f32 0.0, %v1156
    %v1158 = vand.u32 %v1068, 4294901760
    %v1159 = vsub.f32 %v1068, %v1158
    %v1160 = vand.u32 %v1159, 4294901760
    %v1161 = vsub.f32 %v1159, %v1160
    %v1162 = vand.u32 %v1161, 4294901760
    %1163 = vmatmul.f32.gmra.mxu0 %v1162
    %v1164 = vpop.f32.mrf.mxu0
    %v1165 = vadd.f32 0.0, %v1164
    %v1166 = vand.u32 %v1069, 4294901760
    %v1167 = vsub.f32 %v1069, %v1166
    %v1168 = vand.u32 %v1167, 4294901760
    %v1169 = vsub.f32 %v1167, %v1168
    %v1170 = vand.u32 %v1169, 4294901760
    %1171 = vmatmul.f32.gmra.mxu0 %v1170
    %v1172 = vpop.f32.mrf.mxu0
    %v1173 = vadd.f32 0.0, %v1172
    %v1174 = vand.u32 %v1070, 4294901760
    %v1175 = vsub.f32 %v1070, %v1174
    %v1176 = vand.u32 %v1175, 4294901760
    %v1177 = vsub.f32 %v1175, %v1176
    %v1178 = vand.u32 %v1177, 4294901760
    %1179 = vmatmul.f32.gmra.mxu0 %v1178
    %v1180 = vpop.f32.mrf.mxu0
    %v1181 = vadd.f32 0.0, %v1180
    %v1182 = vand.u32 %v1071, 4294901760
    %v1183 = vsub.f32 %v1071, %v1182
    %v1184 = vand.u32 %v1183, 4294901760
    %v1185 = vsub.f32 %v1183, %v1184
    %v1186 = vand.u32 %v1185, 4294901760
    %1187 = vmatmul.f32.gmra.mxu0 %v1186
    %v1188 = vpop.f32.mrf.mxu0
    %v1189 = vadd.f32 0.0, %v1188
    %v1190 = vand.u32 %v1072, 4294901760
    %v1191 = vsub.f32 %v1072, %v1190
    %v1192 = vand.u32 %v1191, 4294901760
    %v1193 = vsub.f32 %v1191, %v1192
    %v1194 = vand.u32 %v1193, 4294901760
    %1195 = vmatmul.f32.gmra.mxu0 %v1194
    %v1196 = vpop.f32.mrf.mxu0
    %v1197 = vadd.f32 0.0, %v1196
    %v1198 = vand.u32 %v1073, 4294901760
    %v1199 = vsub.f32 %v1073, %v1198
    %v1200 = vand.u32 %v1199, 4294901760
    %v1201 = vsub.f32 %v1199, %v1200
    %v1202 = vand.u32 %v1201, 4294901760
    %1203 = vmatmul.f32.gmra.mxu0 %v1202
    %v1204 = vpop.f32.mrf.mxu0
    %v1205 = vadd.f32 0.0, %v1204
    %v1206 = vand.u32 %v1074, 4294901760
    %v1207 = vsub.f32 %v1074, %v1206
    %v1208 = vand.u32 %v1207, 4294901760
    %v1209 = vsub.f32 %v1207, %v1208
    %v1210 = vand.u32 %v1209, 4294901760
    %1211 = vmatmul.f32.gmra.mxu0 %v1210
    %v1212 = vpop.f32.mrf.mxu0
    %v1213 = vadd.f32 0.0, %v1212
    %v1214 = vand.u32 %v1075, 4294901760
    %v1215 = vsub.f32 %v1075, %v1214
    %v1216 = vand.u32 %v1215, 4294901760
    %v1217 = vsub.f32 %v1215, %v1216
    %v1218 = vand.u32 %v1217, 4294901760
    %1219 = vmatmul.f32.gmra.mxu0 %v1218
    %v1220 = vpop.f32.mrf.mxu0
    %v1221 = vadd.f32 0.0, %v1220
    %v1222 = vand.u32 %v1076, 4294901760
    %v1223 = vsub.f32 %v1076, %v1222
    %v1224 = vand.u32 %v1223, 4294901760
    %v1225 = vsub.f32 %v1223, %v1224
    %v1226 = vand.u32 %v1225, 4294901760
    %1227 = vmatmul.f32.gmra.mxu0 %v1226
    %v1228 = vpop.f32.mrf.mxu0
    %v1229 = vadd.f32 0.0, %v1228
    %v1230 = vand.u32 %v1077, 4294901760
    %v1231 = vsub.f32 %v1077, %v1230
    %v1232 = vand.u32 %v1231, 4294901760
    %v1233 = vsub.f32 %v1231, %v1232
    %v1234 = vand.u32 %v1233, 4294901760
    %1235 = vmatmul.f32.gmra.mxu0 %v1234
    %v1236 = vpop.f32.mrf.mxu0
    %v1237 = vadd.f32 0.0, %v1236
    %1238 = vdwg.mxu0
    %v1239 = vand.u32 %v27, 4294901760
    %v1240 = vsub.f32 %v27, %v1239
    %v1241 = vand.u32 %v1240, 4294901760
    %v1242 = vsub.f32 %v1240, %v1241
    %v1243 = vand.u32 %v1242, 4294901760
    %1244 = vmatpush.msra.mxu0 %v1243
    %v1245 = vand.u32 %v26, 4294901760
    %v1246 = vsub.f32 %v26, %v1245
    %v1247 = vand.u32 %v1246, 4294901760
    %v1248 = vsub.f32 %v1246, %v1247
    %v1249 = vand.u32 %v1248, 4294901760
    %1250 = vmatpush.msra.mxu0 %v1249
    %v1251 = vand.u32 %v25, 4294901760
    %v1252 = vsub.f32 %v25, %v1251
    %v1253 = vand.u32 %v1252, 4294901760
    %v1254 = vsub.f32 %v1252, %v1253
    %v1255 = vand.u32 %v1254, 4294901760
    %1256 = vmatpush.msra.mxu0 %v1255
    %v1257 = vand.u32 %v24, 4294901760
    %v1258 = vsub.f32 %v24, %v1257
    %v1259 = vand.u32 %v1258, 4294901760
    %v1260 = vsub.f32 %v1258, %v1259
    %v1261 = vand.u32 %v1260, 4294901760
    %1262 = vmatpush.msra.mxu0 %v1261
    %v1263 = vand.u32 %v23, 4294901760
    %v1264 = vsub.f32 %v23, %v1263
    %v1265 = vand.u32 %v1264, 4294901760
    %v1266 = vsub.f32 %v1264, %v1265
    %v1267 = vand.u32 %v1266, 4294901760
    %1268 = vmatpush.msra.mxu0 %v1267
    %v1269 = vand.u32 %v22, 4294901760
    %v1270 = vsub.f32 %v22, %v1269
    %v1271 = vand.u32 %v1270, 4294901760
    %v1272 = vsub.f32 %v1270, %v1271
    %v1273 = vand.u32 %v1272, 4294901760
    %1274 = vmatpush.msra.mxu0 %v1273
    %v1275 = vand.u32 %v21, 4294901760
    %v1276 = vsub.f32 %v21, %v1275
    %v1277 = vand.u32 %v1276, 4294901760
    %v1278 = vsub.f32 %v1276, %v1277
    %v1279 = vand.u32 %v1278, 4294901760
    %1280 = vmatpush.msra.mxu0 %v1279
    %v1281 = vand.u32 %v20, 4294901760
    %v1282 = vsub.f32 %v20, %v1281
    %v1283 = vand.u32 %v1282, 4294901760
    %v1284 = vsub.f32 %v1282, %v1283
    %v1285 = vand.u32 %v1284, 4294901760
    %1286 = vmatpush.msra.mxu0 %v1285
    %v1287 = vand.u32 %v19, 4294901760
    %v1288 = vsub.f32 %v19, %v1287
    %v1289 = vand.u32 %v1288, 4294901760
    %v1290 = vsub.f32 %v1288, %v1289
    %v1291 = vand.u32 %v1290, 4294901760
    %1292 = vmatpush.msra.mxu0 %v1291
    %v1293 = vand.u32 %v18, 4294901760
    %v1294 = vsub.f32 %v18, %v1293
    %v1295 = vand.u32 %v1294, 4294901760
    %v1296 = vsub.f32 %v1294, %v1295
    %v1297 = vand.u32 %v1296, 4294901760
    %1298 = vmatpush.msra.mxu0 %v1297
    %v1299 = vand.u32 %v17, 4294901760
    %v1300 = vsub.f32 %v17, %v1299
    %v1301 = vand.u32 %v1300, 4294901760
    %v1302 = vsub.f32 %v1300, %v1301
    %v1303 = vand.u32 %v1302, 4294901760
    %1304 = vmatpush.msra.mxu0 %v1303
    %v1305 = vand.u32 %v16, 4294901760
    %v1306 = vsub.f32 %v16, %v1305
    %v1307 = vand.u32 %v1306, 4294901760
    %v1308 = vsub.f32 %v1306, %v1307
    %v1309 = vand.u32 %v1308, 4294901760
    %1310 = vmatpush.msra.mxu0 %v1309
    %v1311 = vand.u32 %v15, 4294901760
    %v1312 = vsub.f32 %v15, %v1311
    %v1313 = vand.u32 %v1312, 4294901760
    %v1314 = vsub.f32 %v1312, %v1313
    %v1315 = vand.u32 %v1314, 4294901760
    %1316 = vmatpush.msra.mxu0 %v1315
    %v1317 = vand.u32 %v14, 4294901760
    %v1318 = vsub.f32 %v14, %v1317
    %v1319 = vand.u32 %v1318, 4294901760
    %v1320 = vsub.f32 %v1318, %v1319
    %v1321 = vand.u32 %v1320, 4294901760
    %1322 = vmatpush.msra.mxu0 %v1321
    %v1323 = vand.u32 %v13, 4294901760
    %v1324 = vsub.f32 %v13, %v1323
    %v1325 = vand.u32 %v1324, 4294901760
    %v1326 = vsub.f32 %v1324, %v1325
    %v1327 = vand.u32 %v1326, 4294901760
    %1328 = vmatpush.msra.mxu0 %v1327
    %v1329 = vand.u32 %v12, 4294901760
    %v1330 = vsub.f32 %v12, %v1329
    %v1331 = vand.u32 %v1330, 4294901760
    %v1332 = vsub.f32 %v1330, %v1331
    %v1333 = vand.u32 %v1332, 4294901760
    %1334 = vmatpush.msra.mxu0 %v1333
    %v1335 = vand.u32 %v1062, 4294901760
    %1336 = vmatmul.f32.gmra.mxu0 %v1335
    %v1337 = vpop.f32.mrf.mxu0
    %v1338 = vadd.f32 %v1117, %v1337
    %v1339 = vand.u32 %v1063, 4294901760
    %1340 = vmatmul.f32.gmra.mxu0 %v1339
    %v1341 = vpop.f32.mrf.mxu0
    %v1342 = vadd.f32 %v1125, %v1341
    %v1343 = vand.u32 %v1064, 4294901760
    %1344 = vmatmul.f32.gmra.mxu0 %v1343
    %v1345 = vpop.f32.mrf.mxu0
    %v1346 = vadd.f32 %v1133, %v1345
    %v1347 = vand.u32 %v1065, 4294901760
    %1348 = vmatmul.f32.gmra.mxu0 %v1347
    %v1349 = vpop.f32.mrf.mxu0
    %v1350 = vadd.f32 %v1141, %v1349
    %v1351 = vand.u32 %v1066, 4294901760
    %1352 = vmatmul.f32.gmra.mxu0 %v1351
    %v1353 = vpop.f32.mrf.mxu0
    %v1354 = vadd.f32 %v1149, %v1353
    %v1355 = vand.u32 %v1067, 4294901760
    %1356 = vmatmul.f32.gmra.mxu0 %v1355
    %v1357 = vpop.f32.mrf.mxu0
    %v1358 = vadd.f32 %v1157, %v1357
    %v1359 = vand.u32 %v1068, 4294901760
    %1360 = vmatmul.f32.gmra.mxu0 %v1359
    %v1361 = vpop.f32.mrf.mxu0
    %v1362 = vadd.f32 %v1165, %v1361
    %v1363 = vand.u32 %v1069, 4294901760
    %1364 = vmatmul.f32.gmra.mxu0 %v1363
    %v1365 = vpop.f32.mrf.mxu0
    %v1366 = vadd.f32 %v1173, %v1365
    %v1367 = vand.u32 %v1070, 4294901760
    %1368 = vmatmul.f32.gmra.mxu0 %v1367
    %v1369 = vpop.f32.mrf.mxu0
    %v1370 = vadd.f32 %v1181, %v1369
    %v1371 = vand.u32 %v1071, 4294901760
    %1372 = vmatmul.f32.gmra.mxu0 %v1371
    %v1373 = vpop.f32.mrf.mxu0
    %v1374 = vadd.f32 %v1189, %v1373
    %v1375 = vand.u32 %v1072, 4294901760
    %1376 = vmatmul.f32.gmra.mxu0 %v1375
    %v1377 = vpop.f32.mrf.mxu0
    %v1378 = vadd.f32 %v1197, %v1377
    %v1379 = vand.u32 %v1073, 4294901760
    %1380 = vmatmul.f32.gmra.mxu0 %v1379
    %v1381 = vpop.f32.mrf.mxu0
    %v1382 = vadd.f32 %v1205, %v1381
    %v1383 = vand.u32 %v1074, 4294901760
    %1384 = vmatmul.f32.gmra.mxu0 %v1383
    %v1385 = vpop.f32.mrf.mxu0
    %v1386 = vadd.f32 %v1213, %v1385
    %v1387 = vand.u32 %v1075, 4294901760
    %1388 = vmatmul.f32.gmra.mxu0 %v1387
    %v1389 = vpop.f32.mrf.mxu0
    %v1390 = vadd.f32 %v1221, %v1389
    %v1391 = vand.u32 %v1076, 4294901760
    %1392 = vmatmul.f32.gmra.mxu0 %v1391
    %v1393 = vpop.f32.mrf.mxu0
    %v1394 = vadd.f32 %v1229, %v1393
    %v1395 = vand.u32 %v1077, 4294901760
    %1396 = vmatmul.f32.gmra.mxu0 %v1395
    %v1397 = vpop.f32.mrf.mxu0
    %v1398 = vadd.f32 %v1237, %v1397
    %1399 = vdwg.mxu0
    %v1400 = vand.u32 %v27, 4294901760
    %v1401 = vsub.f32 %v27, %v1400
    %1402 = vmatpush.msra.mxu0 %v1401
    %v1403 = vand.u32 %v26, 4294901760
    %v1404 = vsub.f32 %v26, %v1403
    %1405 = vmatpush.msra.mxu0 %v1404
    %v1406 = vand.u32 %v25, 4294901760
    %v1407 = vsub.f32 %v25, %v1406
    %1408 = vmatpush.msra.mxu0 %v1407
    %v1409 = vand.u32 %v24, 4294901760
    %v1410 = vsub.f32 %v24, %v1409
    %1411 = vmatpush.msra.mxu0 %v1410
    %v1412 = vand.u32 %v23, 4294901760
    %v1413 = vsub.f32 %v23, %v1412
    %1414 = vmatpush.msra.mxu0 %v1413
    %v1415 = vand.u32 %v22, 4294901760
    %v1416 = vsub.f32 %v22, %v1415
    %1417 = vmatpush.msra.mxu0 %v1416
    %v1418 = vand.u32 %v21, 4294901760
    %v1419 = vsub.f32 %v21, %v1418
    %1420 = vmatpush.msra.mxu0 %v1419
    %v1421 = vand.u32 %v20, 4294901760
    %v1422 = vsub.f32 %v20, %v1421
    %1423 = vmatpush.msra.mxu0 %v1422
    %v1424 = vand.u32 %v19, 4294901760
    %v1425 = vsub.f32 %v19, %v1424
    %1426 = vmatpush.msra.mxu0 %v1425
    %v1427 = vand.u32 %v18, 4294901760
    %v1428 = vsub.f32 %v18, %v1427
    %1429 = vmatpush.msra.mxu0 %v1428
    %v1430 = vand.u32 %v17, 4294901760
    %v1431 = vsub.f32 %v17, %v1430
    %1432 = vmatpush.msra.mxu0 %v1431
    %v1433 = vand.u32 %v16, 4294901760
    %v1434 = vsub.f32 %v16, %v1433
    %1435 = vmatpush.msra.mxu0 %v1434
    %v1436 = vand.u32 %v15, 4294901760
    %v1437 = vsub.f32 %v15, %v1436
    %1438 = vmatpush.msra.mxu0 %v1437
    %v1439 = vand.u32 %v14, 4294901760
    %v1440 = vsub.f32 %v14, %v1439
    %1441 = vmatpush.msra.mxu0 %v1440
    %v1442 = vand.u32 %v13, 4294901760
    %v1443 = vsub.f32 %v13, %v1442
    %1444 = vmatpush.msra.mxu0 %v1443
    %v1445 = vand.u32 %v12, 4294901760
    %v1446 = vsub.f32 %v12, %v1445
    %1447 = vmatpush.msra.mxu0 %v1446
    %v1448 = vand.u32 %v1062, 4294901760
    %v1449 = vsub.f32 %v1062, %v1448
    %1450 = vmatmul.f32.gmra.mxu0 %v1449
    %v1451 = vpop.f32.mrf.mxu0
    %v1452 = vadd.f32 %v1338, %v1451
    %v1453 = vand.u32 %v1063, 4294901760
    %v1454 = vsub.f32 %v1063, %v1453
    %1455 = vmatmul.f32.gmra.mxu0 %v1454
    %v1456 = vpop.f32.mrf.mxu0
    %v1457 = vadd.f32 %v1342, %v1456
    %v1458 = vand.u32 %v1064, 4294901760
    %v1459 = vsub.f32 %v1064, %v1458
    %1460 = vmatmul.f32.gmra.mxu0 %v1459
    %v1461 = vpop.f32.mrf.mxu0
    %v1462 = vadd.f32 %v1346, %v1461
    %v1463 = vand.u32 %v1065, 4294901760
    %v1464 = vsub.f32 %v1065, %v1463
    %1465 = vmatmul.f32.gmra.mxu0 %v1464
    %v1466 = vpop.f32.mrf.mxu0
    %v1467 = vadd.f32 %v1350, %v1466
    %v1468 = vand.u32 %v1066, 4294901760
    %v1469 = vsub.f32 %v1066, %v1468
    %1470 = vmatmul.f32.gmra.mxu0 %v1469
    %v1471 = vpop.f32.mrf.mxu0
    %v1472 = vadd.f32 %v1354, %v1471
    %v1473 = vand.u32 %v1067, 4294901760
    %v1474 = vsub.f32 %v1067, %v1473
    %1475 = vmatmul.f32.gmra.mxu0 %v1474
    %v1476 = vpop.f32.mrf.mxu0
    %v1477 = vadd.f32 %v1358, %v1476
    %v1478 = vand.u32 %v1068, 4294901760
    %v1479 = vsub.f32 %v1068, %v1478
    %1480 = vmatmul.f32.gmra.mxu0 %v1479
    %v1481 = vpop.f32.mrf.mxu0
    %v1482 = vadd.f32 %v1362, %v1481
    %v1483 = vand.u32 %v1069, 4294901760
    %v1484 = vsub.f32 %v1069, %v1483
    %1485 = vmatmul.f32.gmra.mxu0 %v1484
    %v1486 = vpop.f32.mrf.mxu0
    %v1487 = vadd.f32 %v1366, %v1486
    %v1488 = vand.u32 %v1070, 4294901760
    %v1489 = vsub.f32 %v1070, %v1488
    %1490 = vmatmul.f32.gmra.mxu0 %v1489
    %v1491 = vpop.f32.mrf.mxu0
    %v1492 = vadd.f32 %v1370, %v1491
    %v1493 = vand.u32 %v1071, 4294901760
    %v1494 = vsub.f32 %v1071, %v1493
    %1495 = vmatmul.f32.gmra.mxu0 %v1494
    %v1496 = vpop.f32.mrf.mxu0
    %v1497 = vadd.f32 %v1374, %v1496
    %v1498 = vand.u32 %v1072, 4294901760
    %v1499 = vsub.f32 %v1072, %v1498
    %1500 = vmatmul.f32.gmra.mxu0 %v1499
    %v1501 = vpop.f32.mrf.mxu0
    %v1502 = vadd.f32 %v1378, %v1501
    %v1503 = vand.u32 %v1073, 4294901760
    %v1504 = vsub.f32 %v1073, %v1503
    %1505 = vmatmul.f32.gmra.mxu0 %v1504
    %v1506 = vpop.f32.mrf.mxu0
    %v1507 = vadd.f32 %v1382, %v1506
    %v1508 = vand.u32 %v1074, 4294901760
    %v1509 = vsub.f32 %v1074, %v1508
    %1510 = vmatmul.f32.gmra.mxu0 %v1509
    %v1511 = vpop.f32.mrf.mxu0
    %v1512 = vadd.f32 %v1386, %v1511
    %v1513 = vand.u32 %v1075, 4294901760
    %v1514 = vsub.f32 %v1075, %v1513
    %1515 = vmatmul.f32.gmra.mxu0 %v1514
    %v1516 = vpop.f32.mrf.mxu0
    %v1517 = vadd.f32 %v1390, %v1516
    %v1518 = vand.u32 %v1076, 4294901760
    %v1519 = vsub.f32 %v1076, %v1518
    %1520 = vmatmul.f32.gmra.mxu0 %v1519
    %v1521 = vpop.f32.mrf.mxu0
    %v1522 = vadd.f32 %v1394, %v1521
    %v1523 = vand.u32 %v1077, 4294901760
    %v1524 = vsub.f32 %v1077, %v1523
    %1525 = vmatmul.f32.gmra.mxu0 %v1524
    %v1526 = vpop.f32.mrf.mxu0
    %v1527 = vadd.f32 %v1398, %v1526
    %1528 = vdwg.mxu0
    %v1529 = vand.u32 %v27, 4294901760
    %1530 = vmatpush.msra.mxu0 %v1529
    %v1531 = vand.u32 %v26, 4294901760
    %1532 = vmatpush.msra.mxu0 %v1531
    %v1533 = vand.u32 %v25, 4294901760
    %1534 = vmatpush.msra.mxu0 %v1533
    %v1535 = vand.u32 %v24, 4294901760
    %1536 = vmatpush.msra.mxu0 %v1535
    %v1537 = vand.u32 %v23, 4294901760
    %1538 = vmatpush.msra.mxu0 %v1537
    %v1539 = vand.u32 %v22, 4294901760
    %1540 = vmatpush.msra.mxu0 %v1539
    %v1541 = vand.u32 %v21, 4294901760
    %1542 = vmatpush.msra.mxu0 %v1541
    %v1543 = vand.u32 %v20, 4294901760
    %1544 = vmatpush.msra.mxu0 %v1543
    %v1545 = vand.u32 %v19, 4294901760
    %1546 = vmatpush.msra.mxu0 %v1545
    %v1547 = vand.u32 %v18, 4294901760
    %1548 = vmatpush.msra.mxu0 %v1547
    %v1549 = vand.u32 %v17, 4294901760
    %1550 = vmatpush.msra.mxu0 %v1549
    %v1551 = vand.u32 %v16, 4294901760
    %1552 = vmatpush.msra.mxu0 %v1551
    %v1553 = vand.u32 %v15, 4294901760
    %1554 = vmatpush.msra.mxu0 %v1553
    %v1555 = vand.u32 %v14, 4294901760
    %1556 = vmatpush.msra.mxu0 %v1555
    %v1557 = vand.u32 %v13, 4294901760
    %1558 = vmatpush.msra.mxu0 %v1557
    %v1559 = vand.u32 %v12, 4294901760
    %1560 = vmatpush.msra.mxu0 %v1559
    %v1561 = vand.u32 %v1062, 4294901760
    %v1562 = vsub.f32 %v1062, %v1561
    %v1563 = vand.u32 %v1562, 4294901760
    %1564 = vmatmul.f32.gmra.mxu0 %v1563
    %v1565 = vpop.f32.mrf.mxu0
    %v1566 = vadd.f32 %v1452, %v1565
    %v1567 = vand.u32 %v1063, 4294901760
    %v1568 = vsub.f32 %v1063, %v1567
    %v1569 = vand.u32 %v1568, 4294901760
    %1570 = vmatmul.f32.gmra.mxu0 %v1569
    %v1571 = vpop.f32.mrf.mxu0
    %v1572 = vadd.f32 %v1457, %v1571
    %v1573 = vand.u32 %v1064, 4294901760
    %v1574 = vsub.f32 %v1064, %v1573
    %v1575 = vand.u32 %v1574, 4294901760
    %1576 = vmatmul.f32.gmra.mxu0 %v1575
    %v1577 = vpop.f32.mrf.mxu0
    %v1578 = vadd.f32 %v1462, %v1577
    %v1579 = vand.u32 %v1065, 4294901760
    %v1580 = vsub.f32 %v1065, %v1579
    %v1581 = vand.u32 %v1580, 4294901760
    %1582 = vmatmul.f32.gmra.mxu0 %v1581
    %v1583 = vpop.f32.mrf.mxu0
    %v1584 = vadd.f32 %v1467, %v1583
    %v1585 = vand.u32 %v1066, 4294901760
    %v1586 = vsub.f32 %v1066, %v1585
    %v1587 = vand.u32 %v1586, 4294901760
    %1588 = vmatmul.f32.gmra.mxu0 %v1587
    %v1589 = vpop.f32.mrf.mxu0
    %v1590 = vadd.f32 %v1472, %v1589
    %v1591 = vand.u32 %v1067, 4294901760
    %v1592 = vsub.f32 %v1067, %v1591
    %v1593 = vand.u32 %v1592, 4294901760
    %1594 = vmatmul.f32.gmra.mxu0 %v1593
    %v1595 = vpop.f32.mrf.mxu0
    %v1596 = vadd.f32 %v1477, %v1595
    %v1597 = vand.u32 %v1068, 4294901760
    %v1598 = vsub.f32 %v1068, %v1597
    %v1599 = vand.u32 %v1598, 4294901760
    %1600 = vmatmul.f32.gmra.mxu0 %v1599
    %v1601 = vpop.f32.mrf.mxu0
    %v1602 = vadd.f32 %v1482, %v1601
    %v1603 = vand.u32 %v1069, 4294901760
    %v1604 = vsub.f32 %v1069, %v1603
    %v1605 = vand.u32 %v1604, 4294901760
    %1606 = vmatmul.f32.gmra.mxu0 %v1605
    %v1607 = vpop.f32.mrf.mxu0
    %v1608 = vadd.f32 %v1487, %v1607
    %v1609 = vand.u32 %v1070, 4294901760
    %v1610 = vsub.f32 %v1070, %v1609
    %v1611 = vand.u32 %v1610, 4294901760
    %1612 = vmatmul.f32.gmra.mxu0 %v1611
    %v1613 = vpop.f32.mrf.mxu0
    %v1614 = vadd.f32 %v1492, %v1613
    %v1615 = vand.u32 %v1071, 4294901760
    %v1616 = vsub.f32 %v1071, %v1615
    %v1617 = vand.u32 %v1616, 4294901760
    %1618 = vmatmul.f32.gmra.mxu0 %v1617
    %v1619 = vpop.f32.mrf.mxu0
    %v1620 = vadd.f32 %v1497, %v1619
    %v1621 = vand.u32 %v1072, 4294901760
    %v1622 = vsub.f32 %v1072, %v1621
    %v1623 = vand.u32 %v1622, 4294901760
    %1624 = vmatmul.f32.gmra.mxu0 %v1623
    %v1625 = vpop.f32.mrf.mxu0
    %v1626 = vadd.f32 %v1502, %v1625
    %v1627 = vand.u32 %v1073, 4294901760
    %v1628 = vsub.f32 %v1073, %v1627
    %v1629 = vand.u32 %v1628, 4294901760
    %1630 = vmatmul.f32.gmra.mxu0 %v1629
    %v1631 = vpop.f32.mrf.mxu0
    %v1632 = vadd.f32 %v1507, %v1631
    %v1633 = vand.u32 %v1074, 4294901760
    %v1634 = vsub.f32 %v1074, %v1633
    %v1635 = vand.u32 %v1634, 4294901760
    %1636 = vmatmul.f32.gmra.mxu0 %v1635
    %v1637 = vpop.f32.mrf.mxu0
    %v1638 = vadd.f32 %v1512, %v1637
    %v1639 = vand.u32 %v1075, 4294901760
    %v1640 = vsub.f32 %v1075, %v1639
    %v1641 = vand.u32 %v1640, 4294901760
    %1642 = vmatmul.f32.gmra.mxu0 %v1641
    %v1643 = vpop.f32.mrf.mxu0
    %v1644 = vadd.f32 %v1517, %v1643
    %v1645 = vand.u32 %v1076, 4294901760
    %v1646 = vsub.f32 %v1076, %v1645
    %v1647 = vand.u32 %v1646, 4294901760
    %1648 = vmatmul.f32.gmra.mxu0 %v1647
    %v1649 = vpop.f32.mrf.mxu0
    %v1650 = vadd.f32 %v1522, %v1649
    %v1651 = vand.u32 %v1077, 4294901760
    %v1652 = vsub.f32 %v1077, %v1651
    %v1653 = vand.u32 %v1652, 4294901760
    %1654 = vmatmul.f32.gmra.mxu0 %v1653
    %v1655 = vpop.f32.mrf.mxu0
    %v1656 = vadd.f32 %v1527, %v1655
    %1657 = vdwg.mxu0
    %v1658 = vand.u32 %v27, 4294901760
    %v1659 = vsub.f32 %v27, %v1658
    %v1660 = vand.u32 %v1659, 4294901760
    %1661 = vmatpush.msra.mxu0 %v1660
    %v1662 = vand.u32 %v26, 4294901760
    %v1663 = vsub.f32 %v26, %v1662
    %v1664 = vand.u32 %v1663, 4294901760
    %1665 = vmatpush.msra.mxu0 %v1664
    %v1666 = vand.u32 %v25, 4294901760
    %v1667 = vsub.f32 %v25, %v1666
    %v1668 = vand.u32 %v1667, 4294901760
    %1669 = vmatpush.msra.mxu0 %v1668
    %v1670 = vand.u32 %v24, 4294901760
    %v1671 = vsub.f32 %v24, %v1670
    %v1672 = vand.u32 %v1671, 4294901760
    %1673 = vmatpush.msra.mxu0 %v1672
    %v1674 = vand.u32 %v23, 4294901760
    %v1675 = vsub.f32 %v23, %v1674
    %v1676 = vand.u32 %v1675, 4294901760
    %1677 = vmatpush.msra.mxu0 %v1676
    %v1678 = vand.u32 %v22, 4294901760
    %v1679 = vsub.f32 %v22, %v1678
    %v1680 = vand.u32 %v1679, 4294901760
    %1681 = vmatpush.msra.mxu0 %v1680
    %v1682 = vand.u32 %v21, 4294901760
    %v1683 = vsub.f32 %v21, %v1682
    %v1684 = vand.u32 %v1683, 4294901760
    %1685 = vmatpush.msra.mxu0 %v1684
    %v1686 = vand.u32 %v20, 4294901760
    %v1687 = vsub.f32 %v20, %v1686
    %v1688 = vand.u32 %v1687, 4294901760
    %1689 = vmatpush.msra.mxu0 %v1688
    %v1690 = vand.u32 %v19, 4294901760
    %v1691 = vsub.f32 %v19, %v1690
    %v1692 = vand.u32 %v1691, 4294901760
    %1693 = vmatpush.msra.mxu0 %v1692
    %v1694 = vand.u32 %v18, 4294901760
    %v1695 = vsub.f32 %v18, %v1694
    %v1696 = vand.u32 %v1695, 4294901760
    %1697 = vmatpush.msra.mxu0 %v1696
    %v1698 = vand.u32 %v17, 4294901760
    %v1699 = vsub.f32 %v17, %v1698
    %v1700 = vand.u32 %v1699, 4294901760
    %1701 = vmatpush.msra.mxu0 %v1700
    %v1702 = vand.u32 %v16, 4294901760
    %v1703 = vsub.f32 %v16, %v1702
    %v1704 = vand.u32 %v1703, 4294901760
    %1705 = vmatpush.msra.mxu0 %v1704
    %v1706 = vand.u32 %v15, 4294901760
    %v1707 = vsub.f32 %v15, %v1706
    %v1708 = vand.u32 %v1707, 4294901760
    %1709 = vmatpush.msra.mxu0 %v1708
    %v1710 = vand.u32 %v14, 4294901760
    %v1711 = vsub.f32 %v14, %v1710
    %v1712 = vand.u32 %v1711, 4294901760
    %1713 = vmatpush.msra.mxu0 %v1712
    %v1714 = vand.u32 %v13, 4294901760
    %v1715 = vsub.f32 %v13, %v1714
    %v1716 = vand.u32 %v1715, 4294901760
    %1717 = vmatpush.msra.mxu0 %v1716
    %v1718 = vand.u32 %v12, 4294901760
    %v1719 = vsub.f32 %v12, %v1718
    %v1720 = vand.u32 %v1719, 4294901760
    %1721 = vmatpush.msra.mxu0 %v1720
    %v1722 = vand.u32 %v1062, 4294901760
    %1723 = vmatmul.f32.gmra.mxu0 %v1722
    %v1724 = vpop.f32.mrf.mxu0
    %v1725 = vadd.f32 %v1566, %v1724
    %v1726 = vand.u32 %v1063, 4294901760
    %1727 = vmatmul.f32.gmra.mxu0 %v1726
    %v1728 = vpop.f32.mrf.mxu0
    %v1729 = vadd.f32 %v1572, %v1728
    %v1730 = vand.u32 %v1064, 4294901760
    %1731 = vmatmul.f32.gmra.mxu0 %v1730
    %v1732 = vpop.f32.mrf.mxu0
    %v1733 = vadd.f32 %v1578, %v1732
    %v1734 = vand.u32 %v1065, 4294901760
    %1735 = vmatmul.f32.gmra.mxu0 %v1734
    %v1736 = vpop.f32.mrf.mxu0
    %v1737 = vadd.f32 %v1584, %v1736
    %v1738 = vand.u32 %v1066, 4294901760
    %1739 = vmatmul.f32.gmra.mxu0 %v1738
    %v1740 = vpop.f32.mrf.mxu0
    %v1741 = vadd.f32 %v1590, %v1740
    %v1742 = vand.u32 %v1067, 4294901760
    %1743 = vmatmul.f32.gmra.mxu0 %v1742
    %v1744 = vpop.f32.mrf.mxu0
    %v1745 = vadd.f32 %v1596, %v1744
    %v1746 = vand.u32 %v1068, 4294901760
    %1747 = vmatmul.f32.gmra.mxu0 %v1746
    %v1748 = vpop.f32.mrf.mxu0
    %v1749 = vadd.f32 %v1602, %v1748
    %v1750 = vand.u32 %v1069, 4294901760
    %1751 = vmatmul.f32.gmra.mxu0 %v1750
    %v1752 = vpop.f32.mrf.mxu0
    %v1753 = vadd.f32 %v1608, %v1752
    %v1754 = vand.u32 %v1070, 4294901760
    %1755 = vmatmul.f32.gmra.mxu0 %v1754
    %v1756 = vpop.f32.mrf.mxu0
    %v1757 = vadd.f32 %v1614, %v1756
    %v1758 = vand.u32 %v1071, 4294901760
    %1759 = vmatmul.f32.gmra.mxu0 %v1758
    %v1760 = vpop.f32.mrf.mxu0
    %v1761 = vadd.f32 %v1620, %v1760
    %v1762 = vand.u32 %v1072, 4294901760
    %1763 = vmatmul.f32.gmra.mxu0 %v1762
    %v1764 = vpop.f32.mrf.mxu0
    %v1765 = vadd.f32 %v1626, %v1764
    %v1766 = vand.u32 %v1073, 4294901760
    %1767 = vmatmul.f32.gmra.mxu0 %v1766
    %v1768 = vpop.f32.mrf.mxu0
    %v1769 = vadd.f32 %v1632, %v1768
    %v1770 = vand.u32 %v1074, 4294901760
    %1771 = vmatmul.f32.gmra.mxu0 %v1770
    %v1772 = vpop.f32.mrf.mxu0
    %v1773 = vadd.f32 %v1638, %v1772
    %v1774 = vand.u32 %v1075, 4294901760
    %1775 = vmatmul.f32.gmra.mxu0 %v1774
    %v1776 = vpop.f32.mrf.mxu0
    %v1777 = vadd.f32 %v1644, %v1776
    %v1778 = vand.u32 %v1076, 4294901760
    %1779 = vmatmul.f32.gmra.mxu0 %v1778
    %v1780 = vpop.f32.mrf.mxu0
    %v1781 = vadd.f32 %v1650, %v1780
    %v1782 = vand.u32 %v1077, 4294901760
    %1783 = vmatmul.f32.gmra.mxu0 %v1782
    %v1784 = vpop.f32.mrf.mxu0
    %v1785 = vadd.f32 %v1656, %v1784
    %1786 = vdwg.mxu0
    %v1787 = vand.u32 %v27, 4294901760
    %1788 = vmatpush.msra.mxu0 %v1787
    %v1789 = vand.u32 %v26, 4294901760
    %1790 = vmatpush.msra.mxu0 %v1789
    %v1791 = vand.u32 %v25, 4294901760
    %1792 = vmatpush.msra.mxu0 %v1791
    %v1793 = vand.u32 %v24, 4294901760
    %1794 = vmatpush.msra.mxu0 %v1793
    %v1795 = vand.u32 %v23, 4294901760
    %1796 = vmatpush.msra.mxu0 %v1795
    %v1797 = vand.u32 %v22, 4294901760
    %1798 = vmatpush.msra.mxu0 %v1797
    %v1799 = vand.u32 %v21, 4294901760
    %1800 = vmatpush.msra.mxu0 %v1799
    %v1801 = vand.u32 %v20, 4294901760
    %1802 = vmatpush.msra.mxu0 %v1801
    %v1803 = vand.u32 %v19, 4294901760
    %1804 = vmatpush.msra.mxu0 %v1803
    %v1805 = vand.u32 %v18, 4294901760
    %1806 = vmatpush.msra.mxu0 %v1805
    %v1807 = vand.u32 %v17, 4294901760
    %1808 = vmatpush.msra.mxu0 %v1807
    %v1809 = vand.u32 %v16, 4294901760
    %1810 = vmatpush.msra.mxu0 %v1809
    %v1811 = vand.u32 %v15, 4294901760
    %1812 = vmatpush.msra.mxu0 %v1811
    %v1813 = vand.u32 %v14, 4294901760
    %1814 = vmatpush.msra.mxu0 %v1813
    %v1815 = vand.u32 %v13, 4294901760
    %1816 = vmatpush.msra.mxu0 %v1815
    %v1817 = vand.u32 %v12, 4294901760
    %1818 = vmatpush.msra.mxu0 %v1817
    %v1819 = vand.u32 %v1062, 4294901760
    %1820 = vmatmul.f32.gmra.mxu0 %v1819
    %v1821 = vpop.f32.mrf.mxu0
    %v1822 = vadd.f32 %v1725, %v1821
    %v1823 = vand.u32 %v1063, 4294901760
    %1824 = vmatmul.f32.gmra.mxu0 %v1823
    %v1825 = vpop.f32.mrf.mxu0
    %v1826 = vadd.f32 %v1729, %v1825
    %v1827 = vand.u32 %v1064, 4294901760
    %1828 = vmatmul.f32.gmra.mxu0 %v1827
    %v1829 = vpop.f32.mrf.mxu0
    %v1830 = vadd.f32 %v1733, %v1829
    %v1831 = vand.u32 %v1065, 4294901760
    %1832 = vmatmul.f32.gmra.mxu0 %v1831
    %v1833 = vpop.f32.mrf.mxu0
    %v1834 = vadd.f32 %v1737, %v1833
    %v1835 = vand.u32 %v1066, 4294901760
    %1836 = vmatmul.f32.gmra.mxu0 %v1835
    %v1837 = vpop.f32.mrf.mxu0
    %v1838 = vadd.f32 %v1741, %v1837
    %v1839 = vand.u32 %v1067, 4294901760
    %1840 = vmatmul.f32.gmra.mxu0 %v1839
    %v1841 = vpop.f32.mrf.mxu0
    %v1842 = vadd.f32 %v1745, %v1841
    %v1843 = vand.u32 %v1068, 4294901760
    %1844 = vmatmul.f32.gmra.mxu0 %v1843
    %v1845 = vpop.f32.mrf.mxu0
    %v1846 = vadd.f32 %v1749, %v1845
    %v1847 = vand.u32 %v1069, 4294901760
    %1848 = vmatmul.f32.gmra.mxu0 %v1847
    %v1849 = vpop.f32.mrf.mxu0
    %v1850 = vadd.f32 %v1753, %v1849
    %v1851 = vand.u32 %v1070, 4294901760
    %1852 = vmatmul.f32.gmra.mxu0 %v1851
    %v1853 = vpop.f32.mrf.mxu0
    %v1854 = vadd.f32 %v1757, %v1853
    %v1855 = vand.u32 %v1071, 4294901760
    %1856 = vmatmul.f32.gmra.mxu0 %v1855
    %v1857 = vpop.f32.mrf.mxu0
    %v1858 = vadd.f32 %v1761, %v1857
    %v1859 = vand.u32 %v1072, 4294901760
    %1860 = vmatmul.f32.gmra.mxu0 %v1859
    %v1861 = vpop.f32.mrf.mxu0
    %v1862 = vadd.f32 %v1765, %v1861
    %v1863 = vand.u32 %v1073, 4294901760
    %1864 = vmatmul.f32.gmra.mxu0 %v1863
    %v1865 = vpop.f32.mrf.mxu0
    %v1866 = vadd.f32 %v1769, %v1865
    %v1867 = vand.u32 %v1074, 4294901760
    %1868 = vmatmul.f32.gmra.mxu0 %v1867
    %v1869 = vpop.f32.mrf.mxu0
    %v1870 = vadd.f32 %v1773, %v1869
    %v1871 = vand.u32 %v1075, 4294901760
    %1872 = vmatmul.f32.gmra.mxu0 %v1871
    %v1873 = vpop.f32.mrf.mxu0
    %v1874 = vadd.f32 %v1777, %v1873
    %v1875 = vand.u32 %v1076, 4294901760
    %1876 = vmatmul.f32.gmra.mxu0 %v1875
    %v1877 = vpop.f32.mrf.mxu0
    %v1878 = vadd.f32 %v1781, %v1877
    %v1879 = vand.u32 %v1077, 4294901760
    %1880 = vmatmul.f32.gmra.mxu0 %v1879
    %v1881 = vpop.f32.mrf.mxu0
    %v1882 = vadd.f32 %v1785, %v1881
    %1883 = vdwg.mxu0
    %s1884 = scalar_lea.vmem [#allocation2], 128
    %1885 = vst.msk [vmem:[%s1884] sm:$0xff] %vm948, %v1822
    %1886 = vst.msk [vmem:[%s1884 + $0x8] sm:$0xff] %vm948, %v1826
    %1887 = vst.msk [vmem:[%s1884 + $0x10] sm:$0xff] %vm948, %v1830
    %1888 = vst.msk [vmem:[%s1884 + $0x18] sm:$0xff] %vm948, %v1834
    %1889 = vst.msk [vmem:[%s1884 + $0x20] sm:$0xff] %vm948, %v1838
    %1890 = vst.msk [vmem:[%s1884 + $0x28] sm:$0xff] %vm948, %v1842
    %1891 = vst.msk [vmem:[%s1884 + $0x30] sm:$0xff] %vm948, %v1846
    %1892 = vst.msk [vmem:[%s1884 + $0x38] sm:$0xff] %vm948, %v1850
    %1893 = vst.msk [vmem:[%s1884 + $0x40] sm:$0xff] %vm948, %v1854
    %1894 = vst.msk [vmem:[%s1884 + $0x48] sm:$0xff] %vm948, %v1858
    %1895 = vst.msk [vmem:[%s1884 + $0x50] sm:$0xff] %vm948, %v1862
    %1896 = vst.msk [vmem:[%s1884 + $0x58] sm:$0xff] %vm948, %v1866
    %1897 = vst.msk [vmem:[%s1884 + $0x60] sm:$0xff] %vm948, %v1870
    %1898 = vst.msk [vmem:[%s1884 + $0x68] sm:$0xff] %vm948, %v1874
    %1899 = vst.msk [vmem:[%s1884 + $0x70] sm:$0xff] %vm948, %v1878
    %1900 = vst.msk [vmem:[%s1884 + $0x78] sm:$0xff] %vm948, %v1882
    %s1901 = scalar_lea.vmem %s0, 256
    %v1902 = vld [vmem:[%s1901] sm:$0xff]
    %v1903 = vld [vmem:[%s1901 + $0x8] sm:$0xff]
    %v1904 = vld [vmem:[%s1901 + $0x10] sm:$0xff]
    %v1905 = vld [vmem:[%s1901 + $0x18] sm:$0xff]
    %v1906 = vld [vmem:[%s1901 + $0x20] sm:$0xff]
    %v1907 = vld [vmem:[%s1901 + $0x28] sm:$0xff]
    %v1908 = vld [vmem:[%s1901 + $0x30] sm:$0xff]
    %v1909 = vld [vmem:[%s1901 + $0x38] sm:$0xff]
    %v1910 = vld [vmem:[%s1901 + $0x40] sm:$0xff]
    %v1911 = vld [vmem:[%s1901 + $0x48] sm:$0xff]
    %v1912 = vld [vmem:[%s1901 + $0x50] sm:$0xff]
    %v1913 = vld [vmem:[%s1901 + $0x58] sm:$0xff]
    %v1914 = vld [vmem:[%s1901 + $0x60] sm:$0xff]
    %v1915 = vld [vmem:[%s1901 + $0x68] sm:$0xff]
    %v1916 = vld [vmem:[%s1901 + $0x70] sm:$0xff]
    %v1917 = vld [vmem:[%s1901 + $0x78] sm:$0xff]
    %1918 = vset.pattern.permute.xlu0 0
    %1919 = vperm.xlu0 %1918, %v1902
    %v1920 = vpop.permute.xlu0 %1919
    %1921 = vset.pattern.permute.xlu0 0
    %1922 = vperm.xlu0 %1921, %v1903
    %v1923 = vpop.permute.xlu0 %1922
    %1924 = vset.pattern.permute.xlu0 0
    %1925 = vperm.xlu0 %1924, %v1904
    %v1926 = vpop.permute.xlu0 %1925
    %1927 = vset.pattern.permute.xlu0 0
    %1928 = vperm.xlu0 %1927, %v1905
    %v1929 = vpop.permute.xlu0 %1928
    %1930 = vset.pattern.permute.xlu0 0
    %1931 = vperm.xlu0 %1930, %v1906
    %v1932 = vpop.permute.xlu0 %1931
    %1933 = vset.pattern.permute.xlu0 0
    %1934 = vperm.xlu0 %1933, %v1907
    %v1935 = vpop.permute.xlu0 %1934
    %1936 = vset.pattern.permute.xlu0 0
    %1937 = vperm.xlu0 %1936, %v1908
    %v1938 = vpop.permute.xlu0 %1937
    %1939 = vset.pattern.permute.xlu0 0
    %1940 = vperm.xlu0 %1939, %v1909
    %v1941 = vpop.permute.xlu0 %1940
    %1942 = vset.pattern.permute.xlu0 0
    %1943 = vperm.xlu0 %1942, %v1910
    %v1944 = vpop.permute.xlu0 %1943
    %1945 = vset.pattern.permute.xlu0 0
    %1946 = vperm.xlu0 %1945, %v1911
    %v1947 = vpop.permute.xlu0 %1946
    %1948 = vset.pattern.permute.xlu0 0
    %1949 = vperm.xlu0 %1948, %v1912
    %v1950 = vpop.permute.xlu0 %1949
    %1951 = vset.pattern.permute.xlu0 0
    %1952 = vperm.xlu0 %1951, %v1913
    %v1953 = vpop.permute.xlu0 %1952
    %1954 = vset.pattern.permute.xlu0 0
    %1955 = vperm.xlu0 %1954, %v1914
    %v1956 = vpop.permute.xlu0 %1955
    %1957 = vset.pattern.permute.xlu0 0
    %1958 = vperm.xlu0 %1957, %v1915
    %v1959 = vpop.permute.xlu0 %1958
    %1960 = vset.pattern.permute.xlu0 0
    %1961 = vperm.xlu0 %1960, %v1916
    %v1962 = vpop.permute.xlu0 %1961
    %1963 = vset.pattern.permute.xlu0 0
    %1964 = vperm.xlu0 %1963, %v1917
    %v1965 = vpop.permute.xlu0 %1964
    %vm1966 = vcmp.eq.s32.totalorder %v45, %v1920
    %vm1967 = vcmp.eq.s32.totalorder %v45, %v1923
    %vm1968 = vcmp.eq.s32.totalorder %v45, %v1926
    %vm1969 = vcmp.eq.s32.totalorder %v45, %v1929
    %vm1970 = vcmp.eq.s32.totalorder %v45, %v1932
    %vm1971 = vcmp.eq.s32.totalorder %v45, %v1935
    %vm1972 = vcmp.eq.s32.totalorder %v45, %v1938
    %vm1973 = vcmp.eq.s32.totalorder %v45, %v1941
    %vm1974 = vcmp.eq.s32.totalorder %v45, %v1944
    %vm1975 = vcmp.eq.s32.totalorder %v45, %v1947
    %vm1976 = vcmp.eq.s32.totalorder %v45, %v1950
    %vm1977 = vcmp.eq.s32.totalorder %v45, %v1953
    %vm1978 = vcmp.eq.s32.totalorder %v45, %v1956
    %vm1979 = vcmp.eq.s32.totalorder %v45, %v1959
    %vm1980 = vcmp.eq.s32.totalorder %v45, %v1962
    %vm1981 = vcmp.eq.s32.totalorder %v45, %v1965
    %v1982 = vsel %vm1966, 1, 0
    %v1983 = vsel %vm1967, 1, 0
    %v1984 = vsel %vm1968, 1, 0
    %v1985 = vsel %vm1969, 1, 0
    %v1986 = vsel %vm1970, 1, 0
    %v1987 = vsel %vm1971, 1, 0
    %v1988 = vsel %vm1972, 1, 0
    %v1989 = vsel %vm1973, 1, 0
    %v1990 = vsel %vm1974, 1, 0
    %v1991 = vsel %vm1975, 1, 0
    %v1992 = vsel %vm1976, 1, 0
    %v1993 = vsel %vm1977, 1, 0
    %v1994 = vsel %vm1978, 1, 0
    %v1995 = vsel %vm1979, 1, 0
    %v1996 = vsel %vm1980, 1, 0
    %v1997 = vsel %vm1981, 1, 0
    %v1998 = vcvt.s32.f32 %v1982
    %v1999 = vcvt.s32.f32 %v1983
    %v2000 = vcvt.s32.f32 %v1984
    %v2001 = vcvt.s32.f32 %v1985
    %v2002 = vcvt.s32.f32 %v1986
    %v2003 = vcvt.s32.f32 %v1987
    %v2004 = vcvt.s32.f32 %v1988
    %v2005 = vcvt.s32.f32 %v1989
    %v2006 = vcvt.s32.f32 %v1990
    %v2007 = vcvt.s32.f32 %v1991
    %v2008 = vcvt.s32.f32 %v1992
    %v2009 = vcvt.s32.f32 %v1993
    %v2010 = vcvt.s32.f32 %v1994
    %v2011 = vcvt.s32.f32 %v1995
    %v2012 = vcvt.s32.f32 %v1996
    %v2013 = vcvt.s32.f32 %v1997
    %v2014 = vand.u32 %v27, 4294901760
    %2015 = vmatpush.msra.mxu0 %v2014
    %v2016 = vand.u32 %v26, 4294901760
    %2017 = vmatpush.msra.mxu0 %v2016
    %v2018 = vand.u32 %v25, 4294901760
    %2019 = vmatpush.msra.mxu0 %v2018
    %v2020 = vand.u32 %v24, 4294901760
    %2021 = vmatpush.msra.mxu0 %v2020
    %v2022 = vand.u32 %v23, 4294901760
    %2023 = vmatpush.msra.mxu0 %v2022
    %v2024 = vand.u32 %v22, 4294901760
    %2025 = vmatpush.msra.mxu0 %v2024
    %v2026 = vand.u32 %v21, 4294901760
    %2027 = vmatpush.msra.mxu0 %v2026
    %v2028 = vand.u32 %v20, 4294901760
    %2029 = vmatpush.msra.mxu0 %v2028
    %v2030 = vand.u32 %v19, 4294901760
    %2031 = vmatpush.msra.mxu0 %v2030
    %v2032 = vand.u32 %v18, 4294901760
    %2033 = vmatpush.msra.mxu0 %v2032
    %v2034 = vand.u32 %v17, 4294901760
    %2035 = vmatpush.msra.mxu0 %v2034
    %v2036 = vand.u32 %v16, 4294901760
    %2037 = vmatpush.msra.mxu0 %v2036
    %v2038 = vand.u32 %v15, 4294901760
    %2039 = vmatpush.msra.mxu0 %v2038
    %v2040 = vand.u32 %v14, 4294901760
    %2041 = vmatpush.msra.mxu0 %v2040
    %v2042 = vand.u32 %v13, 4294901760
    %2043 = vmatpush.msra.mxu0 %v2042
    %v2044 = vand.u32 %v12, 4294901760
    %2045 = vmatpush.msra.mxu0 %v2044
    %v2046 = vand.u32 %v1998, 4294901760
    %v2047 = vsub.f32 %v1998, %v2046
    %v2048 = vand.u32 %v2047, 4294901760
    %v2049 = vsub.f32 %v2047, %v2048
    %v2050 = vand.u32 %v2049, 4294901760
    %2051 = vmatmul.f32.gmra.mxu0 %v2050
    %v2052 = vpop.f32.mrf.mxu0
    %v2053 = vadd.f32 0.0, %v2052
    %v2054 = vand.u32 %v1999, 4294901760
    %v2055 = vsub.f32 %v1999, %v2054
    %v2056 = vand.u32 %v2055, 4294901760
    %v2057 = vsub.f32 %v2055, %v2056
    %v2058 = vand.u32 %v2057, 4294901760
    %2059 = vmatmul.f32.gmra.mxu0 %v2058
    %v2060 = vpop.f32.mrf.mxu0
    %v2061 = vadd.f32 0.0, %v2060
    %v2062 = vand.u32 %v2000, 4294901760
    %v2063 = vsub.f32 %v2000, %v2062
    %v2064 = vand.u32 %v2063, 4294901760
    %v2065 = vsub.f32 %v2063, %v2064
    %v2066 = vand.u32 %v2065, 4294901760
    %2067 = vmatmul.f32.gmra.mxu0 %v2066
    %v2068 = vpop.f32.mrf.mxu0
    %v2069 = vadd.f32 0.0, %v2068
    %v2070 = vand.u32 %v2001, 4294901760
    %v2071 = vsub.f32 %v2001, %v2070
    %v2072 = vand.u32 %v2071, 4294901760
    %v2073 = vsub.f32 %v2071, %v2072
    %v2074 = vand.u32 %v2073, 4294901760
    %2075 = vmatmul.f32.gmra.mxu0 %v2074
    %v2076 = vpop.f32.mrf.mxu0
    %v2077 = vadd.f32 0.0, %v2076
    %v2078 = vand.u32 %v2002, 4294901760
    %v2079 = vsub.f32 %v2002, %v2078
    %v2080 = vand.u32 %v2079, 4294901760
    %v2081 = vsub.f32 %v2079, %v2080
    %v2082 = vand.u32 %v2081, 4294901760
    %2083 = vmatmul.f32.gmra.mxu0 %v2082
    %v2084 = vpop.f32.mrf.mxu0
    %v2085 = vadd.f32 0.0, %v2084
    %v2086 = vand.u32 %v2003, 4294901760
    %v2087 = vsub.f32 %v2003, %v2086
    %v2088 = vand.u32 %v2087, 4294901760
    %v2089 = vsub.f32 %v2087, %v2088
    %v2090 = vand.u32 %v2089, 4294901760
    %2091 = vmatmul.f32.gmra.mxu0 %v2090
    %v2092 = vpop.f32.mrf.mxu0
    %v2093 = vadd.f32 0.0, %v2092
    %v2094 = vand.u32 %v2004, 4294901760
    %v2095 = vsub.f32 %v2004, %v2094
    %v2096 = vand.u32 %v2095, 4294901760
    %v2097 = vsub.f32 %v2095, %v2096
    %v2098 = vand.u32 %v2097, 4294901760
    %2099 = vmatmul.f32.gmra.mxu0 %v2098
    %v2100 = vpop.f32.mrf.mxu0
    %v2101 = vadd.f32 0.0, %v2100
    %v2102 = vand.u32 %v2005, 4294901760
    %v2103 = vsub.f32 %v2005, %v2102
    %v2104 = vand.u32 %v2103, 4294901760
    %v2105 = vsub.f32 %v2103, %v2104
    %v2106 = vand.u32 %v2105, 4294901760
    %2107 = vmatmul.f32.gmra.mxu0 %v2106
    %v2108 = vpop.f32.mrf.mxu0
    %v2109 = vadd.f32 0.0, %v2108
    %v2110 = vand.u32 %v2006, 4294901760
    %v2111 = vsub.f32 %v2006, %v2110
    %v2112 = vand.u32 %v2111, 4294901760
    %v2113 = vsub.f32 %v2111, %v2112
    %v2114 = vand.u32 %v2113, 4294901760
    %2115 = vmatmul.f32.gmra.mxu0 %v2114
    %v2116 = vpop.f32.mrf.mxu0
    %v2117 = vadd.f32 0.0, %v2116
    %v2118 = vand.u32 %v2007, 4294901760
    %v2119 = vsub.f32 %v2007, %v2118
    %v2120 = vand.u32 %v2119, 4294901760
    %v2121 = vsub.f32 %v2119, %v2120
    %v2122 = vand.u32 %v2121, 4294901760
    %2123 = vmatmul.f32.gmra.mxu0 %v2122
    %v2124 = vpop.f32.mrf.mxu0
    %v2125 = vadd.f32 0.0, %v2124
    %v2126 = vand.u32 %v2008, 4294901760
    %v2127 = vsub.f32 %v2008, %v2126
    %v2128 = vand.u32 %v2127, 4294901760
    %v2129 = vsub.f32 %v2127, %v2128
    %v2130 = vand.u32 %v2129, 4294901760
    %2131 = vmatmul.f32.gmra.mxu0 %v2130
    %v2132 = vpop.f32.mrf.mxu0
    %v2133 = vadd.f32 0.0, %v2132
    %v2134 = vand.u32 %v2009, 4294901760
    %v2135 = vsub.f32 %v2009, %v2134
    %v2136 = vand.u32 %v2135, 4294901760
    %v2137 = vsub.f32 %v2135, %v2136
    %v2138 = vand.u32 %v2137, 4294901760
    %2139 = vmatmul.f32.gmra.mxu0 %v2138
    %v2140 = vpop.f32.mrf.mxu0
    %v2141 = vadd.f32 0.0, %v2140
    %v2142 = vand.u32 %v2010, 4294901760
    %v2143 = vsub.f32 %v2010, %v2142
    %v2144 = vand.u32 %v2143, 4294901760
    %v2145 = vsub.f32 %v2143, %v2144
    %v2146 = vand.u32 %v2145, 4294901760
    %2147 = vmatmul.f32.gmra.mxu0 %v2146
    %v2148 = vpop.f32.mrf.mxu0
    %v2149 = vadd.f32 0.0, %v2148
    %v2150 = vand.u32 %v2011, 4294901760
    %v2151 = vsub.f32 %v2011, %v2150
    %v2152 = vand.u32 %v2151, 4294901760
    %v2153 = vsub.f32 %v2151, %v2152
    %v2154 = vand.u32 %v2153, 4294901760
    %2155 = vmatmul.f32.gmra.mxu0 %v2154
    %v2156 = vpop.f32.mrf.mxu0
    %v2157 = vadd.f32 0.0, %v2156
    %v2158 = vand.u32 %v2012, 4294901760
    %v2159 = vsub.f32 %v2012, %v2158
    %v2160 = vand.u32 %v2159, 4294901760
    %v2161 = vsub.f32 %v2159, %v2160
    %v2162 = vand.u32 %v2161, 4294901760
    %2163 = vmatmul.f32.gmra.mxu0 %v2162
    %v2164 = vpop.f32.mrf.mxu0
    %v2165 = vadd.f32 0.0, %v2164
    %v2166 = vand.u32 %v2013, 4294901760
    %v2167 = vsub.f32 %v2013, %v2166
    %v2168 = vand.u32 %v2167, 4294901760
    %v2169 = vsub.f32 %v2167, %v2168
    %v2170 = vand.u32 %v2169, 4294901760
    %2171 = vmatmul.f32.gmra.mxu0 %v2170
    %v2172 = vpop.f32.mrf.mxu0
    %v2173 = vadd.f32 0.0, %v2172
    %2174 = vdwg.mxu0
    %v2175 = vand.u32 %v27, 4294901760
    %v2176 = vsub.f32 %v27, %v2175
    %v2177 = vand.u32 %v2176, 4294901760
    %v2178 = vsub.f32 %v2176, %v2177
    %v2179 = vand.u32 %v2178, 4294901760
    %2180 = vmatpush.msra.mxu0 %v2179
    %v2181 = vand.u32 %v26, 4294901760
    %v2182 = vsub.f32 %v26, %v2181
    %v2183 = vand.u32 %v2182, 4294901760
    %v2184 = vsub.f32 %v2182, %v2183
    %v2185 = vand.u32 %v2184, 4294901760
    %2186 = vmatpush.msra.mxu0 %v2185
    %v2187 = vand.u32 %v25, 4294901760
    %v2188 = vsub.f32 %v25, %v2187
    %v2189 = vand.u32 %v2188, 4294901760
    %v2190 = vsub.f32 %v2188, %v2189
    %v2191 = vand.u32 %v2190, 4294901760
    %2192 = vmatpush.msra.mxu0 %v2191
    %v2193 = vand.u32 %v24, 4294901760
    %v2194 = vsub.f32 %v24, %v2193
    %v2195 = vand.u32 %v2194, 4294901760
    %v2196 = vsub.f32 %v2194, %v2195
    %v2197 = vand.u32 %v2196, 4294901760
    %2198 = vmatpush.msra.mxu0 %v2197
    %v2199 = vand.u32 %v23, 4294901760
    %v2200 = vsub.f32 %v23, %v2199
    %v2201 = vand.u32 %v2200, 4294901760
    %v2202 = vsub.f32 %v2200, %v2201
    %v2203 = vand.u32 %v2202, 4294901760
    %2204 = vmatpush.msra.mxu0 %v2203
    %v2205 = vand.u32 %v22, 4294901760
    %v2206 = vsub.f32 %v22, %v2205
    %v2207 = vand.u32 %v2206, 4294901760
    %v2208 = vsub.f32 %v2206, %v2207
    %v2209 = vand.u32 %v2208, 4294901760
    %2210 = vmatpush.msra.mxu0 %v2209
    %v2211 = vand.u32 %v21, 4294901760
    %v2212 = vsub.f32 %v21, %v2211
    %v2213 = vand.u32 %v2212, 4294901760
    %v2214 = vsub.f32 %v2212, %v2213
    %v2215 = vand.u32 %v2214, 4294901760
    %2216 = vmatpush.msra.mxu0 %v2215
    %v2217 = vand.u32 %v20, 4294901760
    %v2218 = vsub.f32 %v20, %v2217
    %v2219 = vand.u32 %v2218, 4294901760
    %v2220 = vsub.f32 %v2218, %v2219
    %v2221 = vand.u32 %v2220, 4294901760
    %2222 = vmatpush.msra.mxu0 %v2221
    %v2223 = vand.u32 %v19, 4294901760
    %v2224 = vsub.f32 %v19, %v2223
    %v2225 = vand.u32 %v2224, 4294901760
    %v2226 = vsub.f32 %v2224, %v2225
    %v2227 = vand.u32 %v2226, 4294901760
    %2228 = vmatpush.msra.mxu0 %v2227
    %v2229 = vand.u32 %v18, 4294901760
    %v2230 = vsub.f32 %v18, %v2229
    %v2231 = vand.u32 %v2230, 4294901760
    %v2232 = vsub.f32 %v2230, %v2231
    %v2233 = vand.u32 %v2232, 4294901760
    %2234 = vmatpush.msra.mxu0 %v2233
    %v2235 = vand.u32 %v17, 4294901760
    %v2236 = vsub.f32 %v17, %v2235
    %v2237 = vand.u32 %v2236, 4294901760
    %v2238 = vsub.f32 %v2236, %v2237
    %v2239 = vand.u32 %v2238, 4294901760
    %2240 = vmatpush.msra.mxu0 %v2239
    %v2241 = vand.u32 %v16, 4294901760
    %v2242 = vsub.f32 %v16, %v2241
    %v2243 = vand.u32 %v2242, 4294901760
    %v2244 = vsub.f32 %v2242, %v2243
    %v2245 = vand.u32 %v2244, 4294901760
    %2246 = vmatpush.msra.mxu0 %v2245
    %v2247 = vand.u32 %v15, 4294901760
    %v2248 = vsub.f32 %v15, %v2247
    %v2249 = vand.u32 %v2248, 4294901760
    %v2250 = vsub.f32 %v2248, %v2249
    %v2251 = vand.u32 %v2250, 4294901760
    %2252 = vmatpush.msra.mxu0 %v2251
    %v2253 = vand.u32 %v14, 4294901760
    %v2254 = vsub.f32 %v14, %v2253
    %v2255 = vand.u32 %v2254, 4294901760
    %v2256 = vsub.f32 %v2254, %v2255
    %v2257 = vand.u32 %v2256, 4294901760
    %2258 = vmatpush.msra.mxu0 %v2257
    %v2259 = vand.u32 %v13, 4294901760
    %v2260 = vsub.f32 %v13, %v2259
    %v2261 = vand.u32 %v2260, 4294901760
    %v2262 = vsub.f32 %v2260, %v2261
    %v2263 = vand.u32 %v2262, 4294901760
    %2264 = vmatpush.msra.mxu0 %v2263
    %v2265 = vand.u32 %v12, 4294901760
    %v2266 = vsub.f32 %v12, %v2265
    %v2267 = vand.u32 %v2266, 4294901760
    %v2268 = vsub.f32 %v2266, %v2267
    %v2269 = vand.u32 %v2268, 4294901760
    %2270 = vmatpush.msra.mxu0 %v2269
    %v2271 = vand.u32 %v1998, 4294901760
    %2272 = vmatmul.f32.gmra.mxu0 %v2271
    %v2273 = vpop.f32.mrf.mxu0
    %v2274 = vadd.f32 %v2053, %v2273
    %v2275 = vand.u32 %v1999, 4294901760
    %2276 = vmatmul.f32.gmra.mxu0 %v2275
    %v2277 = vpop.f32.mrf.mxu0
    %v2278 = vadd.f32 %v2061, %v2277
    %v2279 = vand.u32 %v2000, 4294901760
    %2280 = vmatmul.f32.gmra.mxu0 %v2279
    %v2281 = vpop.f32.mrf.mxu0
    %v2282 = vadd.f32 %v2069, %v2281
    %v2283 = vand.u32 %v2001, 4294901760
    %2284 = vmatmul.f32.gmra.mxu0 %v2283
    %v2285 = vpop.f32.mrf.mxu0
    %v2286 = vadd.f32 %v2077, %v2285
    %v2287 = vand.u32 %v2002, 4294901760
    %2288 = vmatmul.f32.gmra.mxu0 %v2287
    %v2289 = vpop.f32.mrf.mxu0
    %v2290 = vadd.f32 %v2085, %v2289
    %v2291 = vand.u32 %v2003, 4294901760
    %2292 = vmatmul.f32.gmra.mxu0 %v2291
    %v2293 = vpop.f32.mrf.mxu0
    %v2294 = vadd.f32 %v2093, %v2293
    %v2295 = vand.u32 %v2004, 4294901760
    %2296 = vmatmul.f32.gmra.mxu0 %v2295
    %v2297 = vpop.f32.mrf.mxu0
    %v2298 = vadd.f32 %v2101, %v2297
    %v2299 = vand.u32 %v2005, 4294901760
    %2300 = vmatmul.f32.gmra.mxu0 %v2299
    %v2301 = vpop.f32.mrf.mxu0
    %v2302 = vadd.f32 %v2109, %v2301
    %v2303 = vand.u32 %v2006, 4294901760
    %2304 = vmatmul.f32.gmra.mxu0 %v2303
    %v2305 = vpop.f32.mrf.mxu0
    %v2306 = vadd.f32 %v2117, %v2305
    %v2307 = vand.u32 %v2007, 4294901760
    %2308 = vmatmul.f32.gmra.mxu0 %v2307
    %v2309 = vpop.f32.mrf.mxu0
    %v2310 = vadd.f32 %v2125, %v2309
    %v2311 = vand.u32 %v2008, 4294901760
    %2312 = vmatmul.f32.gmra.mxu0 %v2311
    %v2313 = vpop.f32.mrf.mxu0
    %v2314 = vadd.f32 %v2133, %v2313
    %v2315 = vand.u32 %v2009, 4294901760
    %2316 = vmatmul.f32.gmra.mxu0 %v2315
    %v2317 = vpop.f32.mrf.mxu0
    %v2318 = vadd.f32 %v2141, %v2317
    %v2319 = vand.u32 %v2010, 4294901760
    %2320 = vmatmul.f32.gmra.mxu0 %v2319
    %v2321 = vpop.f32.mrf.mxu0
    %v2322 = vadd.f32 %v2149, %v2321
    %v2323 = vand.u32 %v2011, 4294901760
    %2324 = vmatmul.f32.gmra.mxu0 %v2323
    %v2325 = vpop.f32.mrf.mxu0
    %v2326 = vadd.f32 %v2157, %v2325
    %v2327 = vand.u32 %v2012, 4294901760
    %2328 = vmatmul.f32.gmra.mxu0 %v2327
    %v2329 = vpop.f32.mrf.mxu0
    %v2330 = vadd.f32 %v2165, %v2329
    %v2331 = vand.u32 %v2013, 4294901760
    %2332 = vmatmul.f32.gmra.mxu0 %v2331
    %v2333 = vpop.f32.mrf.mxu0
    %v2334 = vadd.f32 %v2173, %v2333
    %2335 = vdwg.mxu0
    %v2336 = vand.u32 %v27, 4294901760
    %v2337 = vsub.f32 %v27, %v2336
    %2338 = vmatpush.msra.mxu0 %v2337
    %v2339 = vand.u32 %v26, 4294901760
    %v2340 = vsub.f32 %v26, %v2339
    %2341 = vmatpush.msra.mxu0 %v2340
    %v2342 = vand.u32 %v25, 4294901760
    %v2343 = vsub.f32 %v25, %v2342
    %2344 = vmatpush.msra.mxu0 %v2343
    %v2345 = vand.u32 %v24, 4294901760
    %v2346 = vsub.f32 %v24, %v2345
    %2347 = vmatpush.msra.mxu0 %v2346
    %v2348 = vand.u32 %v23, 4294901760
    %v2349 = vsub.f32 %v23, %v2348
    %2350 = vmatpush.msra.mxu0 %v2349
    %v2351 = vand.u32 %v22, 4294901760
    %v2352 = vsub.f32 %v22, %v2351
    %2353 = vmatpush.msra.mxu0 %v2352
    %v2354 = vand.u32 %v21, 4294901760
    %v2355 = vsub.f32 %v21, %v2354
    %2356 = vmatpush.msra.mxu0 %v2355
    %v2357 = vand.u32 %v20, 4294901760
    %v2358 = vsub.f32 %v20, %v2357
    %2359 = vmatpush.msra.mxu0 %v2358
    %v2360 = vand.u32 %v19, 4294901760
    %v2361 = vsub.f32 %v19, %v2360
    %2362 = vmatpush.msra.mxu0 %v2361
    %v2363 = vand.u32 %v18, 4294901760
    %v2364 = vsub.f32 %v18, %v2363
    %2365 = vmatpush.msra.mxu0 %v2364
    %v2366 = vand.u32 %v17, 4294901760
    %v2367 = vsub.f32 %v17, %v2366
    %2368 = vmatpush.msra.mxu0 %v2367
    %v2369 = vand.u32 %v16, 4294901760
    %v2370 = vsub.f32 %v16, %v2369
    %2371 = vmatpush.msra.mxu0 %v2370
    %v2372 = vand.u32 %v15, 4294901760
    %v2373 = vsub.f32 %v15, %v2372
    %2374 = vmatpush.msra.mxu0 %v2373
    %v2375 = vand.u32 %v14, 4294901760
    %v2376 = vsub.f32 %v14, %v2375
    %2377 = vmatpush.msra.mxu0 %v2376
    %v2378 = vand.u32 %v13, 4294901760
    %v2379 = vsub.f32 %v13, %v2378
    %2380 = vmatpush.msra.mxu0 %v2379
    %v2381 = vand.u32 %v12, 4294901760
    %v2382 = vsub.f32 %v12, %v2381
    %2383 = vmatpush.msra.mxu0 %v2382
    %v2384 = vand.u32 %v1998, 4294901760
    %v2385 = vsub.f32 %v1998, %v2384
    %2386 = vmatmul.f32.gmra.mxu0 %v2385
    %v2387 = vpop.f32.mrf.mxu0
    %v2388 = vadd.f32 %v2274, %v2387
    %v2389 = vand.u32 %v1999, 4294901760
    %v2390 = vsub.f32 %v1999, %v2389
    %2391 = vmatmul.f32.gmra.mxu0 %v2390
    %v2392 = vpop.f32.mrf.mxu0
    %v2393 = vadd.f32 %v2278, %v2392
    %v2394 = vand.u32 %v2000, 4294901760
    %v2395 = vsub.f32 %v2000, %v2394
    %2396 = vmatmul.f32.gmra.mxu0 %v2395
    %v2397 = vpop.f32.mrf.mxu0
    %v2398 = vadd.f32 %v2282, %v2397
    %v2399 = vand.u32 %v2001, 4294901760
    %v2400 = vsub.f32 %v2001, %v2399
    %2401 = vmatmul.f32.gmra.mxu0 %v2400
    %v2402 = vpop.f32.mrf.mxu0
    %v2403 = vadd.f32 %v2286, %v2402
    %v2404 = vand.u32 %v2002, 4294901760
    %v2405 = vsub.f32 %v2002, %v2404
    %2406 = vmatmul.f32.gmra.mxu0 %v2405
    %v2407 = vpop.f32.mrf.mxu0
    %v2408 = vadd.f32 %v2290, %v2407
    %v2409 = vand.u32 %v2003, 4294901760
    %v2410 = vsub.f32 %v2003, %v2409
    %2411 = vmatmul.f32.gmra.mxu0 %v2410
    %v2412 = vpop.f32.mrf.mxu0
    %v2413 = vadd.f32 %v2294, %v2412
    %v2414 = vand.u32 %v2004, 4294901760
    %v2415 = vsub.f32 %v2004, %v2414
    %2416 = vmatmul.f32.gmra.mxu0 %v2415
    %v2417 = vpop.f32.mrf.mxu0
    %v2418 = vadd.f32 %v2298, %v2417
    %v2419 = vand.u32 %v2005, 4294901760
    %v2420 = vsub.f32 %v2005, %v2419
    %2421 = vmatmul.f32.gmra.mxu0 %v2420
    %v2422 = vpop.f32.mrf.mxu0
    %v2423 = vadd.f32 %v2302, %v2422
    %v2424 = vand.u32 %v2006, 4294901760
    %v2425 = vsub.f32 %v2006, %v2424
    %2426 = vmatmul.f32.gmra.mxu0 %v2425
    %v2427 = vpop.f32.mrf.mxu0
    %v2428 = vadd.f32 %v2306, %v2427
    %v2429 = vand.u32 %v2007, 4294901760
    %v2430 = vsub.f32 %v2007, %v2429
    %2431 = vmatmul.f32.gmra.mxu0 %v2430
    %v2432 = vpop.f32.mrf.mxu0
    %v2433 = vadd.f32 %v2310, %v2432
    %v2434 = vand.u32 %v2008, 4294901760
    %v2435 = vsub.f32 %v2008, %v2434
    %2436 = vmatmul.f32.gmra.mxu0 %v2435
    %v2437 = vpop.f32.mrf.mxu0
    %v2438 = vadd.f32 %v2314, %v2437
    %v2439 = vand.u32 %v2009, 4294901760
    %v2440 = vsub.f32 %v2009, %v2439
    %2441 = vmatmul.f32.gmra.mxu0 %v2440
    %v2442 = vpop.f32.mrf.mxu0
    %v2443 = vadd.f32 %v2318, %v2442
    %v2444 = vand.u32 %v2010, 4294901760
    %v2445 = vsub.f32 %v2010, %v2444
    %2446 = vmatmul.f32.gmra.mxu0 %v2445
    %v2447 = vpop.f32.mrf.mxu0
    %v2448 = vadd.f32 %v2322, %v2447
    %v2449 = vand.u32 %v2011, 4294901760
    %v2450 = vsub.f32 %v2011, %v2449
    %2451 = vmatmul.f32.gmra.mxu0 %v2450
    %v2452 = vpop.f32.mrf.mxu0
    %v2453 = vadd.f32 %v2326, %v2452
    %v2454 = vand.u32 %v2012, 4294901760
    %v2455 = vsub.f32 %v2012, %v2454
    %2456 = vmatmul.f32.gmra.mxu0 %v2455
    %v2457 = vpop.f32.mrf.mxu0
    %v2458 = vadd.f32 %v2330, %v2457
    %v2459 = vand.u32 %v2013, 4294901760
    %v2460 = vsub.f32 %v2013, %v2459
    %2461 = vmatmul.f32.gmra.mxu0 %v2460
    %v2462 = vpop.f32.mrf.mxu0
    %v2463 = vadd.f32 %v2334, %v2462
    %2464 = vdwg.mxu0
    %v2465 = vand.u32 %v27, 4294901760
    %2466 = vmatpush.msra.mxu0 %v2465
    %v2467 = vand.u32 %v26, 4294901760
    %2468 = vmatpush.msra.mxu0 %v2467
    %v2469 = vand.u32 %v25, 4294901760
    %2470 = vmatpush.msra.mxu0 %v2469
    %v2471 = vand.u32 %v24, 4294901760
    %2472 = vmatpush.msra.mxu0 %v2471
    %v2473 = vand.u32 %v23, 4294901760
    %2474 = vmatpush.msra.mxu0 %v2473
    %v2475 = vand.u32 %v22, 4294901760
    %2476 = vmatpush.msra.mxu0 %v2475
    %v2477 = vand.u32 %v21, 4294901760
    %2478 = vmatpush.msra.mxu0 %v2477
    %v2479 = vand.u32 %v20, 4294901760
    %2480 = vmatpush.msra.mxu0 %v2479
    %v2481 = vand.u32 %v19, 4294901760
    %2482 = vmatpush.msra.mxu0 %v2481
    %v2483 = vand.u32 %v18, 4294901760
    %2484 = vmatpush.msra.mxu0 %v2483
    %v2485 = vand.u32 %v17, 4294901760
    %2486 = vmatpush.msra.mxu0 %v2485
    %v2487 = vand.u32 %v16, 4294901760
    %2488 = vmatpush.msra.mxu0 %v2487
    %v2489 = vand.u32 %v15, 4294901760
    %2490 = vmatpush.msra.mxu0 %v2489
    %v2491 = vand.u32 %v14, 4294901760
    %2492 = vmatpush.msra.mxu0 %v2491
    %v2493 = vand.u32 %v13, 4294901760
    %2494 = vmatpush.msra.mxu0 %v2493
    %v2495 = vand.u32 %v12, 4294901760
    %2496 = vmatpush.msra.mxu0 %v2495
    %v2497 = vand.u32 %v1998, 4294901760
    %v2498 = vsub.f32 %v1998, %v2497
    %v2499 = vand.u32 %v2498, 4294901760
    %2500 = vmatmul.f32.gmra.mxu0 %v2499
    %v2501 = vpop.f32.mrf.mxu0
    %v2502 = vadd.f32 %v2388, %v2501
    %v2503 = vand.u32 %v1999, 4294901760
    %v2504 = vsub.f32 %v1999, %v2503
    %v2505 = vand.u32 %v2504, 4294901760
    %2506 = vmatmul.f32.gmra.mxu0 %v2505
    %v2507 = vpop.f32.mrf.mxu0
    %v2508 = vadd.f32 %v2393, %v2507
    %v2509 = vand.u32 %v2000, 4294901760
    %v2510 = vsub.f32 %v2000, %v2509
    %v2511 = vand.u32 %v2510, 4294901760
    %2512 = vmatmul.f32.gmra.mxu0 %v2511
    %v2513 = vpop.f32.mrf.mxu0
    %v2514 = vadd.f32 %v2398, %v2513
    %v2515 = vand.u32 %v2001, 4294901760
    %v2516 = vsub.f32 %v2001, %v2515
    %v2517 = vand.u32 %v2516, 4294901760
    %2518 = vmatmul.f32.gmra.mxu0 %v2517
    %v2519 = vpop.f32.mrf.mxu0
    %v2520 = vadd.f32 %v2403, %v2519
    %v2521 = vand.u32 %v2002, 4294901760
    %v2522 = vsub.f32 %v2002, %v2521
    %v2523 = vand.u32 %v2522, 4294901760
    %2524 = vmatmul.f32.gmra.mxu0 %v2523
    %v2525 = vpop.f32.mrf.mxu0
    %v2526 = vadd.f32 %v2408, %v2525
    %v2527 = vand.u32 %v2003, 4294901760
    %v2528 = vsub.f32 %v2003, %v2527
    %v2529 = vand.u32 %v2528, 4294901760
    %2530 = vmatmul.f32.gmra.mxu0 %v2529
    %v2531 = vpop.f32.mrf.mxu0
    %v2532 = vadd.f32 %v2413, %v2531
    %v2533 = vand.u32 %v2004, 4294901760
    %v2534 = vsub.f32 %v2004, %v2533
    %v2535 = vand.u32 %v2534, 4294901760
    %2536 = vmatmul.f32.gmra.mxu0 %v2535
    %v2537 = vpop.f32.mrf.mxu0
    %v2538 = vadd.f32 %v2418, %v2537
    %v2539 = vand.u32 %v2005, 4294901760
    %v2540 = vsub.f32 %v2005, %v2539
    %v2541 = vand.u32 %v2540, 4294901760
    %2542 = vmatmul.f32.gmra.mxu0 %v2541
    %v2543 = vpop.f32.mrf.mxu0
    %v2544 = vadd.f32 %v2423, %v2543
    %v2545 = vand.u32 %v2006, 4294901760
    %v2546 = vsub.f32 %v2006, %v2545
    %v2547 = vand.u32 %v2546, 4294901760
    %2548 = vmatmul.f32.gmra.mxu0 %v2547
    %v2549 = vpop.f32.mrf.mxu0
    %v2550 = vadd.f32 %v2428, %v2549
    %v2551 = vand.u32 %v2007, 4294901760
    %v2552 = vsub.f32 %v2007, %v2551
    %v2553 = vand.u32 %v2552, 4294901760
    %2554 = vmatmul.f32.gmra.mxu0 %v2553
    %v2555 = vpop.f32.mrf.mxu0
    %v2556 = vadd.f32 %v2433, %v2555
    %v2557 = vand.u32 %v2008, 4294901760
    %v2558 = vsub.f32 %v2008, %v2557
    %v2559 = vand.u32 %v2558, 4294901760
    %2560 = vmatmul.f32.gmra.mxu0 %v2559
    %v2561 = vpop.f32.mrf.mxu0
    %v2562 = vadd.f32 %v2438, %v2561
    %v2563 = vand.u32 %v2009, 4294901760
    %v2564 = vsub.f32 %v2009, %v2563
    %v2565 = vand.u32 %v2564, 4294901760
    %2566 = vmatmul.f32.gmra.mxu0 %v2565
    %v2567 = vpop.f32.mrf.mxu0
    %v2568 = vadd.f32 %v2443, %v2567
    %v2569 = vand.u32 %v2010, 4294901760
    %v2570 = vsub.f32 %v2010, %v2569
    %v2571 = vand.u32 %v2570, 4294901760
    %2572 = vmatmul.f32.gmra.mxu0 %v2571
    %v2573 = vpop.f32.mrf.mxu0
    %v2574 = vadd.f32 %v2448, %v2573
    %v2575 = vand.u32 %v2011, 4294901760
    %v2576 = vsub.f32 %v2011, %v2575
    %v2577 = vand.u32 %v2576, 4294901760
    %2578 = vmatmul.f32.gmra.mxu0 %v2577
    %v2579 = vpop.f32.mrf.mxu0
    %v2580 = vadd.f32 %v2453, %v2579
    %v2581 = vand.u32 %v2012, 4294901760
    %v2582 = vsub.f32 %v2012, %v2581
    %v2583 = vand.u32 %v2582, 4294901760
    %2584 = vmatmul.f32.gmra.mxu0 %v2583
    %v2585 = vpop.f32.mrf.mxu0
    %v2586 = vadd.f32 %v2458, %v2585
    %v2587 = vand.u32 %v2013, 4294901760
    %v2588 = vsub.f32 %v2013, %v2587
    %v2589 = vand.u32 %v2588, 4294901760
    %2590 = vmatmul.f32.gmra.mxu0 %v2589
    %v2591 = vpop.f32.mrf.mxu0
    %v2592 = vadd.f32 %v2463, %v2591
    %2593 = vdwg.mxu0
    %v2594 = vand.u32 %v27, 4294901760
    %v2595 = vsub.f32 %v27, %v2594
    %v2596 = vand.u32 %v2595, 4294901760
    %2597 = vmatpush.msra.mxu0 %v2596
    %v2598 = vand.u32 %v26, 4294901760
    %v2599 = vsub.f32 %v26, %v2598
    %v2600 = vand.u32 %v2599, 4294901760
    %2601 = vmatpush.msra.mxu0 %v2600
    %v2602 = vand.u32 %v25, 4294901760
    %v2603 = vsub.f32 %v25, %v2602
    %v2604 = vand.u32 %v2603, 4294901760
    %2605 = vmatpush.msra.mxu0 %v2604
    %v2606 = vand.u32 %v24, 4294901760
    %v2607 = vsub.f32 %v24, %v2606
    %v2608 = vand.u32 %v2607, 4294901760
    %2609 = vmatpush.msra.mxu0 %v2608
    %v2610 = vand.u32 %v23, 4294901760
    %v2611 = vsub.f32 %v23, %v2610
    %v2612 = vand.u32 %v2611, 4294901760
    %2613 = vmatpush.msra.mxu0 %v2612
    %v2614 = vand.u32 %v22, 4294901760
    %v2615 = vsub.f32 %v22, %v2614
    %v2616 = vand.u32 %v2615, 4294901760
    %2617 = vmatpush.msra.mxu0 %v2616
    %v2618 = vand.u32 %v21, 4294901760
    %v2619 = vsub.f32 %v21, %v2618
    %v2620 = vand.u32 %v2619, 4294901760
    %2621 = vmatpush.msra.mxu0 %v2620
    %v2622 = vand.u32 %v20, 4294901760
    %v2623 = vsub.f32 %v20, %v2622
    %v2624 = vand.u32 %v2623, 4294901760
    %2625 = vmatpush.msra.mxu0 %v2624
    %v2626 = vand.u32 %v19, 4294901760
    %v2627 = vsub.f32 %v19, %v2626
    %v2628 = vand.u32 %v2627, 4294901760
    %2629 = vmatpush.msra.mxu0 %v2628
    %v2630 = vand.u32 %v18, 4294901760
    %v2631 = vsub.f32 %v18, %v2630
    %v2632 = vand.u32 %v2631, 4294901760
    %2633 = vmatpush.msra.mxu0 %v2632
    %v2634 = vand.u32 %v17, 4294901760
    %v2635 = vsub.f32 %v17, %v2634
    %v2636 = vand.u32 %v2635, 4294901760
    %2637 = vmatpush.msra.mxu0 %v2636
    %v2638 = vand.u32 %v16, 4294901760
    %v2639 = vsub.f32 %v16, %v2638
    %v2640 = vand.u32 %v2639, 4294901760
    %2641 = vmatpush.msra.mxu0 %v2640
    %v2642 = vand.u32 %v15, 4294901760
    %v2643 = vsub.f32 %v15, %v2642
    %v2644 = vand.u32 %v2643, 4294901760
    %2645 = vmatpush.msra.mxu0 %v2644
    %v2646 = vand.u32 %v14, 4294901760
    %v2647 = vsub.f32 %v14, %v2646
    %v2648 = vand.u32 %v2647, 4294901760
    %2649 = vmatpush.msra.mxu0 %v2648
    %v2650 = vand.u32 %v13, 4294901760
    %v2651 = vsub.f32 %v13, %v2650
    %v2652 = vand.u32 %v2651, 4294901760
    %2653 = vmatpush.msra.mxu0 %v2652
    %v2654 = vand.u32 %v12, 4294901760
    %v2655 = vsub.f32 %v12, %v2654
    %v2656 = vand.u32 %v2655, 4294901760
    %2657 = vmatpush.msra.mxu0 %v2656
    %v2658 = vand.u32 %v1998, 4294901760
    %2659 = vmatmul.f32.gmra.mxu0 %v2658
    %v2660 = vpop.f32.mrf.mxu0
    %v2661 = vadd.f32 %v2502, %v2660
    %v2662 = vand.u32 %v1999, 4294901760
    %2663 = vmatmul.f32.gmra.mxu0 %v2662
    %v2664 = vpop.f32.mrf.mxu0
    %v2665 = vadd.f32 %v2508, %v2664
    %v2666 = vand.u32 %v2000, 4294901760
    %2667 = vmatmul.f32.gmra.mxu0 %v2666
    %v2668 = vpop.f32.mrf.mxu0
    %v2669 = vadd.f32 %v2514, %v2668
    %v2670 = vand.u32 %v2001, 4294901760
    %2671 = vmatmul.f32.gmra.mxu0 %v2670
    %v2672 = vpop.f32.mrf.mxu0
    %v2673 = vadd.f32 %v2520, %v2672
    %v2674 = vand.u32 %v2002, 4294901760
    %2675 = vmatmul.f32.gmra.mxu0 %v2674
    %v2676 = vpop.f32.mrf.mxu0
    %v2677 = vadd.f32 %v2526, %v2676
    %v2678 = vand.u32 %v2003, 4294901760
    %2679 = vmatmul.f32.gmra.mxu0 %v2678
    %v2680 = vpop.f32.mrf.mxu0
    %v2681 = vadd.f32 %v2532, %v2680
    %v2682 = vand.u32 %v2004, 4294901760
    %2683 = vmatmul.f32.gmra.mxu0 %v2682
    %v2684 = vpop.f32.mrf.mxu0
    %v2685 = vadd.f32 %v2538, %v2684
    %v2686 = vand.u32 %v2005, 4294901760
    %2687 = vmatmul.f32.gmra.mxu0 %v2686
    %v2688 = vpop.f32.mrf.mxu0
    %v2689 = vadd.f32 %v2544, %v2688
    %v2690 = vand.u32 %v2006, 4294901760
    %2691 = vmatmul.f32.gmra.mxu0 %v2690
    %v2692 = vpop.f32.mrf.mxu0
    %v2693 = vadd.f32 %v2550, %v2692
    %v2694 = vand.u32 %v2007, 4294901760
    %2695 = vmatmul.f32.gmra.mxu0 %v2694
    %v2696 = vpop.f32.mrf.mxu0
    %v2697 = vadd.f32 %v2556, %v2696
    %v2698 = vand.u32 %v2008, 4294901760
    %2699 = vmatmul.f32.gmra.mxu0 %v2698
    %v2700 = vpop.f32.mrf.mxu0
    %v2701 = vadd.f32 %v2562, %v2700
    %v2702 = vand.u32 %v2009, 4294901760
    %2703 = vmatmul.f32.gmra.mxu0 %v2702
    %v2704 = vpop.f32.mrf.mxu0
    %v2705 = vadd.f32 %v2568, %v2704
    %v2706 = vand.u32 %v2010, 4294901760
    %2707 = vmatmul.f32.gmra.mxu0 %v2706
    %v2708 = vpop.f32.mrf.mxu0
    %v2709 = vadd.f32 %v2574, %v2708
    %v2710 = vand.u32 %v2011, 4294901760
    %2711 = vmatmul.f32.gmra.mxu0 %v2710
    %v2712 = vpop.f32.mrf.mxu0
    %v2713 = vadd.f32 %v2580, %v2712
    %v2714 = vand.u32 %v2012, 4294901760
    %2715 = vmatmul.f32.gmra.mxu0 %v2714
    %v2716 = vpop.f32.mrf.mxu0
    %v2717 = vadd.f32 %v2586, %v2716
    %v2718 = vand.u32 %v2013, 4294901760
    %2719 = vmatmul.f32.gmra.mxu0 %v2718
    %v2720 = vpop.f32.mrf.mxu0
    %v2721 = vadd.f32 %v2592, %v2720
    %2722 = vdwg.mxu0
    %v2723 = vand.u32 %v27, 4294901760
    %2724 = vmatpush.msra.mxu0 %v2723
    %v2725 = vand.u32 %v26, 4294901760
    %2726 = vmatpush.msra.mxu0 %v2725
    %v2727 = vand.u32 %v25, 4294901760
    %2728 = vmatpush.msra.mxu0 %v2727
    %v2729 = vand.u32 %v24, 4294901760
    %2730 = vmatpush.msra.mxu0 %v2729
    %v2731 = vand.u32 %v23, 4294901760
    %2732 = vmatpush.msra.mxu0 %v2731
    %v2733 = vand.u32 %v22, 4294901760
    %2734 = vmatpush.msra.mxu0 %v2733
    %v2735 = vand.u32 %v21, 4294901760
    %2736 = vmatpush.msra.mxu0 %v2735
    %v2737 = vand.u32 %v20, 4294901760
    %2738 = vmatpush.msra.mxu0 %v2737
    %v2739 = vand.u32 %v19, 4294901760
    %2740 = vmatpush.msra.mxu0 %v2739
    %v2741 = vand.u32 %v18, 4294901760
    %2742 = vmatpush.msra.mxu0 %v2741
    %v2743 = vand.u32 %v17, 4294901760
    %2744 = vmatpush.msra.mxu0 %v2743
    %v2745 = vand.u32 %v16, 4294901760
    %2746 = vmatpush.msra.mxu0 %v2745
    %v2747 = vand.u32 %v15, 4294901760
    %2748 = vmatpush.msra.mxu0 %v2747
    %v2749 = vand.u32 %v14, 4294901760
    %2750 = vmatpush.msra.mxu0 %v2749
    %v2751 = vand.u32 %v13, 4294901760
    %2752 = vmatpush.msra.mxu0 %v2751
    %v2753 = vand.u32 %v12, 4294901760
    %2754 = vmatpush.msra.mxu0 %v2753
    %v2755 = vand.u32 %v1998, 4294901760
    %2756 = vmatmul.f32.gmra.mxu0 %v2755
    %v2757 = vpop.f32.mrf.mxu0
    %v2758 = vadd.f32 %v2661, %v2757
    %v2759 = vand.u32 %v1999, 4294901760
    %2760 = vmatmul.f32.gmra.mxu0 %v2759
    %v2761 = vpop.f32.mrf.mxu0
    %v2762 = vadd.f32 %v2665, %v2761
    %v2763 = vand.u32 %v2000, 4294901760
    %2764 = vmatmul.f32.gmra.mxu0 %v2763
    %v2765 = vpop.f32.mrf.mxu0
    %v2766 = vadd.f32 %v2669, %v2765
    %v2767 = vand.u32 %v2001, 4294901760
    %2768 = vmatmul.f32.gmra.mxu0 %v2767
    %v2769 = vpop.f32.mrf.mxu0
    %v2770 = vadd.f32 %v2673, %v2769
    %v2771 = vand.u32 %v2002, 4294901760
    %2772 = vmatmul.f32.gmra.mxu0 %v2771
    %v2773 = vpop.f32.mrf.mxu0
    %v2774 = vadd.f32 %v2677, %v2773
    %v2775 = vand.u32 %v2003, 4294901760
    %2776 = vmatmul.f32.gmra.mxu0 %v2775
    %v2777 = vpop.f32.mrf.mxu0
    %v2778 = vadd.f32 %v2681, %v2777
    %v2779 = vand.u32 %v2004, 4294901760
    %2780 = vmatmul.f32.gmra.mxu0 %v2779
    %v2781 = vpop.f32.mrf.mxu0
    %v2782 = vadd.f32 %v2685, %v2781
    %v2783 = vand.u32 %v2005, 4294901760
    %2784 = vmatmul.f32.gmra.mxu0 %v2783
    %v2785 = vpop.f32.mrf.mxu0
    %v2786 = vadd.f32 %v2689, %v2785
    %v2787 = vand.u32 %v2006, 4294901760
    %2788 = vmatmul.f32.gmra.mxu0 %v2787
    %v2789 = vpop.f32.mrf.mxu0
    %v2790 = vadd.f32 %v2693, %v2789
    %v2791 = vand.u32 %v2007, 4294901760
    %2792 = vmatmul.f32.gmra.mxu0 %v2791
    %v2793 = vpop.f32.mrf.mxu0
    %v2794 = vadd.f32 %v2697, %v2793
    %v2795 = vand.u32 %v2008, 4294901760
    %2796 = vmatmul.f32.gmra.mxu0 %v2795
    %v2797 = vpop.f32.mrf.mxu0
    %v2798 = vadd.f32 %v2701, %v2797
    %v2799 = vand.u32 %v2009, 4294901760
    %2800 = vmatmul.f32.gmra.mxu0 %v2799
    %v2801 = vpop.f32.mrf.mxu0
    %v2802 = vadd.f32 %v2705, %v2801
    %v2803 = vand.u32 %v2010, 4294901760
    %2804 = vmatmul.f32.gmra.mxu0 %v2803
    %v2805 = vpop.f32.mrf.mxu0
    %v2806 = vadd.f32 %v2709, %v2805
    %v2807 = vand.u32 %v2011, 4294901760
    %2808 = vmatmul.f32.gmra.mxu0 %v2807
    %v2809 = vpop.f32.mrf.mxu0
    %v2810 = vadd.f32 %v2713, %v2809
    %v2811 = vand.u32 %v2012, 4294901760
    %2812 = vmatmul.f32.gmra.mxu0 %v2811
    %v2813 = vpop.f32.mrf.mxu0
    %v2814 = vadd.f32 %v2717, %v2813
    %v2815 = vand.u32 %v2013, 4294901760
    %2816 = vmatmul.f32.gmra.mxu0 %v2815
    %v2817 = vpop.f32.mrf.mxu0
    %v2818 = vadd.f32 %v2721, %v2817
    %2819 = vdwg.mxu0
    %s2820 = scalar_lea.vmem [#allocation2], 256
    %2821 = vst.msk [vmem:[%s2820] sm:$0xff] %vm948, %v2758
    %2822 = vst.msk [vmem:[%s2820 + $0x8] sm:$0xff] %vm948, %v2762
    %2823 = vst.msk [vmem:[%s2820 + $0x10] sm:$0xff] %vm948, %v2766
    %2824 = vst.msk [vmem:[%s2820 + $0x18] sm:$0xff] %vm948, %v2770
    %2825 = vst.msk [vmem:[%s2820 + $0x20] sm:$0xff] %vm948, %v2774
    %2826 = vst.msk [vmem:[%s2820 + $0x28] sm:$0xff] %vm948, %v2778
    %2827 = vst.msk [vmem:[%s2820 + $0x30] sm:$0xff] %vm948, %v2782
    %2828 = vst.msk [vmem:[%s2820 + $0x38] sm:$0xff] %vm948, %v2786
    %2829 = vst.msk [vmem:[%s2820 + $0x40] sm:$0xff] %vm948, %v2790
    %2830 = vst.msk [vmem:[%s2820 + $0x48] sm:$0xff] %vm948, %v2794
    %2831 = vst.msk [vmem:[%s2820 + $0x50] sm:$0xff] %vm948, %v2798
    %2832 = vst.msk [vmem:[%s2820 + $0x58] sm:$0xff] %vm948, %v2802
    %2833 = vst.msk [vmem:[%s2820 + $0x60] sm:$0xff] %vm948, %v2806
    %2834 = vst.msk [vmem:[%s2820 + $0x68] sm:$0xff] %vm948, %v2810
    %2835 = vst.msk [vmem:[%s2820 + $0x70] sm:$0xff] %vm948, %v2814
    %2836 = vst.msk [vmem:[%s2820 + $0x78] sm:$0xff] %vm948, %v2818
    %s2837 = scalar_lea.vmem %s0, 384
    %v2838 = vld [vmem:[%s2837] sm:$0xff]
    %v2839 = vld [vmem:[%s2837 + $0x8] sm:$0xff]
    %v2840 = vld [vmem:[%s2837 + $0x10] sm:$0xff]
    %v2841 = vld [vmem:[%s2837 + $0x18] sm:$0xff]
    %v2842 = vld [vmem:[%s2837 + $0x20] sm:$0xff]
    %v2843 = vld [vmem:[%s2837 + $0x28] sm:$0xff]
    %v2844 = vld [vmem:[%s2837 + $0x30] sm:$0xff]
    %v2845 = vld [vmem:[%s2837 + $0x38] sm:$0xff]
    %v2846 = vld [vmem:[%s2837 + $0x40] sm:$0xff]
    %v2847 = vld [vmem:[%s2837 + $0x48] sm:$0xff]
    %v2848 = vld [vmem:[%s2837 + $0x50] sm:$0xff]
    %v2849 = vld [vmem:[%s2837 + $0x58] sm:$0xff]
    %v2850 = vld [vmem:[%s2837 + $0x60] sm:$0xff]
    %v2851 = vld [vmem:[%s2837 + $0x68] sm:$0xff]
    %v2852 = vld [vmem:[%s2837 + $0x70] sm:$0xff]
    %v2853 = vld [vmem:[%s2837 + $0x78] sm:$0xff]
    %2854 = vset.pattern.permute.xlu0 0
    %2855 = vperm.xlu0 %2854, %v2838
    %v2856 = vpop.permute.xlu0 %2855
    %2857 = vset.pattern.permute.xlu0 0
    %2858 = vperm.xlu0 %2857, %v2839
    %v2859 = vpop.permute.xlu0 %2858
    %2860 = vset.pattern.permute.xlu0 0
    %2861 = vperm.xlu0 %2860, %v2840
    %v2862 = vpop.permute.xlu0 %2861
    %2863 = vset.pattern.permute.xlu0 0
    %2864 = vperm.xlu0 %2863, %v2841
    %v2865 = vpop.permute.xlu0 %2864
    %2866 = vset.pattern.permute.xlu0 0
    %2867 = vperm.xlu0 %2866, %v2842
    %v2868 = vpop.permute.xlu0 %2867
    %2869 = vset.pattern.permute.xlu0 0
    %2870 = vperm.xlu0 %2869, %v2843
    %v2871 = vpop.permute.xlu0 %2870
    %2872 = vset.pattern.permute.xlu0 0
    %2873 = vperm.xlu0 %2872, %v2844
    %v2874 = vpop.permute.xlu0 %2873
    %2875 = vset.pattern.permute.xlu0 0
    %2876 = vperm.xlu0 %2875, %v2845
    %v2877 = vpop.permute.xlu0 %2876
    %2878 = vset.pattern.permute.xlu0 0
    %2879 = vperm.xlu0 %2878, %v2846
    %v2880 = vpop.permute.xlu0 %2879
    %2881 = vset.pattern.permute.xlu0 0
    %2882 = vperm.xlu0 %2881, %v2847
    %v2883 = vpop.permute.xlu0 %2882
    %2884 = vset.pattern.permute.xlu0 0
    %2885 = vperm.xlu0 %2884, %v2848
    %v2886 = vpop.permute.xlu0 %2885
    %2887 = vset.pattern.permute.xlu0 0
    %2888 = vperm.xlu0 %2887, %v2849
    %v2889 = vpop.permute.xlu0 %2888
    %2890 = vset.pattern.permute.xlu0 0
    %2891 = vperm.xlu0 %2890, %v2850
    %v2892 = vpop.permute.xlu0 %2891
    %2893 = vset.pattern.permute.xlu0 0
    %2894 = vperm.xlu0 %2893, %v2851
    %v2895 = vpop.permute.xlu0 %2894
    %2896 = vset.pattern.permute.xlu0 0
    %2897 = vperm.xlu0 %2896, %v2852
    %v2898 = vpop.permute.xlu0 %2897
    %2899 = vset.pattern.permute.xlu0 0
    %2900 = vperm.xlu0 %2899, %v2853
    %v2901 = vpop.permute.xlu0 %2900
    %vm2902 = vcmp.eq.s32.totalorder %v45, %v2856
    %vm2903 = vcmp.eq.s32.totalorder %v45, %v2859
    %vm2904 = vcmp.eq.s32.totalorder %v45, %v2862
    %vm2905 = vcmp.eq.s32.totalorder %v45, %v2865
    %vm2906 = vcmp.eq.s32.totalorder %v45, %v2868
    %vm2907 = vcmp.eq.s32.totalorder %v45, %v2871
    %vm2908 = vcmp.eq.s32.totalorder %v45, %v2874
    %vm2909 = vcmp.eq.s32.totalorder %v45, %v2877
    %vm2910 = vcmp.eq.s32.totalorder %v45, %v2880
    %vm2911 = vcmp.eq.s32.totalorder %v45, %v2883
    %vm2912 = vcmp.eq.s32.totalorder %v45, %v2886
    %vm2913 = vcmp.eq.s32.totalorder %v45, %v2889
    %vm2914 = vcmp.eq.s32.totalorder %v45, %v2892
    %vm2915 = vcmp.eq.s32.totalorder %v45, %v2895
    %vm2916 = vcmp.eq.s32.totalorder %v45, %v2898
    %vm2917 = vcmp.eq.s32.totalorder %v45, %v2901
    %v2918 = vsel %vm2902, 1, 0
    %v2919 = vsel %vm2903, 1, 0
    %v2920 = vsel %vm2904, 1, 0
    %v2921 = vsel %vm2905, 1, 0
    %v2922 = vsel %vm2906, 1, 0
    %v2923 = vsel %vm2907, 1, 0
    %v2924 = vsel %vm2908, 1, 0
    %v2925 = vsel %vm2909, 1, 0
    %v2926 = vsel %vm2910, 1, 0
    %v2927 = vsel %vm2911, 1, 0
    %v2928 = vsel %vm2912, 1, 0
    %v2929 = vsel %vm2913, 1, 0
    %v2930 = vsel %vm2914, 1, 0
    %v2931 = vsel %vm2915, 1, 0
    %v2932 = vsel %vm2916, 1, 0
    %v2933 = vsel %vm2917, 1, 0
    %v2934 = vcvt.s32.f32 %v2918
    %v2935 = vcvt.s32.f32 %v2919
    %v2936 = vcvt.s32.f32 %v2920
    %v2937 = vcvt.s32.f32 %v2921
    %v2938 = vcvt.s32.f32 %v2922
    %v2939 = vcvt.s32.f32 %v2923
    %v2940 = vcvt.s32.f32 %v2924
    %v2941 = vcvt.s32.f32 %v2925
    %v2942 = vcvt.s32.f32 %v2926
    %v2943 = vcvt.s32.f32 %v2927
    %v2944 = vcvt.s32.f32 %v2928
    %v2945 = vcvt.s32.f32 %v2929
    %v2946 = vcvt.s32.f32 %v2930
    %v2947 = vcvt.s32.f32 %v2931
    %v2948 = vcvt.s32.f32 %v2932
    %v2949 = vcvt.s32.f32 %v2933
    %v2950 = vand.u32 %v27, 4294901760
    %2951 = vmatpush.msra.mxu0 %v2950
    %v2952 = vand.u32 %v26, 4294901760
    %2953 = vmatpush.msra.mxu0 %v2952
    %v2954 = vand.u32 %v25, 4294901760
    %2955 = vmatpush.msra.mxu0 %v2954
    %v2956 = vand.u32 %v24, 4294901760
    %2957 = vmatpush.msra.mxu0 %v2956
    %v2958 = vand.u32 %v23, 4294901760
    %2959 = vmatpush.msra.mxu0 %v2958
    %v2960 = vand.u32 %v22, 4294901760
    %2961 = vmatpush.msra.mxu0 %v2960
    %v2962 = vand.u32 %v21, 4294901760
    %2963 = vmatpush.msra.mxu0 %v2962
    %v2964 = vand.u32 %v20, 4294901760
    %2965 = vmatpush.msra.mxu0 %v2964
    %v2966 = vand.u32 %v19, 4294901760
    %2967 = vmatpush.msra.mxu0 %v2966
    %v2968 = vand.u32 %v18, 4294901760
    %2969 = vmatpush.msra.mxu0 %v2968
    %v2970 = vand.u32 %v17, 4294901760
    %2971 = vmatpush.msra.mxu0 %v2970
    %v2972 = vand.u32 %v16, 4294901760
    %2973 = vmatpush.msra.mxu0 %v2972
    %v2974 = vand.u32 %v15, 4294901760
    %2975 = vmatpush.msra.mxu0 %v2974
    %v2976 = vand.u32 %v14, 4294901760
    %2977 = vmatpush.msra.mxu0 %v2976
    %v2978 = vand.u32 %v13, 4294901760
    %2979 = vmatpush.msra.mxu0 %v2978
    %v2980 = vand.u32 %v12, 4294901760
    %2981 = vmatpush.msra.mxu0 %v2980
    %v2982 = vand.u32 %v2934, 4294901760
    %v2983 = vsub.f32 %v2934, %v2982
    %v2984 = vand.u32 %v2983, 4294901760
    %v2985 = vsub.f32 %v2983, %v2984
    %v2986 = vand.u32 %v2985, 4294901760
    %2987 = vmatmul.f32.gmra.mxu0 %v2986
    %v2988 = vpop.f32.mrf.mxu0
    %v2989 = vadd.f32 0.0, %v2988
    %v2990 = vand.u32 %v2935, 4294901760
    %v2991 = vsub.f32 %v2935, %v2990
    %v2992 = vand.u32 %v2991, 4294901760
    %v2993 = vsub.f32 %v2991, %v2992
    %v2994 = vand.u32 %v2993, 4294901760
    %2995 = vmatmul.f32.gmra.mxu0 %v2994
    %v2996 = vpop.f32.mrf.mxu0
    %v2997 = vadd.f32 0.0, %v2996
    %v2998 = vand.u32 %v2936, 4294901760
    %v2999 = vsub.f32 %v2936, %v2998
    %v3000 = vand.u32 %v2999, 4294901760
    %v3001 = vsub.f32 %v2999, %v3000
    %v3002 = vand.u32 %v3001, 4294901760
    %3003 = vmatmul.f32.gmra.mxu0 %v3002
    %v3004 = vpop.f32.mrf.mxu0
    %v3005 = vadd.f32 0.0, %v3004
    %v3006 = vand.u32 %v2937, 4294901760
    %v3007 = vsub.f32 %v2937, %v3006
    %v3008 = vand.u32 %v3007, 4294901760
    %v3009 = vsub.f32 %v3007, %v3008
    %v3010 = vand.u32 %v3009, 4294901760
    %3011 = vmatmul.f32.gmra.mxu0 %v3010
    %v3012 = vpop.f32.mrf.mxu0
    %v3013 = vadd.f32 0.0, %v3012
    %v3014 = vand.u32 %v2938, 4294901760
    %v3015 = vsub.f32 %v2938, %v3014
    %v3016 = vand.u32 %v3015, 4294901760
    %v3017 = vsub.f32 %v3015, %v3016
    %v3018 = vand.u32 %v3017, 4294901760
    %3019 = vmatmul.f32.gmra.mxu0 %v3018
    %v3020 = vpop.f32.mrf.mxu0
    %v3021 = vadd.f32 0.0, %v3020
    %v3022 = vand.u32 %v2939, 4294901760
    %v3023 = vsub.f32 %v2939, %v3022
    %v3024 = vand.u32 %v3023, 4294901760
    %v3025 = vsub.f32 %v3023, %v3024
    %v3026 = vand.u32 %v3025, 4294901760
    %3027 = vmatmul.f32.gmra.mxu0 %v3026
    %v3028 = vpop.f32.mrf.mxu0
    %v3029 = vadd.f32 0.0, %v3028
    %v3030 = vand.u32 %v2940, 4294901760
    %v3031 = vsub.f32 %v2940, %v3030
    %v3032 = vand.u32 %v3031, 4294901760
    %v3033 = vsub.f32 %v3031, %v3032
    %v3034 = vand.u32 %v3033, 4294901760
    %3035 = vmatmul.f32.gmra.mxu0 %v3034
    %v3036 = vpop.f32.mrf.mxu0
    %v3037 = vadd.f32 0.0, %v3036
    %v3038 = vand.u32 %v2941, 4294901760
    %v3039 = vsub.f32 %v2941, %v3038
    %v3040 = vand.u32 %v3039, 4294901760
    %v3041 = vsub.f32 %v3039, %v3040
    %v3042 = vand.u32 %v3041, 4294901760
    %3043 = vmatmul.f32.gmra.mxu0 %v3042
    %v3044 = vpop.f32.mrf.mxu0
    %v3045 = vadd.f32 0.0, %v3044
    %v3046 = vand.u32 %v2942, 4294901760
    %v3047 = vsub.f32 %v2942, %v3046
    %v3048 = vand.u32 %v3047, 4294901760
    %v3049 = vsub.f32 %v3047, %v3048
    %v3050 = vand.u32 %v3049, 4294901760
    %3051 = vmatmul.f32.gmra.mxu0 %v3050
    %v3052 = vpop.f32.mrf.mxu0
    %v3053 = vadd.f32 0.0, %v3052
    %v3054 = vand.u32 %v2943, 4294901760
    %v3055 = vsub.f32 %v2943, %v3054
    %v3056 = vand.u32 %v3055, 4294901760
    %v3057 = vsub.f32 %v3055, %v3056
    %v3058 = vand.u32 %v3057, 4294901760
    %3059 = vmatmul.f32.gmra.mxu0 %v3058
    %v3060 = vpop.f32.mrf.mxu0
    %v3061 = vadd.f32 0.0, %v3060
    %v3062 = vand.u32 %v2944, 4294901760
    %v3063 = vsub.f32 %v2944, %v3062
    %v3064 = vand.u32 %v3063, 4294901760
    %v3065 = vsub.f32 %v3063, %v3064
    %v3066 = vand.u32 %v3065, 4294901760
    %3067 = vmatmul.f32.gmra.mxu0 %v3066
    %v3068 = vpop.f32.mrf.mxu0
    %v3069 = vadd.f32 0.0, %v3068
    %v3070 = vand.u32 %v2945, 4294901760
    %v3071 = vsub.f32 %v2945, %v3070
    %v3072 = vand.u32 %v3071, 4294901760
    %v3073 = vsub.f32 %v3071, %v3072
    %v3074 = vand.u32 %v3073, 4294901760
    %3075 = vmatmul.f32.gmra.mxu0 %v3074
    %v3076 = vpop.f32.mrf.mxu0
    %v3077 = vadd.f32 0.0, %v3076
    %v3078 = vand.u32 %v2946, 4294901760
    %v3079 = vsub.f32 %v2946, %v3078
    %v3080 = vand.u32 %v3079, 4294901760
    %v3081 = vsub.f32 %v3079, %v3080
    %v3082 = vand.u32 %v3081, 4294901760
    %3083 = vmatmul.f32.gmra.mxu0 %v3082
    %v3084 = vpop.f32.mrf.mxu0
    %v3085 = vadd.f32 0.0, %v3084
    %v3086 = vand.u32 %v2947, 4294901760
    %v3087 = vsub.f32 %v2947, %v3086
    %v3088 = vand.u32 %v3087, 4294901760
    %v3089 = vsub.f32 %v3087, %v3088
    %v3090 = vand.u32 %v3089, 4294901760
    %3091 = vmatmul.f32.gmra.mxu0 %v3090
    %v3092 = vpop.f32.mrf.mxu0
    %v3093 = vadd.f32 0.0, %v3092
    %v3094 = vand.u32 %v2948, 4294901760
    %v3095 = vsub.f32 %v2948, %v3094
    %v3096 = vand.u32 %v3095, 4294901760
    %v3097 = vsub.f32 %v3095, %v3096
    %v3098 = vand.u32 %v3097, 4294901760
    %3099 = vmatmul.f32.gmra.mxu0 %v3098
    %v3100 = vpop.f32.mrf.mxu0
    %v3101 = vadd.f32 0.0, %v3100
    %v3102 = vand.u32 %v2949, 4294901760
    %v3103 = vsub.f32 %v2949, %v3102
    %v3104 = vand.u32 %v3103, 4294901760
    %v3105 = vsub.f32 %v3103, %v3104
    %v3106 = vand.u32 %v3105, 4294901760
    %3107 = vmatmul.f32.gmra.mxu0 %v3106
    %v3108 = vpop.f32.mrf.mxu0
    %v3109 = vadd.f32 0.0, %v3108
    %3110 = vdwg.mxu0
    %v3111 = vand.u32 %v27, 4294901760
    %v3112 = vsub.f32 %v27, %v3111
    %v3113 = vand.u32 %v3112, 4294901760
    %v3114 = vsub.f32 %v3112, %v3113
    %v3115 = vand.u32 %v3114, 4294901760
    %3116 = vmatpush.msra.mxu0 %v3115
    %v3117 = vand.u32 %v26, 4294901760
    %v3118 = vsub.f32 %v26, %v3117
    %v3119 = vand.u32 %v3118, 4294901760
    %v3120 = vsub.f32 %v3118, %v3119
    %v3121 = vand.u32 %v3120, 4294901760
    %3122 = vmatpush.msra.mxu0 %v3121
    %v3123 = vand.u32 %v25, 4294901760
    %v3124 = vsub.f32 %v25, %v3123
    %v3125 = vand.u32 %v3124, 4294901760
    %v3126 = vsub.f32 %v3124, %v3125
    %v3127 = vand.u32 %v3126, 4294901760
    %3128 = vmatpush.msra.mxu0 %v3127
    %v3129 = vand.u32 %v24, 4294901760
    %v3130 = vsub.f32 %v24, %v3129
    %v3131 = vand.u32 %v3130, 4294901760
    %v3132 = vsub.f32 %v3130, %v3131
    %v3133 = vand.u32 %v3132, 4294901760
    %3134 = vmatpush.msra.mxu0 %v3133
    %v3135 = vand.u32 %v23, 4294901760
    %v3136 = vsub.f32 %v23, %v3135
    %v3137 = vand.u32 %v3136, 4294901760
    %v3138 = vsub.f32 %v3136, %v3137
    %v3139 = vand.u32 %v3138, 4294901760
    %3140 = vmatpush.msra.mxu0 %v3139
    %v3141 = vand.u32 %v22, 4294901760
    %v3142 = vsub.f32 %v22, %v3141
    %v3143 = vand.u32 %v3142, 4294901760
    %v3144 = vsub.f32 %v3142, %v3143
    %v3145 = vand.u32 %v3144, 4294901760
    %3146 = vmatpush.msra.mxu0 %v3145
    %v3147 = vand.u32 %v21, 4294901760
    %v3148 = vsub.f32 %v21, %v3147
    %v3149 = vand.u32 %v3148, 4294901760
    %v3150 = vsub.f32 %v3148, %v3149
    %v3151 = vand.u32 %v3150, 4294901760
    %3152 = vmatpush.msra.mxu0 %v3151
    %v3153 = vand.u32 %v20, 4294901760
    %v3154 = vsub.f32 %v20, %v3153
    %v3155 = vand.u32 %v3154, 4294901760
    %v3156 = vsub.f32 %v3154, %v3155
    %v3157 = vand.u32 %v3156, 4294901760
    %3158 = vmatpush.msra.mxu0 %v3157
    %v3159 = vand.u32 %v19, 4294901760
    %v3160 = vsub.f32 %v19, %v3159
    %v3161 = vand.u32 %v3160, 4294901760
    %v3162 = vsub.f32 %v3160, %v3161
    %v3163 = vand.u32 %v3162, 4294901760
    %3164 = vmatpush.msra.mxu0 %v3163
    %v3165 = vand.u32 %v18, 4294901760
    %v3166 = vsub.f32 %v18, %v3165
    %v3167 = vand.u32 %v3166, 4294901760
    %v3168 = vsub.f32 %v3166, %v3167
    %v3169 = vand.u32 %v3168, 4294901760
    %3170 = vmatpush.msra.mxu0 %v3169
    %v3171 = vand.u32 %v17, 4294901760
    %v3172 = vsub.f32 %v17, %v3171
    %v3173 = vand.u32 %v3172, 4294901760
    %v3174 = vsub.f32 %v3172, %v3173
    %v3175 = vand.u32 %v3174, 4294901760
    %3176 = vmatpush.msra.mxu0 %v3175
    %v3177 = vand.u32 %v16, 4294901760
    %v3178 = vsub.f32 %v16, %v3177
    %v3179 = vand.u32 %v3178, 4294901760
    %v3180 = vsub.f32 %v3178, %v3179
    %v3181 = vand.u32 %v3180, 4294901760
    %3182 = vmatpush.msra.mxu0 %v3181
    %v3183 = vand.u32 %v15, 4294901760
    %v3184 = vsub.f32 %v15, %v3183
    %v3185 = vand.u32 %v3184, 4294901760
    %v3186 = vsub.f32 %v3184, %v3185
    %v3187 = vand.u32 %v3186, 4294901760
    %3188 = vmatpush.msra.mxu0 %v3187
    %v3189 = vand.u32 %v14, 4294901760
    %v3190 = vsub.f32 %v14, %v3189
    %v3191 = vand.u32 %v3190, 4294901760
    %v3192 = vsub.f32 %v3190, %v3191
    %v3193 = vand.u32 %v3192, 4294901760
    %3194 = vmatpush.msra.mxu0 %v3193
    %v3195 = vand.u32 %v13, 4294901760
    %v3196 = vsub.f32 %v13, %v3195
    %v3197 = vand.u32 %v3196, 4294901760
    %v3198 = vsub.f32 %v3196, %v3197
    %v3199 = vand.u32 %v3198, 4294901760
    %3200 = vmatpush.msra.mxu0 %v3199
    %v3201 = vand.u32 %v12, 4294901760
    %v3202 = vsub.f32 %v12, %v3201
    %v3203 = vand.u32 %v3202, 4294901760
    %v3204 = vsub.f32 %v3202, %v3203
    %v3205 = vand.u32 %v3204, 4294901760
    %3206 = vmatpush.msra.mxu0 %v3205
    %v3207 = vand.u32 %v2934, 4294901760
    %3208 = vmatmul.f32.gmra.mxu0 %v3207
    %v3209 = vpop.f32.mrf.mxu0
    %v3210 = vadd.f32 %v2989, %v3209
    %v3211 = vand.u32 %v2935, 4294901760
    %3212 = vmatmul.f32.gmra.mxu0 %v3211
    %v3213 = vpop.f32.mrf.mxu0
    %v3214 = vadd.f32 %v2997, %v3213
    %v3215 = vand.u32 %v2936, 4294901760
    %3216 = vmatmul.f32.gmra.mxu0 %v3215
    %v3217 = vpop.f32.mrf.mxu0
    %v3218 = vadd.f32 %v3005, %v3217
    %v3219 = vand.u32 %v2937, 4294901760
    %3220 = vmatmul.f32.gmra.mxu0 %v3219
    %v3221 = vpop.f32.mrf.mxu0
    %v3222 = vadd.f32 %v3013, %v3221
    %v3223 = vand.u32 %v2938, 4294901760
    %3224 = vmatmul.f32.gmra.mxu0 %v3223
    %v3225 = vpop.f32.mrf.mxu0
    %v3226 = vadd.f32 %v3021, %v3225
    %v3227 = vand.u32 %v2939, 4294901760
    %3228 = vmatmul.f32.gmra.mxu0 %v3227
    %v3229 = vpop.f32.mrf.mxu0
    %v3230 = vadd.f32 %v3029, %v3229
    %v3231 = vand.u32 %v2940, 4294901760
    %3232 = vmatmul.f32.gmra.mxu0 %v3231
    %v3233 = vpop.f32.mrf.mxu0
    %v3234 = vadd.f32 %v3037, %v3233
    %v3235 = vand.u32 %v2941, 4294901760
    %3236 = vmatmul.f32.gmra.mxu0 %v3235
    %v3237 = vpop.f32.mrf.mxu0
    %v3238 = vadd.f32 %v3045, %v3237
    %v3239 = vand.u32 %v2942, 4294901760
    %3240 = vmatmul.f32.gmra.mxu0 %v3239
    %v3241 = vpop.f32.mrf.mxu0
    %v3242 = vadd.f32 %v3053, %v3241
    %v3243 = vand.u32 %v2943, 4294901760
    %3244 = vmatmul.f32.gmra.mxu0 %v3243
    %v3245 = vpop.f32.mrf.mxu0
    %v3246 = vadd.f32 %v3061, %v3245
    %v3247 = vand.u32 %v2944, 4294901760
    %3248 = vmatmul.f32.gmra.mxu0 %v3247
    %v3249 = vpop.f32.mrf.mxu0
    %v3250 = vadd.f32 %v3069, %v3249
    %v3251 = vand.u32 %v2945, 4294901760
    %3252 = vmatmul.f32.gmra.mxu0 %v3251
    %v3253 = vpop.f32.mrf.mxu0
    %v3254 = vadd.f32 %v3077, %v3253
    %v3255 = vand.u32 %v2946, 4294901760
    %3256 = vmatmul.f32.gmra.mxu0 %v3255
    %v3257 = vpop.f32.mrf.mxu0
    %v3258 = vadd.f32 %v3085, %v3257
    %v3259 = vand.u32 %v2947, 4294901760
    %3260 = vmatmul.f32.gmra.mxu0 %v3259
    %v3261 = vpop.f32.mrf.mxu0
    %v3262 = vadd.f32 %v3093, %v3261
    %v3263 = vand.u32 %v2948, 4294901760
    %3264 = vmatmul.f32.gmra.mxu0 %v3263
    %v3265 = vpop.f32.mrf.mxu0
    %v3266 = vadd.f32 %v3101, %v3265
    %v3267 = vand.u32 %v2949, 4294901760
    %3268 = vmatmul.f32.gmra.mxu0 %v3267
    %v3269 = vpop.f32.mrf.mxu0
    %v3270 = vadd.f32 %v3109, %v3269
    %3271 = vdwg.mxu0
    %v3272 = vand.u32 %v27, 4294901760
    %v3273 = vsub.f32 %v27, %v3272
    %3274 = vmatpush.msra.mxu0 %v3273
    %v3275 = vand.u32 %v26, 4294901760
    %v3276 = vsub.f32 %v26, %v3275
    %3277 = vmatpush.msra.mxu0 %v3276
    %v3278 = vand.u32 %v25, 4294901760
    %v3279 = vsub.f32 %v25, %v3278
    %3280 = vmatpush.msra.mxu0 %v3279
    %v3281 = vand.u32 %v24, 4294901760
    %v3282 = vsub.f32 %v24, %v3281
    %3283 = vmatpush.msra.mxu0 %v3282
    %v3284 = vand.u32 %v23, 4294901760
    %v3285 = vsub.f32 %v23, %v3284
    %3286 = vmatpush.msra.mxu0 %v3285
    %v3287 = vand.u32 %v22, 4294901760
    %v3288 = vsub.f32 %v22, %v3287
    %3289 = vmatpush.msra.mxu0 %v3288
    %v3290 = vand.u32 %v21, 4294901760
    %v3291 = vsub.f32 %v21, %v3290
    %3292 = vmatpush.msra.mxu0 %v3291
    %v3293 = vand.u32 %v20, 4294901760
    %v3294 = vsub.f32 %v20, %v3293
    %3295 = vmatpush.msra.mxu0 %v3294
    %v3296 = vand.u32 %v19, 4294901760
    %v3297 = vsub.f32 %v19, %v3296
    %3298 = vmatpush.msra.mxu0 %v3297
    %v3299 = vand.u32 %v18, 4294901760
    %v3300 = vsub.f32 %v18, %v3299
    %3301 = vmatpush.msra.mxu0 %v3300
    %v3302 = vand.u32 %v17, 4294901760
    %v3303 = vsub.f32 %v17, %v3302
    %3304 = vmatpush.msra.mxu0 %v3303
    %v3305 = vand.u32 %v16, 4294901760
    %v3306 = vsub.f32 %v16, %v3305
    %3307 = vmatpush.msra.mxu0 %v3306
    %v3308 = vand.u32 %v15, 4294901760
    %v3309 = vsub.f32 %v15, %v3308
    %3310 = vmatpush.msra.mxu0 %v3309
    %v3311 = vand.u32 %v14, 4294901760
    %v3312 = vsub.f32 %v14, %v3311
    %3313 = vmatpush.msra.mxu0 %v3312
    %v3314 = vand.u32 %v13, 4294901760
    %v3315 = vsub.f32 %v13, %v3314
    %3316 = vmatpush.msra.mxu0 %v3315
    %v3317 = vand.u32 %v12, 4294901760
    %v3318 = vsub.f32 %v12, %v3317
    %3319 = vmatpush.msra.mxu0 %v3318
    %v3320 = vand.u32 %v2934, 4294901760
    %v3321 = vsub.f32 %v2934, %v3320
    %3322 = vmatmul.f32.gmra.mxu0 %v3321
    %v3323 = vpop.f32.mrf.mxu0
    %v3324 = vadd.f32 %v3210, %v3323
    %v3325 = vand.u32 %v2935, 4294901760
    %v3326 = vsub.f32 %v2935, %v3325
    %3327 = vmatmul.f32.gmra.mxu0 %v3326
    %v3328 = vpop.f32.mrf.mxu0
    %v3329 = vadd.f32 %v3214, %v3328
    %v3330 = vand.u32 %v2936, 4294901760
    %v3331 = vsub.f32 %v2936, %v3330
    %3332 = vmatmul.f32.gmra.mxu0 %v3331
    %v3333 = vpop.f32.mrf.mxu0
    %v3334 = vadd.f32 %v3218, %v3333
    %v3335 = vand.u32 %v2937, 4294901760
    %v3336 = vsub.f32 %v2937, %v3335
    %3337 = vmatmul.f32.gmra.mxu0 %v3336
    %v3338 = vpop.f32.mrf.mxu0
    %v3339 = vadd.f32 %v3222, %v3338
    %v3340 = vand.u32 %v2938, 4294901760
    %v3341 = vsub.f32 %v2938, %v3340
    %3342 = vmatmul.f32.gmra.mxu0 %v3341
    %v3343 = vpop.f32.mrf.mxu0
    %v3344 = vadd.f32 %v3226, %v3343
    %v3345 = vand.u32 %v2939, 4294901760
    %v3346 = vsub.f32 %v2939, %v3345
    %3347 = vmatmul.f32.gmra.mxu0 %v3346
    %v3348 = vpop.f32.mrf.mxu0
    %v3349 = vadd.f32 %v3230, %v3348
    %v3350 = vand.u32 %v2940, 4294901760
    %v3351 = vsub.f32 %v2940, %v3350
    %3352 = vmatmul.f32.gmra.mxu0 %v3351
    %v3353 = vpop.f32.mrf.mxu0
    %v3354 = vadd.f32 %v3234, %v3353
    %v3355 = vand.u32 %v2941, 4294901760
    %v3356 = vsub.f32 %v2941, %v3355
    %3357 = vmatmul.f32.gmra.mxu0 %v3356
    %v3358 = vpop.f32.mrf.mxu0
    %v3359 = vadd.f32 %v3238, %v3358
    %v3360 = vand.u32 %v2942, 4294901760
    %v3361 = vsub.f32 %v2942, %v3360
    %3362 = vmatmul.f32.gmra.mxu0 %v3361
    %v3363 = vpop.f32.mrf.mxu0
    %v3364 = vadd.f32 %v3242, %v3363
    %v3365 = vand.u32 %v2943, 4294901760
    %v3366 = vsub.f32 %v2943, %v3365
    %3367 = vmatmul.f32.gmra.mxu0 %v3366
    %v3368 = vpop.f32.mrf.mxu0
    %v3369 = vadd.f32 %v3246, %v3368
    %v3370 = vand.u32 %v2944, 4294901760
    %v3371 = vsub.f32 %v2944, %v3370
    %3372 = vmatmul.f32.gmra.mxu0 %v3371
    %v3373 = vpop.f32.mrf.mxu0
    %v3374 = vadd.f32 %v3250, %v3373
    %v3375 = vand.u32 %v2945, 4294901760
    %v3376 = vsub.f32 %v2945, %v3375
    %3377 = vmatmul.f32.gmra.mxu0 %v3376
    %v3378 = vpop.f32.mrf.mxu0
    %v3379 = vadd.f32 %v3254, %v3378
    %v3380 = vand.u32 %v2946, 4294901760
    %v3381 = vsub.f32 %v2946, %v3380
    %3382 = vmatmul.f32.gmra.mxu0 %v3381
    %v3383 = vpop.f32.mrf.mxu0
    %v3384 = vadd.f32 %v3258, %v3383
    %v3385 = vand.u32 %v2947, 4294901760
    %v3386 = vsub.f32 %v2947, %v3385
    %3387 = vmatmul.f32.gmra.mxu0 %v3386
    %v3388 = vpop.f32.mrf.mxu0
    %v3389 = vadd.f32 %v3262, %v3388
    %v3390 = vand.u32 %v2948, 4294901760
    %v3391 = vsub.f32 %v2948, %v3390
    %3392 = vmatmul.f32.gmra.mxu0 %v3391
    %v3393 = vpop.f32.mrf.mxu0
    %v3394 = vadd.f32 %v3266, %v3393
    %v3395 = vand.u32 %v2949, 4294901760
    %v3396 = vsub.f32 %v2949, %v3395
    %3397 = vmatmul.f32.gmra.mxu0 %v3396
    %v3398 = vpop.f32.mrf.mxu0
    %v3399 = vadd.f32 %v3270, %v3398
    %3400 = vdwg.mxu0
    %v3401 = vand.u32 %v27, 4294901760
    %3402 = vmatpush.msra.mxu0 %v3401
    %v3403 = vand.u32 %v26, 4294901760
    %3404 = vmatpush.msra.mxu0 %v3403
    %v3405 = vand.u32 %v25, 4294901760
    %3406 = vmatpush.msra.mxu0 %v3405
    %v3407 = vand.u32 %v24, 4294901760
    %3408 = vmatpush.msra.mxu0 %v3407
    %v3409 = vand.u32 %v23, 4294901760
    %3410 = vmatpush.msra.mxu0 %v3409
    %v3411 = vand.u32 %v22, 4294901760
    %3412 = vmatpush.msra.mxu0 %v3411
    %v3413 = vand.u32 %v21, 4294901760
    %3414 = vmatpush.msra.mxu0 %v3413
    %v3415 = vand.u32 %v20, 4294901760
    %3416 = vmatpush.msra.mxu0 %v3415
    %v3417 = vand.u32 %v19, 4294901760
    %3418 = vmatpush.msra.mxu0 %v3417
    %v3419 = vand.u32 %v18, 4294901760
    %3420 = vmatpush.msra.mxu0 %v3419
    %v3421 = vand.u32 %v17, 4294901760
    %3422 = vmatpush.msra.mxu0 %v3421
    %v3423 = vand.u32 %v16, 4294901760
    %3424 = vmatpush.msra.mxu0 %v3423
    %v3425 = vand.u32 %v15, 4294901760
    %3426 = vmatpush.msra.mxu0 %v3425
    %v3427 = vand.u32 %v14, 4294901760
    %3428 = vmatpush.msra.mxu0 %v3427
    %v3429 = vand.u32 %v13, 4294901760
    %3430 = vmatpush.msra.mxu0 %v3429
    %v3431 = vand.u32 %v12, 4294901760
    %3432 = vmatpush.msra.mxu0 %v3431
    %v3433 = vand.u32 %v2934, 4294901760
    %v3434 = vsub.f32 %v2934, %v3433
    %v3435 = vand.u32 %v3434, 4294901760
    %3436 = vmatmul.f32.gmra.mxu0 %v3435
    %v3437 = vpop.f32.mrf.mxu0
    %v3438 = vadd.f32 %v3324, %v3437
    %v3439 = vand.u32 %v2935, 4294901760
    %v3440 = vsub.f32 %v2935, %v3439
    %v3441 = vand.u32 %v3440, 4294901760
    %3442 = vmatmul.f32.gmra.mxu0 %v3441
    %v3443 = vpop.f32.mrf.mxu0
    %v3444 = vadd.f32 %v3329, %v3443
    %v3445 = vand.u32 %v2936, 4294901760
    %v3446 = vsub.f32 %v2936, %v3445
    %v3447 = vand.u32 %v3446, 4294901760
    %3448 = vmatmul.f32.gmra.mxu0 %v3447
    %v3449 = vpop.f32.mrf.mxu0
    %v3450 = vadd.f32 %v3334, %v3449
    %v3451 = vand.u32 %v2937, 4294901760
    %v3452 = vsub.f32 %v2937, %v3451
    %v3453 = vand.u32 %v3452, 4294901760
    %3454 = vmatmul.f32.gmra.mxu0 %v3453
    %v3455 = vpop.f32.mrf.mxu0
    %v3456 = vadd.f32 %v3339, %v3455
    %v3457 = vand.u32 %v2938, 4294901760
    %v3458 = vsub.f32 %v2938, %v3457
    %v3459 = vand.u32 %v3458, 4294901760
    %3460 = vmatmul.f32.gmra.mxu0 %v3459
    %v3461 = vpop.f32.mrf.mxu0
    %v3462 = vadd.f32 %v3344, %v3461
    %v3463 = vand.u32 %v2939, 4294901760
    %v3464 = vsub.f32 %v2939, %v3463
    %v3465 = vand.u32 %v3464, 4294901760
    %3466 = vmatmul.f32.gmra.mxu0 %v3465
    %v3467 = vpop.f32.mrf.mxu0
    %v3468 = vadd.f32 %v3349, %v3467
    %v3469 = vand.u32 %v2940, 4294901760
    %v3470 = vsub.f32 %v2940, %v3469
    %v3471 = vand.u32 %v3470, 4294901760
    %3472 = vmatmul.f32.gmra.mxu0 %v3471
    %v3473 = vpop.f32.mrf.mxu0
    %v3474 = vadd.f32 %v3354, %v3473
    %v3475 = vand.u32 %v2941, 4294901760
    %v3476 = vsub.f32 %v2941, %v3475
    %v3477 = vand.u32 %v3476, 4294901760
    %3478 = vmatmul.f32.gmra.mxu0 %v3477
    %v3479 = vpop.f32.mrf.mxu0
    %v3480 = vadd.f32 %v3359, %v3479
    %v3481 = vand.u32 %v2942, 4294901760
    %v3482 = vsub.f32 %v2942, %v3481
    %v3483 = vand.u32 %v3482, 4294901760
    %3484 = vmatmul.f32.gmra.mxu0 %v3483
    %v3485 = vpop.f32.mrf.mxu0
    %v3486 = vadd.f32 %v3364, %v3485
    %v3487 = vand.u32 %v2943, 4294901760
    %v3488 = vsub.f32 %v2943, %v3487
    %v3489 = vand.u32 %v3488, 4294901760
    %3490 = vmatmul.f32.gmra.mxu0 %v3489
    %v3491 = vpop.f32.mrf.mxu0
    %v3492 = vadd.f32 %v3369, %v3491
    %v3493 = vand.u32 %v2944, 4294901760
    %v3494 = vsub.f32 %v2944, %v3493
    %v3495 = vand.u32 %v3494, 4294901760
    %3496 = vmatmul.f32.gmra.mxu0 %v3495
    %v3497 = vpop.f32.mrf.mxu0
    %v3498 = vadd.f32 %v3374, %v3497
    %v3499 = vand.u32 %v2945, 4294901760
    %v3500 = vsub.f32 %v2945, %v3499
    %v3501 = vand.u32 %v3500, 4294901760
    %3502 = vmatmul.f32.gmra.mxu0 %v3501
    %v3503 = vpop.f32.mrf.mxu0
    %v3504 = vadd.f32 %v3379, %v3503
    %v3505 = vand.u32 %v2946, 4294901760
    %v3506 = vsub.f32 %v2946, %v3505
    %v3507 = vand.u32 %v3506, 4294901760
    %3508 = vmatmul.f32.gmra.mxu0 %v3507
    %v3509 = vpop.f32.mrf.mxu0
    %v3510 = vadd.f32 %v3384, %v3509
    %v3511 = vand.u32 %v2947, 4294901760
    %v3512 = vsub.f32 %v2947, %v3511
    %v3513 = vand.u32 %v3512, 4294901760
    %3514 = vmatmul.f32.gmra.mxu0 %v3513
    %v3515 = vpop.f32.mrf.mxu0
    %v3516 = vadd.f32 %v3389, %v3515
    %v3517 = vand.u32 %v2948, 4294901760
    %v3518 = vsub.f32 %v2948, %v3517
    %v3519 = vand.u32 %v3518, 4294901760
    %3520 = vmatmul.f32.gmra.mxu0 %v3519
    %v3521 = vpop.f32.mrf.mxu0
    %v3522 = vadd.f32 %v3394, %v3521
    %v3523 = vand.u32 %v2949, 4294901760
    %v3524 = vsub.f32 %v2949, %v3523
    %v3525 = vand.u32 %v3524, 4294901760
    %3526 = vmatmul.f32.gmra.mxu0 %v3525
    %v3527 = vpop.f32.mrf.mxu0
    %v3528 = vadd.f32 %v3399, %v3527
    %3529 = vdwg.mxu0
    %v3530 = vand.u32 %v27, 4294901760
    %v3531 = vsub.f32 %v27, %v3530
    %v3532 = vand.u32 %v3531, 4294901760
    %3533 = vmatpush.msra.mxu0 %v3532
    %v3534 = vand.u32 %v26, 4294901760
    %v3535 = vsub.f32 %v26, %v3534
    %v3536 = vand.u32 %v3535, 4294901760
    %3537 = vmatpush.msra.mxu0 %v3536
    %v3538 = vand.u32 %v25, 4294901760
    %v3539 = vsub.f32 %v25, %v3538
    %v3540 = vand.u32 %v3539, 4294901760
    %3541 = vmatpush.msra.mxu0 %v3540
    %v3542 = vand.u32 %v24, 4294901760
    %v3543 = vsub.f32 %v24, %v3542
    %v3544 = vand.u32 %v3543, 4294901760
    %3545 = vmatpush.msra.mxu0 %v3544
    %v3546 = vand.u32 %v23, 4294901760
    %v3547 = vsub.f32 %v23, %v3546
    %v3548 = vand.u32 %v3547, 4294901760
    %3549 = vmatpush.msra.mxu0 %v3548
    %v3550 = vand.u32 %v22, 4294901760
    %v3551 = vsub.f32 %v22, %v3550
    %v3552 = vand.u32 %v3551, 4294901760
    %3553 = vmatpush.msra.mxu0 %v3552
    %v3554 = vand.u32 %v21, 4294901760
    %v3555 = vsub.f32 %v21, %v3554
    %v3556 = vand.u32 %v3555, 4294901760
    %3557 = vmatpush.msra.mxu0 %v3556
    %v3558 = vand.u32 %v20, 4294901760
    %v3559 = vsub.f32 %v20, %v3558
    %v3560 = vand.u32 %v3559, 4294901760
    %3561 = vmatpush.msra.mxu0 %v3560
    %v3562 = vand.u32 %v19, 4294901760
    %v3563 = vsub.f32 %v19, %v3562
    %v3564 = vand.u32 %v3563, 4294901760
    %3565 = vmatpush.msra.mxu0 %v3564
    %v3566 = vand.u32 %v18, 4294901760
    %v3567 = vsub.f32 %v18, %v3566
    %v3568 = vand.u32 %v3567, 4294901760
    %3569 = vmatpush.msra.mxu0 %v3568
    %v3570 = vand.u32 %v17, 4294901760
    %v3571 = vsub.f32 %v17, %v3570
    %v3572 = vand.u32 %v3571, 4294901760
    %3573 = vmatpush.msra.mxu0 %v3572
    %v3574 = vand.u32 %v16, 4294901760
    %v3575 = vsub.f32 %v16, %v3574
    %v3576 = vand.u32 %v3575, 4294901760
    %3577 = vmatpush.msra.mxu0 %v3576
    %v3578 = vand.u32 %v15, 4294901760
    %v3579 = vsub.f32 %v15, %v3578
    %v3580 = vand.u32 %v3579, 4294901760
    %3581 = vmatpush.msra.mxu0 %v3580
    %v3582 = vand.u32 %v14, 4294901760
    %v3583 = vsub.f32 %v14, %v3582
    %v3584 = vand.u32 %v3583, 4294901760
    %3585 = vmatpush.msra.mxu0 %v3584
    %v3586 = vand.u32 %v13, 4294901760
    %v3587 = vsub.f32 %v13, %v3586
    %v3588 = vand.u32 %v3587, 4294901760
    %3589 = vmatpush.msra.mxu0 %v3588
    %v3590 = vand.u32 %v12, 4294901760
    %v3591 = vsub.f32 %v12, %v3590
    %v3592 = vand.u32 %v3591, 4294901760
    %3593 = vmatpush.msra.mxu0 %v3592
    %v3594 = vand.u32 %v2934, 4294901760
    %3595 = vmatmul.f32.gmra.mxu0 %v3594
    %v3596 = vpop.f32.mrf.mxu0
    %v3597 = vadd.f32 %v3438, %v3596
    %v3598 = vand.u32 %v2935, 4294901760
    %3599 = vmatmul.f32.gmra.mxu0 %v3598
    %v3600 = vpop.f32.mrf.mxu0
    %v3601 = vadd.f32 %v3444, %v3600
    %v3602 = vand.u32 %v2936, 4294901760
    %3603 = vmatmul.f32.gmra.mxu0 %v3602
    %v3604 = vpop.f32.mrf.mxu0
    %v3605 = vadd.f32 %v3450, %v3604
    %v3606 = vand.u32 %v2937, 4294901760
    %3607 = vmatmul.f32.gmra.mxu0 %v3606
    %v3608 = vpop.f32.mrf.mxu0
    %v3609 = vadd.f32 %v3456, %v3608
    %v3610 = vand.u32 %v2938, 4294901760
    %3611 = vmatmul.f32.gmra.mxu0 %v3610
    %v3612 = vpop.f32.mrf.mxu0
    %v3613 = vadd.f32 %v3462, %v3612
    %v3614 = vand.u32 %v2939, 4294901760
    %3615 = vmatmul.f32.gmra.mxu0 %v3614
    %v3616 = vpop.f32.mrf.mxu0
    %v3617 = vadd.f32 %v3468, %v3616
    %v3618 = vand.u32 %v2940, 4294901760
    %3619 = vmatmul.f32.gmra.mxu0 %v3618
    %v3620 = vpop.f32.mrf.mxu0
    %v3621 = vadd.f32 %v3474, %v3620
    %v3622 = vand.u32 %v2941, 4294901760
    %3623 = vmatmul.f32.gmra.mxu0 %v3622
    %v3624 = vpop.f32.mrf.mxu0
    %v3625 = vadd.f32 %v3480, %v3624
    %v3626 = vand.u32 %v2942, 4294901760
    %3627 = vmatmul.f32.gmra.mxu0 %v3626
    %v3628 = vpop.f32.mrf.mxu0
    %v3629 = vadd.f32 %v3486, %v3628
    %v3630 = vand.u32 %v2943, 4294901760
    %3631 = vmatmul.f32.gmra.mxu0 %v3630
    %v3632 = vpop.f32.mrf.mxu0
    %v3633 = vadd.f32 %v3492, %v3632
    %v3634 = vand.u32 %v2944, 4294901760
    %3635 = vmatmul.f32.gmra.mxu0 %v3634
    %v3636 = vpop.f32.mrf.mxu0
    %v3637 = vadd.f32 %v3498, %v3636
    %v3638 = vand.u32 %v2945, 4294901760
    %3639 = vmatmul.f32.gmra.mxu0 %v3638
    %v3640 = vpop.f32.mrf.mxu0
    %v3641 = vadd.f32 %v3504, %v3640
    %v3642 = vand.u32 %v2946, 4294901760
    %3643 = vmatmul.f32.gmra.mxu0 %v3642
    %v3644 = vpop.f32.mrf.mxu0
    %v3645 = vadd.f32 %v3510, %v3644
    %v3646 = vand.u32 %v2947, 4294901760
    %3647 = vmatmul.f32.gmra.mxu0 %v3646
    %v3648 = vpop.f32.mrf.mxu0
    %v3649 = vadd.f32 %v3516, %v3648
    %v3650 = vand.u32 %v2948, 4294901760
    %3651 = vmatmul.f32.gmra.mxu0 %v3650
    %v3652 = vpop.f32.mrf.mxu0
    %v3653 = vadd.f32 %v3522, %v3652
    %v3654 = vand.u32 %v2949, 4294901760
    %3655 = vmatmul.f32.gmra.mxu0 %v3654
    %v3656 = vpop.f32.mrf.mxu0
    %v3657 = vadd.f32 %v3528, %v3656
    %3658 = vdwg.mxu0
    %v3659 = vand.u32 %v27, 4294901760
    %3660 = vmatpush.msra.mxu0 %v3659
    %v3661 = vand.u32 %v26, 4294901760
    %3662 = vmatpush.msra.mxu0 %v3661
    %v3663 = vand.u32 %v25, 4294901760
    %3664 = vmatpush.msra.mxu0 %v3663
    %v3665 = vand.u32 %v24, 4294901760
    %3666 = vmatpush.msra.mxu0 %v3665
    %v3667 = vand.u32 %v23, 4294901760
    %3668 = vmatpush.msra.mxu0 %v3667
    %v3669 = vand.u32 %v22, 4294901760
    %3670 = vmatpush.msra.mxu0 %v3669
    %v3671 = vand.u32 %v21, 4294901760
    %3672 = vmatpush.msra.mxu0 %v3671
    %v3673 = vand.u32 %v20, 4294901760
    %3674 = vmatpush.msra.mxu0 %v3673
    %v3675 = vand.u32 %v19, 4294901760
    %3676 = vmatpush.msra.mxu0 %v3675
    %v3677 = vand.u32 %v18, 4294901760
    %3678 = vmatpush.msra.mxu0 %v3677
    %v3679 = vand.u32 %v17, 4294901760
    %3680 = vmatpush.msra.mxu0 %v3679
    %v3681 = vand.u32 %v16, 4294901760
    %3682 = vmatpush.msra.mxu0 %v3681
    %v3683 = vand.u32 %v15, 4294901760
    %3684 = vmatpush.msra.mxu0 %v3683
    %v3685 = vand.u32 %v14, 4294901760
    %3686 = vmatpush.msra.mxu0 %v3685
    %v3687 = vand.u32 %v13, 4294901760
    %3688 = vmatpush.msra.mxu0 %v3687
    %v3689 = vand.u32 %v12, 4294901760
    %3690 = vmatpush.msra.mxu0 %v3689
    %v3691 = vand.u32 %v2934, 4294901760
    %3692 = vmatmul.f32.gmra.mxu0 %v3691
    %v3693 = vpop.f32.mrf.mxu0
    %v3694 = vadd.f32 %v3597, %v3693
    %v3695 = vand.u32 %v2935, 4294901760
    %3696 = vmatmul.f32.gmra.mxu0 %v3695
    %v3697 = vpop.f32.mrf.mxu0
    %v3698 = vadd.f32 %v3601, %v3697
    %v3699 = vand.u32 %v2936, 4294901760
    %3700 = vmatmul.f32.gmra.mxu0 %v3699
    %v3701 = vpop.f32.mrf.mxu0
    %v3702 = vadd.f32 %v3605, %v3701
    %v3703 = vand.u32 %v2937, 4294901760
    %3704 = vmatmul.f32.gmra.mxu0 %v3703
    %v3705 = vpop.f32.mrf.mxu0
    %v3706 = vadd.f32 %v3609, %v3705
    %v3707 = vand.u32 %v2938, 4294901760
    %3708 = vmatmul.f32.gmra.mxu0 %v3707
    %v3709 = vpop.f32.mrf.mxu0
    %v3710 = vadd.f32 %v3613, %v3709
    %v3711 = vand.u32 %v2939, 4294901760
    %3712 = vmatmul.f32.gmra.mxu0 %v3711
    %v3713 = vpop.f32.mrf.mxu0
    %v3714 = vadd.f32 %v3617, %v3713
    %v3715 = vand.u32 %v2940, 4294901760
    %3716 = vmatmul.f32.gmra.mxu0 %v3715
    %v3717 = vpop.f32.mrf.mxu0
    %v3718 = vadd.f32 %v3621, %v3717
    %v3719 = vand.u32 %v2941, 4294901760
    %3720 = vmatmul.f32.gmra.mxu0 %v3719
    %v3721 = vpop.f32.mrf.mxu0
    %v3722 = vadd.f32 %v3625, %v3721
    %v3723 = vand.u32 %v2942, 4294901760
    %3724 = vmatmul.f32.gmra.mxu0 %v3723
    %v3725 = vpop.f32.mrf.mxu0
    %v3726 = vadd.f32 %v3629, %v3725
    %v3727 = vand.u32 %v2943, 4294901760
    %3728 = vmatmul.f32.gmra.mxu0 %v3727
    %v3729 = vpop.f32.mrf.mxu0
    %v3730 = vadd.f32 %v3633, %v3729
    %v3731 = vand.u32 %v2944, 4294901760
    %3732 = vmatmul.f32.gmra.mxu0 %v3731
    %v3733 = vpop.f32.mrf.mxu0
    %v3734 = vadd.f32 %v3637, %v3733
    %v3735 = vand.u32 %v2945, 4294901760
    %3736 = vmatmul.f32.gmra.mxu0 %v3735
    %v3737 = vpop.f32.mrf.mxu0
    %v3738 = vadd.f32 %v3641, %v3737
    %v3739 = vand.u32 %v2946, 4294901760
    %3740 = vmatmul.f32.gmra.mxu0 %v3739
    %v3741 = vpop.f32.mrf.mxu0
    %v3742 = vadd.f32 %v3645, %v3741
    %v3743 = vand.u32 %v2947, 4294901760
    %3744 = vmatmul.f32.gmra.mxu0 %v3743
    %v3745 = vpop.f32.mrf.mxu0
    %v3746 = vadd.f32 %v3649, %v3745
    %v3747 = vand.u32 %v2948, 4294901760
    %3748 = vmatmul.f32.gmra.mxu0 %v3747
    %v3749 = vpop.f32.mrf.mxu0
    %v3750 = vadd.f32 %v3653, %v3749
    %v3751 = vand.u32 %v2949, 4294901760
    %3752 = vmatmul.f32.gmra.mxu0 %v3751
    %v3753 = vpop.f32.mrf.mxu0
    %v3754 = vadd.f32 %v3657, %v3753
    %3755 = vdwg.mxu0
    %s3756 = scalar_lea.vmem [#allocation2], 384
    %3757 = vst.msk [vmem:[%s3756] sm:$0xff] %vm948, %v3694
    %3758 = vst.msk [vmem:[%s3756 + $0x8] sm:$0xff] %vm948, %v3698
    %3759 = vst.msk [vmem:[%s3756 + $0x10] sm:$0xff] %vm948, %v3702
    %3760 = vst.msk [vmem:[%s3756 + $0x18] sm:$0xff] %vm948, %v3706
    %3761 = vst.msk [vmem:[%s3756 + $0x20] sm:$0xff] %vm948, %v3710
    %3762 = vst.msk [vmem:[%s3756 + $0x28] sm:$0xff] %vm948, %v3714
    %3763 = vst.msk [vmem:[%s3756 + $0x30] sm:$0xff] %vm948, %v3718
    %3764 = vst.msk [vmem:[%s3756 + $0x38] sm:$0xff] %vm948, %v3722
    %3765 = vst.msk [vmem:[%s3756 + $0x40] sm:$0xff] %vm948, %v3726
    %3766 = vst.msk [vmem:[%s3756 + $0x48] sm:$0xff] %vm948, %v3730
    %3767 = vst.msk [vmem:[%s3756 + $0x50] sm:$0xff] %vm948, %v3734
    %3768 = vst.msk [vmem:[%s3756 + $0x58] sm:$0xff] %vm948, %v3738
    %3769 = vst.msk [vmem:[%s3756 + $0x60] sm:$0xff] %vm948, %v3742
    %3770 = vst.msk [vmem:[%s3756 + $0x68] sm:$0xff] %vm948, %v3746
    %3771 = vst.msk [vmem:[%s3756 + $0x70] sm:$0xff] %vm948, %v3750
    %3772 = vst.msk [vmem:[%s3756 + $0x78] sm:$0xff] %vm948, %v3754
    // Predicated region
    $region10: #{_forward_impl.1} parent=1 // pred_check
      _
    $region11: #{_forward_impl.1} parent=1 // pred_check_branch
      %3774 = sbr.rel (0) target = $region13
    $region12: #{_forward_impl.1} parent=1 // pred_region
      %3776 = vsyncadd [#allocation3], 8064
      %s3777 = sshll.u32 [#allocation2], 4
      %s3778 = int_to_ptr.vmem [resolvable:$true] %s3777
      %s3779 = sshll.u32 %s2, 4
      %s3780 = int_to_ptr.hbm [resolvable:$true] %s3779
      %3785 = dma.vmem_to_hbm [thread:$0]  %s3778, 128, %s3780, [#allocation3], 128, 128, 8
    $region13: #{_forward_impl.1} parent=1 // pred_fallthru
      _
    // Predicated region
    $region14: #{_forward_impl.1} parent=1 // pred_check
      _
    $region15: #{_forward_impl.1} parent=1 // pred_check_branch
      %3787 = sbr.rel (0) target = $region17
    $region16: #{_forward_impl.1} parent=1 // pred_region
      %3789 = dma.done [#allocation3], 8192
    $region17: #{_forward_impl.1} parent=1 // pred_fallthru
      _
    %3790 = vsyncpa [#allocation3], 1

</llo_original>
